<compile_context>
chip_gen: v7x
topology: tpu7x:2x2x1
jax: 0.10.0
libtpu: 0.0.40
codegen_flags: <defaults>
</compile_context>

<pallas_src>
import jax
import jax.numpy as jnp
from jax import lax
from jax.experimental import pallas as pl
from jax.experimental.pallas import tpu as pltpu

KH = KW = 5
STRIDE = 2
PAD = 2
EPS = 1e-5


def _dwconv_bn_kernel(x_ref, w_ref, gb_ref, o_ref):
    """One channel block of fused depthwise conv (5x5, stride 2) + BatchNorm2d.

    x_ref:  (N, Hh, 2, KW, Jp, CB)  pre-shifted, zero-padded, channels-last input:
            x_ref[n, i, ph, kw, j, c] == x_pad[n, 2*i + ph, 2*j + kw, c]
    w_ref:  (KH*KW, CB)             depthwise taps; tap (kh, kw) at row kh*KW + kw
    gb_ref: (2, CB)                 row 0 = gamma, row 1 = beta
    o_ref:  (N, Ho, Wo, CB)
    """
    N, Ho, Wo, CB = o_ref.shape
    Jp = x_ref.shape[4]

    # --- depthwise conv: 25 static taps; every slice is leading-dim address math,
    # the minor two dims of every load are a clean (Jp=8, CB) tile.
    acc = jnp.zeros((N, Ho, Jp, CB), jnp.float32)
    for kh in range(KH):
        ph, oh = kh % 2, kh // 2
        for kw in range(KW):
            tap = w_ref[kh * KW + kw:kh * KW + kw + 1, :].astype(jnp.float32)  # (1, CB)
            sl = x_ref[:, oh:oh + Ho, ph, kw, :, :].astype(jnp.float32)        # (N,Ho,Jp,CB)
            acc = acc + sl * tap

    # Columns Wo..Jp-1 exist only for sublane alignment and may hold junk products;
    # exclude them from both the statistics and the store.
    valid = acc[:, :, :Wo, :]

    # --- BatchNorm2d forward (module default = training mode): per-channel batch
    # statistics over (N, H, W), biased variance, affine.  Single stats pass
    # (sum + sum of squares) + single affine pass (no `centered` materialization).
    inv_cnt = 1.0 / jnp.float32(N * Ho * Wo)
    mean = jnp.sum(jnp.sum(valid, axis=(0, 1)), axis=0, keepdims=True) * inv_cnt      # (1,CB)
    ex2 = jnp.sum(jnp.sum(valid * valid, axis=(0, 1)), axis=0, keepdims=True) * inv_cnt
    var = jnp.maximum(ex2 - mean * mean, 0.0)

    gamma = gb_ref[0:1, :]
    beta = gb_ref[1:2, :]
    scale = lax.rsqrt(var + EPS) * gamma
    shift = beta - mean * scale
    o_ref[...] = (valid * scale + shift).astype(o_ref.dtype)


def dwconv_bn_nhwc(x_nhwc, w_dw, gamma, beta, *, cb=384):
    """Channels-last entry point.  x_nhwc: (N, H, W, C) f32; w_dw: (C, 1, KH, KW)
    PyTorch depthwise weight.  Returns (N, Ho, Wo, C)."""
    N, H, W, C = x_nhwc.shape
    # TODO(synk): phase-split layout assumes even H/W (true for this module's 14x14).
    assert H % 2 == 0 and W % 2 == 0
    Ho = (H + 2 * PAD - KH) // STRIDE + 1
    Wo = (W + 2 * PAD - KW) // STRIDE + 1
    Hp = H + 2 * PAD
    Hh = Hp // STRIDE
    assert Hh >= Ho + (KH - 1) // STRIDE

    assert cb % 128 == 0
    Cp = pl.cdiv(C, cb) * cb           # 720 -> 768: lane-dense, even channel grid
    pc = Cp - C                        # padded channels MUST be zero (weights, gamma,
                                       # beta) so their var=0 lanes stay inert.

    Jp = pl.cdiv(Wo, 8) * 8            # sublane-aligned output-width columns (7 -> 8)
    Wneed = STRIDE * (Jp - 1) + KW     # rightmost padded-width index + 1 that slices touch
    Wp = max(W + 2 * PAD, Wneed)

    # Channels-last zero pad (conv halo + width slack + channel pad): xp[n, h, w, c].
    xp = jnp.pad(x_nhwc, ((0, 0), (PAD, PAD), (PAD, Wp - W - PAD), (0, pc)))
    # Free reshape: height phase split  xh[n, i, ph, w, c] = xp[n, 2*i + ph, w, c].
    xh = xp.reshape(N, Hh, STRIDE, Wp, Cp)
    # Pre-apply the kw shift so every in-kernel slice is leading-dim address math:
    #   xsh[n, i, ph, kw, j, c] = xp[n, 2*i + ph, 2*j + kw, c]
    xsh = jnp.stack(
        [lax.slice_in_dim(xh, kw, kw + STRIDE * (Jp - 1) + 1, stride=STRIDE, axis=3)
         for kw in range(KW)],
        axis=3)                                                   # (N, Hh, 2, KW, Jp, Cp)

    # Depthwise taps flattened + channel-last: w_flat[kh*KW + kw, c].
    w_flat = jnp.pad(jnp.transpose(w_dw.reshape(C, KH * KW), (1, 0)),
                     ((0, 0), (0, pc))).astype(jnp.float32)        # (KH*KW, Cp)
    # gamma / beta merged into one (2, Cp) operand (zero-padded channels).
    gb = jnp.stack([jnp.pad(gamma.astype(jnp.float32), (0, pc)),
                    jnp.pad(beta.astype(jnp.float32), (0, pc))])   # (2, Cp)

    out = pl.pallas_call(
        _dwconv_bn_kernel,
        out_shape=jax.ShapeDtypeStruct((N, Ho, Wo, Cp), jnp.float32),
        grid=(Cp // cb,),
        in_specs=[
            pl.BlockSpec((N, Hh, STRIDE, KW, Jp, cb), lambda c: (0, 0, 0, 0, 0, c)),
            pl.BlockSpec((KH * KW, cb), lambda c: (0, c)),
            pl.BlockSpec((2, cb), lambda c: (0, c)),
        ],
        out_specs=pl.BlockSpec((N, Ho, Wo, cb), lambda c: (0, 0, 0, c)),
        compiler_params=pltpu.CompilerParams(
            dimension_semantics=("parallel",)),
    )(xsh, w_flat, gb)

    return out[..., :C]


def dwconv_bn(x_nchw, w_dw, gamma, beta, *, cb=384):
    """NCHW wrapper matching the PyTorch module's interface.

    The NCHW<->channels-last relayouts are kept outside the kernel (the kernel writes
    a lane-dense NHWC slab); in a real network keep activations channels-last across
    layers and call dwconv_bn_nhwc directly to skip both transposes.
    """
    x_nhwc = jnp.transpose(x_nchw, (0, 2, 3, 1))
    out_nhwc = dwconv_bn_nhwc(x_nhwc, w_dw, gamma, beta, cb=cb)
    return jnp.transpose(out_nhwc, (0, 3, 1, 2))


def reference(x_nchw, w_dw, gamma, beta):
    """Pure-JAX reference: grouped conv + training-mode batch norm."""
    conv = lax.conv_general_dilated(
        x_nchw, w_dw, window_strides=(STRIDE, STRIDE),
        padding=((PAD, PAD), (PAD, PAD)),
        feature_group_count=x_nchw.shape[1])
    mean = jnp.mean(conv, axis=(0, 2, 3), keepdims=True)
    var = jnp.mean((conv - mean) ** 2, axis=(0, 2, 3), keepdims=True)
    g = gamma.reshape(1, -1, 1, 1)
    b = beta.reshape(1, -1, 1, 1)
    return (conv - mean) * lax.rsqrt(var + EPS) * g + b


# TODO(synk): BatchNorm running_mean/running_var momentum updates (training-mode
# side effect) are not modeled; they do not affect the returned tensor.

if __name__ == "__main__":
    key = jax.random.PRNGKey(0)
    kx, kw_, kg, kb = jax.random.split(key, 4)

    # shapes implied by the module: x246 = randn(1, 720, 14, 14)
    N, C, H, W = 1, 720, 14, 14
    x = jax.random.normal(kx, (N, C, H, W), jnp.float32)
    w = jax.random.normal(kw_, (C, 1, KH, KW), jnp.float32) * 0.1   # Conv2d(720,720,5,groups=720)
    gamma = 1.0 + 0.1 * jax.random.normal(kg, (C,), jnp.float32)    # BatchNorm2d affine weight
    beta = 0.1 * jax.random.normal(kb, (C,), jnp.float32)           # BatchNorm2d affine bias

    fused = jax.jit(dwconv_bn)
    out = jax.block_until_ready(fused(x, w, gamma, beta))
    ref = jax.block_until_ready(reference(x, w, gamma, beta))

    assert out.shape == (N, C, 7, 7), out.shape
    err = float(jnp.max(jnp.abs(out - ref)))
    assert jnp.allclose(out, ref, atol=1e-3, rtol=1e-3), err
    print("KERNEL_OK")
</pallas_src>

<mosaic_0001>
module attributes {stable_mosaic.version = 11 : i64} {
  func.func @_dwconv_bn_kernel(%arg0: i32, %arg1: memref<1x9x2x5x8x384xf32, #tpu.memory_space<vmem>>, %arg2: memref<25x384xf32, #tpu.memory_space<vmem>>, %arg3: memref<2x384xf32, #tpu.memory_space<vmem>>, %arg4: memref<1x7x7x384xf32, #tpu.memory_space<vmem>>) attributes {dimension_semantics = [#tpu.dimension_semantics<parallel>], iteration_bounds = array<i64: 2>, scalar_prefetch = 0 : i64, scratch_operands = 0 : i64, tpu.core_type = #tpu.core_type<tc>, window_params = [{transform_indices = @transform_0, window_bounds = array<i64: 1, 9, 2, 5, 8, 384>}, {transform_indices = @transform_1, window_bounds = array<i64: 25, 384>}, {transform_indices = @transform_2, window_bounds = array<i64: 2, 384>}, {transform_indices = @transform_3, window_bounds = array<i64: 1, 7, 7, 384>}]} {
    %cst = arith.constant 0.000000e+00 : f32
    %0 = vector.broadcast %cst : f32 to vector<1x7x8x384xf32>
    %c0 = arith.constant 0 : index
    %c0_0 = arith.constant 0 : index
    %1 = vector.load %arg2[%c0, %c0_0] : memref<25x384xf32, #tpu.memory_space<vmem>>, vector<1x384xf32>
    %c0_1 = arith.constant 0 : index
    %c0_2 = arith.constant 0 : index
    %c0_3 = arith.constant 0 : index
    %c0_4 = arith.constant 0 : index
    %c0_5 = arith.constant 0 : index
    %c0_6 = arith.constant 0 : index
    %2 = vector.load %arg1[%c0_1, %c0_2, %c0_3, %c0_4, %c0_5, %c0_6] : memref<1x9x2x5x8x384xf32, #tpu.memory_space<vmem>>, vector<1x7x1x1x8x384xf32>
    %3 = vector.shape_cast %2 : vector<1x7x1x1x8x384xf32> to vector<1x7x8x384xf32>
    %4 = vector.shape_cast %1 : vector<1x384xf32> to vector<1x1x1x384xf32>
    %5 = vector.broadcast %4 : vector<1x1x1x384xf32> to vector<1x7x8x384xf32>
    %6 = arith.mulf %3, %5 : vector<1x7x8x384xf32>
    %7 = arith.addf %0, %6 : vector<1x7x8x384xf32>
    %c1 = arith.constant 1 : index
    %c0_7 = arith.constant 0 : index
    %8 = vector.load %arg2[%c1, %c0_7] : memref<25x384xf32, #tpu.memory_space<vmem>>, vector<1x384xf32>
    %c0_8 = arith.constant 0 : index
    %c0_9 = arith.constant 0 : index
    %c0_10 = arith.constant 0 : index
    %c1_11 = arith.constant 1 : index
    %c0_12 = arith.constant 0 : index
    %c0_13 = arith.constant 0 : index
    %9 = vector.load %arg1[%c0_8, %c0_9, %c0_10, %c1_11, %c0_12, %c0_13] : memref<1x9x2x5x8x384xf32, #tpu.memory_space<vmem>>, vector<1x7x1x1x8x384xf32>
    %10 = vector.shape_cast %9 : vector<1x7x1x1x8x384xf32> to vector<1x7x8x384xf32>
    %11 = vector.shape_cast %8 : vector<1x384xf32> to vector<1x1x1x384xf32>
    %12 = vector.broadcast %11 : vector<1x1x1x384xf32> to vector<1x7x8x384xf32>
    %13 = arith.mulf %10, %12 : vector<1x7x8x384xf32>
    %14 = arith.addf %7, %13 : vector<1x7x8x384xf32>
    %c2 = arith.constant 2 : index
    %c0_14 = arith.constant 0 : index
    %15 = vector.load %arg2[%c2, %c0_14] : memref<25x384xf32, #tpu.memory_space<vmem>>, vector<1x384xf32>
    %c0_15 = arith.constant 0 : index
    %c0_16 = arith.constant 0 : index
    %c0_17 = arith.constant 0 : index
    %c2_18 = arith.constant 2 : index
    %c0_19 = arith.constant 0 : index
    %c0_20 = arith.constant 0 : index
    %16 = vector.load %arg1[%c0_15, %c0_16, %c0_17, %c2_18, %c0_19, %c0_20] : memref<1x9x2x5x8x384xf32, #tpu.memory_space<vmem>>, vector<1x7x1x1x8x384xf32>
    %17 = vector.shape_cast %16 : vector<1x7x1x1x8x384xf32> to vector<1x7x8x384xf32>
    %18 = vector.shape_cast %15 : vector<1x384xf32> to vector<1x1x1x384xf32>
    %19 = vector.broadcast %18 : vector<1x1x1x384xf32> to vector<1x7x8x384xf32>
    %20 = arith.mulf %17, %19 : vector<1x7x8x384xf32>
    %21 = arith.addf %14, %20 : vector<1x7x8x384xf32>
    %c3 = arith.constant 3 : index
    %c0_21 = arith.constant 0 : index
    %22 = vector.load %arg2[%c3, %c0_21] : memref<25x384xf32, #tpu.memory_space<vmem>>, vector<1x384xf32>
    %c0_22 = arith.constant 0 : index
    %c0_23 = arith.constant 0 : index
    %c0_24 = arith.constant 0 : index
    %c3_25 = arith.constant 3 : index
    %c0_26 = arith.constant 0 : index
    %c0_27 = arith.constant 0 : index
    %23 = vector.load %arg1[%c0_22, %c0_23, %c0_24, %c3_25, %c0_26, %c0_27] : memref<1x9x2x5x8x384xf32, #tpu.memory_space<vmem>>, vector<1x7x1x1x8x384xf32>
    %24 = vector.shape_cast %23 : vector<1x7x1x1x8x384xf32> to vector<1x7x8x384xf32>
    %25 = vector.shape_cast %22 : vector<1x384xf32> to vector<1x1x1x384xf32>
    %26 = vector.broadcast %25 : vector<1x1x1x384xf32> to vector<1x7x8x384xf32>
    %27 = arith.mulf %24, %26 : vector<1x7x8x384xf32>
    %28 = arith.addf %21, %27 : vector<1x7x8x384xf32>
    %c4 = arith.constant 4 : index
    %c0_28 = arith.constant 0 : index
    %29 = vector.load %arg2[%c4, %c0_28] : memref<25x384xf32, #tpu.memory_space<vmem>>, vector<1x384xf32>
    %c0_29 = arith.constant 0 : index
    %c0_30 = arith.constant 0 : index
    %c0_31 = arith.constant 0 : index
    %c4_32 = arith.constant 4 : index
    %c0_33 = arith.constant 0 : index
    %c0_34 = arith.constant 0 : index
    %30 = vector.load %arg1[%c0_29, %c0_30, %c0_31, %c4_32, %c0_33, %c0_34] : memref<1x9x2x5x8x384xf32, #tpu.memory_space<vmem>>, vector<1x7x1x1x8x384xf32>
    %31 = vector.shape_cast %30 : vector<1x7x1x1x8x384xf32> to vector<1x7x8x384xf32>
    %32 = vector.shape_cast %29 : vector<1x384xf32> to vector<1x1x1x384xf32>
    %33 = vector.broadcast %32 : vector<1x1x1x384xf32> to vector<1x7x8x384xf32>
    %34 = arith.mulf %31, %33 : vector<1x7x8x384xf32>
    %35 = arith.addf %28, %34 : vector<1x7x8x384xf32>
    %c5 = arith.constant 5 : index
    %c0_35 = arith.constant 0 : index
    %36 = vector.load %arg2[%c5, %c0_35] : memref<25x384xf32, #tpu.memory_space<vmem>>, vector<1x384xf32>
    %c0_36 = arith.constant 0 : index
    %c0_37 = arith.constant 0 : index
    %c1_38 = arith.constant 1 : index
    %c0_39 = arith.constant 0 : index
    %c0_40 = arith.constant 0 : index
    %c0_41 = arith.constant 0 : index
    %37 = vector.load %arg1[%c0_36, %c0_37, %c1_38, %c0_39, %c0_40, %c0_41] : memref<1x9x2x5x8x384xf32, #tpu.memory_space<vmem>>, vector<1x7x1x1x8x384xf32>
    %38 = vector.shape_cast %37 : vector<1x7x1x1x8x384xf32> to vector<1x7x8x384xf32>
    %39 = vector.shape_cast %36 : vector<1x384xf32> to vector<1x1x1x384xf32>
    %40 = vector.broadcast %39 : vector<1x1x1x384xf32> to vector<1x7x8x384xf32>
    %41 = arith.mulf %38, %40 : vector<1x7x8x384xf32>
    %42 = arith.addf %35, %41 : vector<1x7x8x384xf32>
    %c6 = arith.constant 6 : index
    %c0_42 = arith.constant 0 : index
    %43 = vector.load %arg2[%c6, %c0_42] : memref<25x384xf32, #tpu.memory_space<vmem>>, vector<1x384xf32>
    %c0_43 = arith.constant 0 : index
    %c0_44 = arith.constant 0 : index
    %c1_45 = arith.constant 1 : index
    %c1_46 = arith.constant 1 : index
    %c0_47 = arith.constant 0 : index
    %c0_48 = arith.constant 0 : index
    %44 = vector.load %arg1[%c0_43, %c0_44, %c1_45, %c1_46, %c0_47, %c0_48] : memref<1x9x2x5x8x384xf32, #tpu.memory_space<vmem>>, vector<1x7x1x1x8x384xf32>
    %45 = vector.shape_cast %44 : vector<1x7x1x1x8x384xf32> to vector<1x7x8x384xf32>
    %46 = vector.shape_cast %43 : vector<1x384xf32> to vector<1x1x1x384xf32>
    %47 = vector.broadcast %46 : vector<1x1x1x384xf32> to vector<1x7x8x384xf32>
    %48 = arith.mulf %45, %47 : vector<1x7x8x384xf32>
    %49 = arith.addf %42, %48 : vector<1x7x8x384xf32>
    %c7 = arith.constant 7 : index
    %c0_49 = arith.constant 0 : index
    %50 = vector.load %arg2[%c7, %c0_49] : memref<25x384xf32, #tpu.memory_space<vmem>>, vector<1x384xf32>
    %c0_50 = arith.constant 0 : index
    %c0_51 = arith.constant 0 : index
    %c1_52 = arith.constant 1 : index
    %c2_53 = arith.constant 2 : index
    %c0_54 = arith.constant 0 : index
    %c0_55 = arith.constant 0 : index
    %51 = vector.load %arg1[%c0_50, %c0_51, %c1_52, %c2_53, %c0_54, %c0_55] : memref<1x9x2x5x8x384xf32, #tpu.memory_space<vmem>>, vector<1x7x1x1x8x384xf32>
    %52 = vector.shape_cast %51 : vector<1x7x1x1x8x384xf32> to vector<1x7x8x384xf32>
    %53 = vector.shape_cast %50 : vector<1x384xf32> to vector<1x1x1x384xf32>
    %54 = vector.broadcast %53 : vector<1x1x1x384xf32> to vector<1x7x8x384xf32>
    %55 = arith.mulf %52, %54 : vector<1x7x8x384xf32>
    %56 = arith.addf %49, %55 : vector<1x7x8x384xf32>
    %c8 = arith.constant 8 : index
    %c0_56 = arith.constant 0 : index
    %57 = vector.load %arg2[%c8, %c0_56] : memref<25x384xf32, #tpu.memory_space<vmem>>, vector<1x384xf32>
    %c0_57 = arith.constant 0 : index
    %c0_58 = arith.constant 0 : index
    %c1_59 = arith.constant 1 : index
    %c3_60 = arith.constant 3 : index
    %c0_61 = arith.constant 0 : index
    %c0_62 = arith.constant 0 : index
    %58 = vector.load %arg1[%c0_57, %c0_58, %c1_59, %c3_60, %c0_61, %c0_62] : memref<1x9x2x5x8x384xf32, #tpu.memory_space<vmem>>, vector<1x7x1x1x8x384xf32>
    %59 = vector.shape_cast %58 : vector<1x7x1x1x8x384xf32> to vector<1x7x8x384xf32>
    %60 = vector.shape_cast %57 : vector<1x384xf32> to vector<1x1x1x384xf32>
    %61 = vector.broadcast %60 : vector<1x1x1x384xf32> to vector<1x7x8x384xf32>
    %62 = arith.mulf %59, %61 : vector<1x7x8x384xf32>
    %63 = arith.addf %56, %62 : vector<1x7x8x384xf32>
    %c9 = arith.constant 9 : index
    %c0_63 = arith.constant 0 : index
    %64 = vector.load %arg2[%c9, %c0_63] : memref<25x384xf32, #tpu.memory_space<vmem>>, vector<1x384xf32>
    %c0_64 = arith.constant 0 : index
    %c0_65 = arith.constant 0 : index
    %c1_66 = arith.constant 1 : index
    %c4_67 = arith.constant 4 : index
    %c0_68 = arith.constant 0 : index
    %c0_69 = arith.constant 0 : index
    %65 = vector.load %arg1[%c0_64, %c0_65, %c1_66, %c4_67, %c0_68, %c0_69] : memref<1x9x2x5x8x384xf32, #tpu.memory_space<vmem>>, vector<1x7x1x1x8x384xf32>
    %66 = vector.shape_cast %65 : vector<1x7x1x1x8x384xf32> to vector<1x7x8x384xf32>
    %67 = vector.shape_cast %64 : vector<1x384xf32> to vector<1x1x1x384xf32>
    %68 = vector.broadcast %67 : vector<1x1x1x384xf32> to vector<1x7x8x384xf32>
    %69 = arith.mulf %66, %68 : vector<1x7x8x384xf32>
    %70 = arith.addf %63, %69 : vector<1x7x8x384xf32>
    %c10 = arith.constant 10 : index
    %c0_70 = arith.constant 0 : index
    %71 = vector.load %arg2[%c10, %c0_70] : memref<25x384xf32, #tpu.memory_space<vmem>>, vector<1x384xf32>
    %c0_71 = arith.constant 0 : index
    %c1_72 = arith.constant 1 : index
    %c0_73 = arith.constant 0 : index
    %c0_74 = arith.constant 0 : index
    %c0_75 = arith.constant 0 : index
    %c0_76 = arith.constant 0 : index
    %72 = vector.load %arg1[%c0_71, %c1_72, %c0_73, %c0_74, %c0_75, %c0_76] : memref<1x9x2x5x8x384xf32, #tpu.memory_space<vmem>>, vector<1x7x1x1x8x384xf32>
    %73 = vector.shape_cast %72 : vector<1x7x1x1x8x384xf32> to vector<1x7x8x384xf32>
    %74 = vector.shape_cast %71 : vector<1x384xf32> to vector<1x1x1x384xf32>
    %75 = vector.broadcast %74 : vector<1x1x1x384xf32> to vector<1x7x8x384xf32>
    %76 = arith.mulf %73, %75 : vector<1x7x8x384xf32>
    %77 = arith.addf %70, %76 : vector<1x7x8x384xf32>
    %c11 = arith.constant 11 : index
    %c0_77 = arith.constant 0 : index
    %78 = vector.load %arg2[%c11, %c0_77] : memref<25x384xf32, #tpu.memory_space<vmem>>, vector<1x384xf32>
    %c0_78 = arith.constant 0 : index
    %c1_79 = arith.constant 1 : index
    %c0_80 = arith.constant 0 : index
    %c1_81 = arith.constant 1 : index
    %c0_82 = arith.constant 0 : index
    %c0_83 = arith.constant 0 : index
    %79 = vector.load %arg1[%c0_78, %c1_79, %c0_80, %c1_81, %c0_82, %c0_83] : memref<1x9x2x5x8x384xf32, #tpu.memory_space<vmem>>, vector<1x7x1x1x8x384xf32>
    %80 = vector.shape_cast %79 : vector<1x7x1x1x8x384xf32> to vector<1x7x8x384xf32>
    %81 = vector.shape_cast %78 : vector<1x384xf32> to vector<1x1x1x384xf32>
    %82 = vector.broadcast %81 : vector<1x1x1x384xf32> to vector<1x7x8x384xf32>
    %83 = arith.mulf %80, %82 : vector<1x7x8x384xf32>
    %84 = arith.addf %77, %83 : vector<1x7x8x384xf32>
    %c12 = arith.constant 12 : index
    %c0_84 = arith.constant 0 : index
    %85 = vector.load %arg2[%c12, %c0_84] : memref<25x384xf32, #tpu.memory_space<vmem>>, vector<1x384xf32>
    %c0_85 = arith.constant 0 : index
    %c1_86 = arith.constant 1 : index
    %c0_87 = arith.constant 0 : index
    %c2_88 = arith.constant 2 : index
    %c0_89 = arith.constant 0 : index
    %c0_90 = arith.constant 0 : index
    %86 = vector.load %arg1[%c0_85, %c1_86, %c0_87, %c2_88, %c0_89, %c0_90] : memref<1x9x2x5x8x384xf32, #tpu.memory_space<vmem>>, vector<1x7x1x1x8x384xf32>
    %87 = vector.shape_cast %86 : vector<1x7x1x1x8x384xf32> to vector<1x7x8x384xf32>
    %88 = vector.shape_cast %85 : vector<1x384xf32> to vector<1x1x1x384xf32>
    %89 = vector.broadcast %88 : vector<1x1x1x384xf32> to vector<1x7x8x384xf32>
    %90 = arith.mulf %87, %89 : vector<1x7x8x384xf32>
    %91 = arith.addf %84, %90 : vector<1x7x8x384xf32>
    %c13 = arith.constant 13 : index
    %c0_91 = arith.constant 0 : index
    %92 = vector.load %arg2[%c13, %c0_91] : memref<25x384xf32, #tpu.memory_space<vmem>>, vector<1x384xf32>
    %c0_92 = arith.constant 0 : index
    %c1_93 = arith.constant 1 : index
    %c0_94 = arith.constant 0 : index
    %c3_95 = arith.constant 3 : index
    %c0_96 = arith.constant 0 : index
    %c0_97 = arith.constant 0 : index
    %93 = vector.load %arg1[%c0_92, %c1_93, %c0_94, %c3_95, %c0_96, %c0_97] : memref<1x9x2x5x8x384xf32, #tpu.memory_space<vmem>>, vector<1x7x1x1x8x384xf32>
    %94 = vector.shape_cast %93 : vector<1x7x1x1x8x384xf32> to vector<1x7x8x384xf32>
    %95 = vector.shape_cast %92 : vector<1x384xf32> to vector<1x1x1x384xf32>
    %96 = vector.broadcast %95 : vector<1x1x1x384xf32> to vector<1x7x8x384xf32>
    %97 = arith.mulf %94, %96 : vector<1x7x8x384xf32>
    %98 = arith.addf %91, %97 : vector<1x7x8x384xf32>
    %c14 = arith.constant 14 : index
    %c0_98 = arith.constant 0 : index
    %99 = vector.load %arg2[%c14, %c0_98] : memref<25x384xf32, #tpu.memory_space<vmem>>, vector<1x384xf32>
    %c0_99 = arith.constant 0 : index
    %c1_100 = arith.constant 1 : index
    %c0_101 = arith.constant 0 : index
    %c4_102 = arith.constant 4 : index
    %c0_103 = arith.constant 0 : index
    %c0_104 = arith.constant 0 : index
    %100 = vector.load %arg1[%c0_99, %c1_100, %c0_101, %c4_102, %c0_103, %c0_104] : memref<1x9x2x5x8x384xf32, #tpu.memory_space<vmem>>, vector<1x7x1x1x8x384xf32>
    %101 = vector.shape_cast %100 : vector<1x7x1x1x8x384xf32> to vector<1x7x8x384xf32>
    %102 = vector.shape_cast %99 : vector<1x384xf32> to vector<1x1x1x384xf32>
    %103 = vector.broadcast %102 : vector<1x1x1x384xf32> to vector<1x7x8x384xf32>
    %104 = arith.mulf %101, %103 : vector<1x7x8x384xf32>
    %105 = arith.addf %98, %104 : vector<1x7x8x384xf32>
    %c15 = arith.constant 15 : index
    %c0_105 = arith.constant 0 : index
    %106 = vector.load %arg2[%c15, %c0_105] : memref<25x384xf32, #tpu.memory_space<vmem>>, vector<1x384xf32>
    %c0_106 = arith.constant 0 : index
    %c1_107 = arith.constant 1 : index
    %c1_108 = arith.constant 1 : index
    %c0_109 = arith.constant 0 : index
    %c0_110 = arith.constant 0 : index
    %c0_111 = arith.constant 0 : index
    %107 = vector.load %arg1[%c0_106, %c1_107, %c1_108, %c0_109, %c0_110, %c0_111] : memref<1x9x2x5x8x384xf32, #tpu.memory_space<vmem>>, vector<1x7x1x1x8x384xf32>
    %108 = vector.shape_cast %107 : vector<1x7x1x1x8x384xf32> to vector<1x7x8x384xf32>
    %109 = vector.shape_cast %106 : vector<1x384xf32> to vector<1x1x1x384xf32>
    %110 = vector.broadcast %109 : vector<1x1x1x384xf32> to vector<1x7x8x384xf32>
    %111 = arith.mulf %108, %110 : vector<1x7x8x384xf32>
    %112 = arith.addf %105, %111 : vector<1x7x8x384xf32>
    %c16 = arith.constant 16 : index
    %c0_112 = arith.constant 0 : index
    %113 = vector.load %arg2[%c16, %c0_112] : memref<25x384xf32, #tpu.memory_space<vmem>>, vector<1x384xf32>
    %c0_113 = arith.constant 0 : index
    %c1_114 = arith.constant 1 : index
    %c1_115 = arith.constant 1 : index
    %c1_116 = arith.constant 1 : index
    %c0_117 = arith.constant 0 : index
    %c0_118 = arith.constant 0 : index
    %114 = vector.load %arg1[%c0_113, %c1_114, %c1_115, %c1_116, %c0_117, %c0_118] : memref<1x9x2x5x8x384xf32, #tpu.memory_space<vmem>>, vector<1x7x1x1x8x384xf32>
    %115 = vector.shape_cast %114 : vector<1x7x1x1x8x384xf32> to vector<1x7x8x384xf32>
    %116 = vector.shape_cast %113 : vector<1x384xf32> to vector<1x1x1x384xf32>
    %117 = vector.broadcast %116 : vector<1x1x1x384xf32> to vector<1x7x8x384xf32>
    %118 = arith.mulf %115, %117 : vector<1x7x8x384xf32>
    %119 = arith.addf %112, %118 : vector<1x7x8x384xf32>
    %c17 = arith.constant 17 : index
    %c0_119 = arith.constant 0 : index
    %120 = vector.load %arg2[%c17, %c0_119] : memref<25x384xf32, #tpu.memory_space<vmem>>, vector<1x384xf32>
    %c0_120 = arith.constant 0 : index
    %c1_121 = arith.constant 1 : index
    %c1_122 = arith.constant 1 : index
    %c2_123 = arith.constant 2 : index
    %c0_124 = arith.constant 0 : index
    %c0_125 = arith.constant 0 : index
    %121 = vector.load %arg1[%c0_120, %c1_121, %c1_122, %c2_123, %c0_124, %c0_125] : memref<1x9x2x5x8x384xf32, #tpu.memory_space<vmem>>, vector<1x7x1x1x8x384xf32>
    %122 = vector.shape_cast %121 : vector<1x7x1x1x8x384xf32> to vector<1x7x8x384xf32>
    %123 = vector.shape_cast %120 : vector<1x384xf32> to vector<1x1x1x384xf32>
    %124 = vector.broadcast %123 : vector<1x1x1x384xf32> to vector<1x7x8x384xf32>
    %125 = arith.mulf %122, %124 : vector<1x7x8x384xf32>
    %126 = arith.addf %119, %125 : vector<1x7x8x384xf32>
    %c18 = arith.constant 18 : index
    %c0_126 = arith.constant 0 : index
    %127 = vector.load %arg2[%c18, %c0_126] : memref<25x384xf32, #tpu.memory_space<vmem>>, vector<1x384xf32>
    %c0_127 = arith.constant 0 : index
    %c1_128 = arith.constant 1 : index
    %c1_129 = arith.constant 1 : index
    %c3_130 = arith.constant 3 : index
    %c0_131 = arith.constant 0 : index
    %c0_132 = arith.constant 0 : index
    %128 = vector.load %arg1[%c0_127, %c1_128, %c1_129, %c3_130, %c0_131, %c0_132] : memref<1x9x2x5x8x384xf32, #tpu.memory_space<vmem>>, vector<1x7x1x1x8x384xf32>
    %129 = vector.shape_cast %128 : vector<1x7x1x1x8x384xf32> to vector<1x7x8x384xf32>
    %130 = vector.shape_cast %127 : vector<1x384xf32> to vector<1x1x1x384xf32>
    %131 = vector.broadcast %130 : vector<1x1x1x384xf32> to vector<1x7x8x384xf32>
    %132 = arith.mulf %129, %131 : vector<1x7x8x384xf32>
    %133 = arith.addf %126, %132 : vector<1x7x8x384xf32>
    %c19 = arith.constant 19 : index
    %c0_133 = arith.constant 0 : index
    %134 = vector.load %arg2[%c19, %c0_133] : memref<25x384xf32, #tpu.memory_space<vmem>>, vector<1x384xf32>
    %c0_134 = arith.constant 0 : index
    %c1_135 = arith.constant 1 : index
    %c1_136 = arith.constant 1 : index
    %c4_137 = arith.constant 4 : index
    %c0_138 = arith.constant 0 : index
    %c0_139 = arith.constant 0 : index
    %135 = vector.load %arg1[%c0_134, %c1_135, %c1_136, %c4_137, %c0_138, %c0_139] : memref<1x9x2x5x8x384xf32, #tpu.memory_space<vmem>>, vector<1x7x1x1x8x384xf32>
    %136 = vector.shape_cast %135 : vector<1x7x1x1x8x384xf32> to vector<1x7x8x384xf32>
    %137 = vector.shape_cast %134 : vector<1x384xf32> to vector<1x1x1x384xf32>
    %138 = vector.broadcast %137 : vector<1x1x1x384xf32> to vector<1x7x8x384xf32>
    %139 = arith.mulf %136, %138 : vector<1x7x8x384xf32>
    %140 = arith.addf %133, %139 : vector<1x7x8x384xf32>
    %c20 = arith.constant 20 : index
    %c0_140 = arith.constant 0 : index
    %141 = vector.load %arg2[%c20, %c0_140] : memref<25x384xf32, #tpu.memory_space<vmem>>, vector<1x384xf32>
    %c0_141 = arith.constant 0 : index
    %c2_142 = arith.constant 2 : index
    %c0_143 = arith.constant 0 : index
    %c0_144 = arith.constant 0 : index
    %c0_145 = arith.constant 0 : index
    %c0_146 = arith.constant 0 : index
    %142 = vector.load %arg1[%c0_141, %c2_142, %c0_143, %c0_144, %c0_145, %c0_146] : memref<1x9x2x5x8x384xf32, #tpu.memory_space<vmem>>, vector<1x7x1x1x8x384xf32>
    %143 = vector.shape_cast %142 : vector<1x7x1x1x8x384xf32> to vector<1x7x8x384xf32>
    %144 = vector.shape_cast %141 : vector<1x384xf32> to vector<1x1x1x384xf32>
    %145 = vector.broadcast %144 : vector<1x1x1x384xf32> to vector<1x7x8x384xf32>
    %146 = arith.mulf %143, %145 : vector<1x7x8x384xf32>
    %147 = arith.addf %140, %146 : vector<1x7x8x384xf32>
    %c21 = arith.constant 21 : index
    %c0_147 = arith.constant 0 : index
    %148 = vector.load %arg2[%c21, %c0_147] : memref<25x384xf32, #tpu.memory_space<vmem>>, vector<1x384xf32>
    %c0_148 = arith.constant 0 : index
    %c2_149 = arith.constant 2 : index
    %c0_150 = arith.constant 0 : index
    %c1_151 = arith.constant 1 : index
    %c0_152 = arith.constant 0 : index
    %c0_153 = arith.constant 0 : index
    %149 = vector.load %arg1[%c0_148, %c2_149, %c0_150, %c1_151, %c0_152, %c0_153] : memref<1x9x2x5x8x384xf32, #tpu.memory_space<vmem>>, vector<1x7x1x1x8x384xf32>
    %150 = vector.shape_cast %149 : vector<1x7x1x1x8x384xf32> to vector<1x7x8x384xf32>
    %151 = vector.shape_cast %148 : vector<1x384xf32> to vector<1x1x1x384xf32>
    %152 = vector.broadcast %151 : vector<1x1x1x384xf32> to vector<1x7x8x384xf32>
    %153 = arith.mulf %150, %152 : vector<1x7x8x384xf32>
    %154 = arith.addf %147, %153 : vector<1x7x8x384xf32>
    %c22 = arith.constant 22 : index
    %c0_154 = arith.constant 0 : index
    %155 = vector.load %arg2[%c22, %c0_154] : memref<25x384xf32, #tpu.memory_space<vmem>>, vector<1x384xf32>
    %c0_155 = arith.constant 0 : index
    %c2_156 = arith.constant 2 : index
    %c0_157 = arith.constant 0 : index
    %c2_158 = arith.constant 2 : index
    %c0_159 = arith.constant 0 : index
    %c0_160 = arith.constant 0 : index
    %156 = vector.load %arg1[%c0_155, %c2_156, %c0_157, %c2_158, %c0_159, %c0_160] : memref<1x9x2x5x8x384xf32, #tpu.memory_space<vmem>>, vector<1x7x1x1x8x384xf32>
    %157 = vector.shape_cast %156 : vector<1x7x1x1x8x384xf32> to vector<1x7x8x384xf32>
    %158 = vector.shape_cast %155 : vector<1x384xf32> to vector<1x1x1x384xf32>
    %159 = vector.broadcast %158 : vector<1x1x1x384xf32> to vector<1x7x8x384xf32>
    %160 = arith.mulf %157, %159 : vector<1x7x8x384xf32>
    %161 = arith.addf %154, %160 : vector<1x7x8x384xf32>
    %c23 = arith.constant 23 : index
    %c0_161 = arith.constant 0 : index
    %162 = vector.load %arg2[%c23, %c0_161] : memref<25x384xf32, #tpu.memory_space<vmem>>, vector<1x384xf32>
    %c0_162 = arith.constant 0 : index
    %c2_163 = arith.constant 2 : index
    %c0_164 = arith.constant 0 : index
    %c3_165 = arith.constant 3 : index
    %c0_166 = arith.constant 0 : index
    %c0_167 = arith.constant 0 : index
    %163 = vector.load %arg1[%c0_162, %c2_163, %c0_164, %c3_165, %c0_166, %c0_167] : memref<1x9x2x5x8x384xf32, #tpu.memory_space<vmem>>, vector<1x7x1x1x8x384xf32>
    %164 = vector.shape_cast %163 : vector<1x7x1x1x8x384xf32> to vector<1x7x8x384xf32>
    %165 = vector.shape_cast %162 : vector<1x384xf32> to vector<1x1x1x384xf32>
    %166 = vector.broadcast %165 : vector<1x1x1x384xf32> to vector<1x7x8x384xf32>
    %167 = arith.mulf %164, %166 : vector<1x7x8x384xf32>
    %168 = arith.addf %161, %167 : vector<1x7x8x384xf32>
    %c24 = arith.constant 24 : index
    %c0_168 = arith.constant 0 : index
    %169 = vector.load %arg2[%c24, %c0_168] : memref<25x384xf32, #tpu.memory_space<vmem>>, vector<1x384xf32>
    %c0_169 = arith.constant 0 : index
    %c2_170 = arith.constant 2 : index
    %c0_171 = arith.constant 0 : index
    %c4_172 = arith.constant 4 : index
    %c0_173 = arith.constant 0 : index
    %c0_174 = arith.constant 0 : index
    %170 = vector.load %arg1[%c0_169, %c2_170, %c0_171, %c4_172, %c0_173, %c0_174] : memref<1x9x2x5x8x384xf32, #tpu.memory_space<vmem>>, vector<1x7x1x1x8x384xf32>
    %171 = vector.shape_cast %170 : vector<1x7x1x1x8x384xf32> to vector<1x7x8x384xf32>
    %172 = vector.shape_cast %169 : vector<1x384xf32> to vector<1x1x1x384xf32>
    %173 = vector.broadcast %172 : vector<1x1x1x384xf32> to vector<1x7x8x384xf32>
    %174 = arith.mulf %171, %173 : vector<1x7x8x384xf32>
    %175 = arith.addf %168, %174 : vector<1x7x8x384xf32>
    %176 = vector.extract_strided_slice %175 {offsets = [0, 0, 0, 0], sizes = [1, 7, 7, 384], strides = [1, 1, 1, 1]} : vector<1x7x8x384xf32> to vector<1x7x7x384xf32>
    %cst_175 = arith.constant 1.000000e+00 : f32
    %cst_176 = arith.constant 4.900000e+01 : f32
    %177 = arith.divf %cst_175, %cst_176 : f32
    %cst_177 = arith.constant dense<0.000000e+00> : vector<7x384xf32>
    %178 = vector.multi_reduction <add>, %176, %cst_177 [0, 1] : vector<1x7x7x384xf32> to vector<7x384xf32>
    %cst_178 = arith.constant dense<0.000000e+00> : vector<384xf32>
    %179 = vector.multi_reduction <add>, %178, %cst_178 [0] : vector<7x384xf32> to vector<384xf32>
    %180 = vector.shape_cast %179 : vector<384xf32> to vector<1x384xf32>
    %181 = vector.broadcast %177 : f32 to vector<1x384xf32>
    %182 = arith.mulf %180, %181 : vector<1x384xf32>
    %183 = arith.mulf %176, %176 : vector<1x7x7x384xf32>
    %cst_179 = arith.constant dense<0.000000e+00> : vector<7x384xf32>
    %184 = vector.multi_reduction <add>, %183, %cst_179 [0, 1] : vector<1x7x7x384xf32> to vector<7x384xf32>
    %cst_180 = arith.constant dense<0.000000e+00> : vector<384xf32>
    %185 = vector.multi_reduction <add>, %184, %cst_180 [0] : vector<7x384xf32> to vector<384xf32>
    %186 = vector.shape_cast %185 : vector<384xf32> to vector<1x384xf32>
    %187 = vector.broadcast %177 : f32 to vector<1x384xf32>
    %188 = arith.mulf %186, %187 : vector<1x384xf32>
    %189 = arith.mulf %182, %182 : vector<1x384xf32>
    %190 = arith.subf %188, %189 : vector<1x384xf32>
    %cst_181 = arith.constant 0.000000e+00 : f32
    %191 = vector.broadcast %cst_181 : f32 to vector<1x384xf32>
    %192 = arith.maximumf %190, %191 : vector<1x384xf32>
    %c0_182 = arith.constant 0 : index
    %c0_183 = arith.constant 0 : index
    %193 = vector.load %arg3[%c0_182, %c0_183] : memref<2x384xf32, #tpu.memory_space<vmem>>, vector<1x384xf32>
    %c1_184 = arith.constant 1 : index
    %c0_185 = arith.constant 0 : index
    %194 = vector.load %arg3[%c1_184, %c0_185] : memref<2x384xf32, #tpu.memory_space<vmem>>, vector<1x384xf32>
    %cst_186 = arith.constant 9.99999974E-6 : f32
    %195 = vector.broadcast %cst_186 : f32 to vector<1x384xf32>
    %196 = arith.addf %192, %195 : vector<1x384xf32>
    %197 = math.rsqrt %196 : vector<1x384xf32>
    %198 = arith.mulf %197, %193 : vector<1x384xf32>
    %199 = arith.mulf %182, %198 : vector<1x384xf32>
    %200 = arith.subf %194, %199 : vector<1x384xf32>
    %201 = vector.shape_cast %198 : vector<1x384xf32> to vector<1x1x1x384xf32>
    %202 = vector.broadcast %201 : vector<1x1x1x384xf32> to vector<1x7x7x384xf32>
    %203 = arith.mulf %176, %202 : vector<1x7x7x384xf32>
    %204 = vector.shape_cast %200 : vector<1x384xf32> to vector<1x1x1x384xf32>
    %205 = vector.broadcast %204 : vector<1x1x1x384xf32> to vector<1x7x7x384xf32>
    %206 = arith.addf %203, %205 : vector<1x7x7x384xf32>
    %c0_187 = arith.constant 0 : index
    %c0_188 = arith.constant 0 : index
    %c0_189 = arith.constant 0 : index
    %c0_190 = arith.constant 0 : index
    %207 = vector.load %arg4[%c0_187, %c0_188, %c0_189, %c0_190] : memref<1x7x7x384xf32, #tpu.memory_space<vmem>>, vector<1x7x7x384xf32>
    tpu.vector_store %arg4[%c0_187, %c0_188, %c0_189, %c0_190], %206 {strides = array<i32>} : memref<1x7x7x384xf32, #tpu.memory_space<vmem>>, vector<1x7x7x384xf32>,
    return
  }
  func.func @transform_0(%arg0: i32) -> (i32, i32, i32, i32, i32, i32) {
    %c0_i32 = arith.constant 0 : i32
    %c0_i32_0 = arith.constant 0 : i32
    %c0_i32_1 = arith.constant 0 : i32
    %c0_i32_2 = arith.constant 0 : i32
    %c0_i32_3 = arith.constant 0 : i32
    %c0_i32_4 = arith.constant 0 : i32
    return %c0_i32, %c0_i32_0, %c0_i32_1, %c0_i32_2, %c0_i32_3, %arg0 : i32, i32, i32, i32, i32, i32
  }
  func.func @transform_1(%arg0: i32) -> (i32, i32) {
    %c0_i32 = arith.constant 0 : i32
    %c0_i32_0 = arith.constant 0 : i32
    return %c0_i32, %arg0 : i32, i32
  }
  func.func @transform_2(%arg0: i32) -> (i32, i32) {
    %c0_i32 = arith.constant 0 : i32
    %c0_i32_0 = arith.constant 0 : i32
    return %c0_i32, %arg0 : i32, i32
  }
  func.func @transform_3(%arg0: i32) -> (i32, i32, i32, i32) {
    %c0_i32 = arith.constant 0 : i32
    %c0_i32_0 = arith.constant 0 : i32
    %c0_i32_1 = arith.constant 0 : i32
    %c0_i32_2 = arith.constant 0 : i32
    return %c0_i32, %c0_i32_0, %c0_i32_1, %arg0 : i32, i32, i32, i32
  }
}

</mosaic_0001>

<llo_original>
// kernel: dwconv_bn.1
$region0: #{dwconv_bn.1}
  #allocation0 [shape = 'u32[]', space=smem, size = 0x4, offset = 0x4, fixed_abs, tag = 'smem constant byte address 0x4 - core index']
  #allocation1 [shape = 'u32[144,128]{1,0:T(1,128)}', space=vmem, size = 0x12000, scoped, tag = 'internal scratch']
  %s0 = inlined_call_operand.vmem [shape: f32[1,9,2,5,8,768], index: 0, kind: input, shape index: {}]
  %s1 = inlined_call_operand.vmem [shape: f32[25,768], index: 1, kind: input, shape index: {}]
  %s2 = inlined_call_operand.vmem [shape: f32[2,768], index: 2, kind: input, shape index: {}]
  %s3 = inlined_call_operand.vmem [shape: f32[1,7,7,768], index: 3, kind: output, shape index: {}]
  %s4 = sld [smem:[#allocation0]]
  $region110: #{dwconv_bn.1} parent=0
    _
  %s6 = ssub.s32 1, %s4
  %s7 = scalar_select 0, %s6, %s4
  $region1: #{dwconv_bn.1} parent=0
    #allocation2 [shape = 'u8[2211840]{0}', space=vmem, size = 0x21c000, scoped, tag = 'input window, operand 0']
    #allocation3 [shape = 'u8[98304]{0}', space=vmem, size = 0x18000, scoped, tag = 'input window, operand 1']
    #allocation4 [shape = 'u8[172032]{0}', space=vmem, size = 0x2a000, scoped, tag = 'output window, operand 0']
    loop: start=0, step=1, limit=4
    $region2: #{dwconv_bn.1} parent=1 // loop_pre_header
      _
    $region3: #{dwconv_bn.1} parent=1 // loop_header
      %s9 = sphi 0, %s13
      %p10 = scmp.ge.s32.totalorder %s9, 4
      %s19 = sphi 0, %s21
      %s22 = sphi 0, %s19
      %s23 = sphi 0, %s22
      %s39 = sphi 0, %s23
      %s45 = sphi 0, %s47
      %s48 = sphi 0, %s45
      %s49 = sphi 0, %s48
      %s65 = sphi 0, %s49
      %s71 = sphi 0, %s73
      %s74 = sphi 0, %s71
      %s75 = sphi 0, %s74
      %s91 = sphi 0, %s75
      %s97 = sphi 0, %s99
      %s100 = sphi 0, %s97
      %s101 = sphi 0, %s100
      %s117 = sphi 0, %s101
    $region4: #{dwconv_bn.1} parent=1 // loop_header_branch
      %12 = sbr.rel (%p10) target = $region8
    $region5: #{dwconv_bn.1} parent=1 // loop_body
      %s14 = ssub.s32 %s9, 1
      %s15 = ssub.s32 %s9, 2
      %s16 = sadd.s32 %s9, 1
      %s17 = ssub.s32 %s9, %s16
      %p18 = scmp.eq.s32.totalorder %s17, 0
      %s20 = sadd.s32 %s19, 1
      %s21 = scalar_select %p18, %s19, %s20
      %p24 = pneg %p18
      %p25 = scmp.eq.s32.totalorder %s9, 1
      %p26 = por %p24, %p25
      %p27 = scmp.ne.s32.totalorder %s19, %s22
      %p28 = scmp.eq.s32.totalorder %s9, 0
      %p29 = por %p27, %p28
      %p30 = scmp.ne.s32.totalorder %s19, %s22
      %p31 = scmp.eq.s32.totalorder %s14, 1
      %p32 = por %p30, %p31
      %p33 = scmp.ne.s32.totalorder %s22, %s23
      %p34 = scmp.eq.s32.totalorder %s14, 0
      %p35 = por %p33, %p34
      %p36 = scmp.ne.s32.totalorder %s22, %s23
      %p37 = scmp.eq.s32.totalorder %s15, 1
      %p38 = por %p36, %p37
      %p40 = scmp.ne.s32.totalorder %s23, %s39
      %p41 = scmp.eq.s32.totalorder %s15, 0
      %p42 = por %p40, %p41
      %s43 = ssub.s32 %s9, %s16
      %p44 = scmp.eq.s32.totalorder %s43, 0
      %s46 = sadd.s32 %s45, 1
      %s47 = scalar_select %p44, %s45, %s46
      %p50 = pneg %p44
      %p51 = scmp.eq.s32.totalorder %s9, 1
      %p52 = por %p50, %p51
      %p53 = scmp.ne.s32.totalorder %s45, %s48
      %p54 = scmp.eq.s32.totalorder %s9, 0
      %p55 = por %p53, %p54
      %p56 = scmp.ne.s32.totalorder %s45, %s48
      %p57 = scmp.eq.s32.totalorder %s14, 1
      %p58 = por %p56, %p57
      %p59 = scmp.ne.s32.totalorder %s48, %s49
      %p60 = scmp.eq.s32.totalorder %s14, 0
      %p61 = por %p59, %p60
      %p62 = scmp.ne.s32.totalorder %s48, %s49
      %p63 = scmp.eq.s32.totalorder %s15, 1
      %p64 = por %p62, %p63
      %p66 = scmp.ne.s32.totalorder %s49, %s65
      %p67 = scmp.eq.s32.totalorder %s15, 0
      %p68 = por %p66, %p67
      %s69 = ssub.s32 %s9, %s16
      %p70 = scmp.eq.s32.totalorder %s69, 0
      %s72 = sadd.s32 %s71, 1
      %s73 = scalar_select %p70, %s71, %s72
      %p76 = pneg %p70
      %p77 = scmp.eq.s32.totalorder %s9, 1
      %p78 = por %p76, %p77
      %p79 = scmp.ne.s32.totalorder %s71, %s74
      %p80 = scmp.eq.s32.totalorder %s9, 0
      %p81 = por %p79, %p80
      %p82 = scmp.ne.s32.totalorder %s71, %s74
      %p83 = scmp.eq.s32.totalorder %s14, 1
      %p84 = por %p82, %p83
      %p85 = scmp.ne.s32.totalorder %s74, %s75
      %p86 = scmp.eq.s32.totalorder %s14, 0
      %p87 = por %p85, %p86
      %p88 = scmp.ne.s32.totalorder %s74, %s75
      %p89 = scmp.eq.s32.totalorder %s15, 1
      %p90 = por %p88, %p89
      %p92 = scmp.ne.s32.totalorder %s75, %s91
      %p93 = scmp.eq.s32.totalorder %s15, 0
      %p94 = por %p92, %p93
      %s95 = ssub.s32 %s9, %s16
      %p96 = scmp.eq.s32.totalorder %s95, 0
      %s98 = sadd.s32 %s97, 1
      %s99 = scalar_select %p96, %s97, %s98
      %p102 = pneg %p96
      %p103 = scmp.eq.s32.totalorder %s9, 1
      %p104 = por %p102, %p103
      %p105 = scmp.ne.s32.totalorder %s97, %s100
      %p106 = scmp.eq.s32.totalorder %s9, 0
      %p107 = por %p105, %p106
      %p108 = scmp.ne.s32.totalorder %s97, %s100
      %p109 = scmp.eq.s32.totalorder %s14, 1
      %p110 = por %p108, %p109
      %p111 = scmp.ne.s32.totalorder %s100, %s101
      %p112 = scmp.eq.s32.totalorder %s14, 0
      %p113 = por %p111, %p112
      %p114 = scmp.ne.s32.totalorder %s100, %s101
      %p115 = scmp.eq.s32.totalorder %s15, 1
      %p116 = por %p114, %p115
      %p118 = scmp.ne.s32.totalorder %s101, %s117
      %p119 = scmp.eq.s32.totalorder %s15, 0
      %p120 = por %p118, %p119
      %p121 = scmp.le.s32.totalorder 1, %s9
      %p122 = scmp.lt.s32.totalorder %s9, 3
      %p123 = pnand %p121, %p122
      %p124 = pneg %p123
      // Predicated region
      $region9: #{dwconv_bn.1} parent=5 // pred_check
        _
      $region10: #{dwconv_bn.1} parent=5 // pred_check_branch
        %126 = sbr.rel (%p123) target = $region12
      $region11: #{dwconv_bn.1} parent=5 // pred_region
        %s127 = ssub.s32 %s9, 1
      $region12: #{dwconv_bn.1} parent=5 // pred_fallthru
        _
      %p128 = scmp.lt.s32.totalorder %s9, 2
      // Predicated region
      $region13: #{dwconv_bn.1} parent=5 // pred_check
        %p129 = pneg %p128
      $region14: #{dwconv_bn.1} parent=5 // pred_check_branch
        %131 = sbr.rel (%p129) target = $region16
      $region15: #{dwconv_bn.1} parent=5 // pred_region
        // Predicated region
        $region17: #{dwconv_bn.1} parent=15 // pred_check
          %p132 = pneg %p29
        $region18: #{dwconv_bn.1} parent=15 // pred_check_branch
          %134 = sbr.rel (%p132) target = $region20
        $region19: #{dwconv_bn.1} parent=15 // pred_region
          %s135 = sand.u32 %s19, 1
          %s136 = sand.u32 %s19, 1
          %s137 = smul.addr %s136, 2160
          %s138 = scalar_lea.vmem [#allocation2], %s137
          %s139 = smul.u32 3, %s9
          %s140 = smul.addr %s139, 8
          %s141 = scalar_lea.vmem %s0, %s140
          // Predicated region
          $region21: #{dwconv_bn.1} parent=19 // pred_check
            _
          $region22: #{dwconv_bn.1} parent=19 // pred_check_branch
            %143 = sbr.rel (0) target = $region24
          $region23: #{dwconv_bn.1} parent=19 // pred_region
            // Predicated region
            $region25: #{dwconv_bn.1} parent=23 // pred_check
              _
            $region26: #{dwconv_bn.1} parent=23 // pred_check_branch
              %145 = sbr.rel (0) target = $region28
            $region27: #{dwconv_bn.1} parent=23 // pred_region
              loop: start=0, step=1, limit=1
              $region29: #{dwconv_bn.1} parent=27 // loop_pre_header
                _
              $region30: #{dwconv_bn.1} parent=27 // loop_header
                %s147 = sphi 0, %s151
                %p148 = scmp.ge.s32.totalorder %s147, 1
                %s152 = sphi %s141, %s141
                %s153 = sphi %s138, %s138
              $region31: #{dwconv_bn.1} parent=27 // loop_header_branch
                %150 = sbr.rel (%p148) target = $region35
              $region32: #{dwconv_bn.1} parent=27 // loop_body
                %v154 = vld [vmem:[%s152] sm:$0xff]
                %155 = vst [vmem:[%s153] sm:$0xff] %v154
                %v156 = vld [vmem:[%s152 + $0x8] sm:$0xff]
                %157 = vst [vmem:[%s153 + $0x8] sm:$0xff] %v156
                %v158 = vld [vmem:[%s152 + $0x10] sm:$0xff]
                %159 = vst [vmem:[%s153 + $0x10] sm:$0xff] %v158
                %v160 = vld [vmem:[%s152 + $0x30] sm:$0xff]
                %161 = vst [vmem:[%s153 + $0x18] sm:$0xff] %v160
                %v162 = vld [vmem:[%s152 + $0x38] sm:$0xff]
                %163 = vst [vmem:[%s153 + $0x20] sm:$0xff] %v162
                %v164 = vld [vmem:[%s152 + $0x40] sm:$0xff]
                %165 = vst [vmem:[%s153 + $0x28] sm:$0xff] %v164
                %v166 = vld [vmem:[%s152 + $0x60] sm:$0xff]
                %167 = vst [vmem:[%s153 + $0x30] sm:$0xff] %v166
                %v168 = vld [vmem:[%s152 + $0x68] sm:$0xff]
                %169 = vst [vmem:[%s153 + $0x38] sm:$0xff] %v168
                %v170 = vld [vmem:[%s152 + $0x70] sm:$0xff]
                %171 = vst [vmem:[%s153 + $0x40] sm:$0xff] %v170
                %v172 = vld [vmem:[%s152 + $0x90] sm:$0xff]
                %173 = vst [vmem:[%s153 + $0x48] sm:$0xff] %v172
                %v174 = vld [vmem:[%s152 + $0x98] sm:$0xff]
                %175 = vst [vmem:[%s153 + $0x50] sm:$0xff] %v174
                %v176 = vld [vmem:[%s152 + $0xa0] sm:$0xff]
                %177 = vst [vmem:[%s153 + $0x58] sm:$0xff] %v176
                %v178 = vld [vmem:[%s152 + $0xc0] sm:$0xff]
                %179 = vst [vmem:[%s153 + $0x60] sm:$0xff] %v178
                %v180 = vld [vmem:[%s152 + $0xc8] sm:$0xff]
                %181 = vst [vmem:[%s153 + $0x68] sm:$0xff] %v180
                %v182 = vld [vmem:[%s152 + $0xd0] sm:$0xff]
                %183 = vst [vmem:[%s153 + $0x70] sm:$0xff] %v182
                %v184 = vld [vmem:[%s152 + $0xf0] sm:$0xff]
                %185 = vst [vmem:[%s153 + $0x78] sm:$0xff] %v184
                %v186 = vld [vmem:[%s152 + $0xf8] sm:$0xff]
                %187 = vst [vmem:[%s153 + $0x80] sm:$0xff] %v186
                %v188 = vld [vmem:[%s152 + $0x100] sm:$0xff]
                %189 = vst [vmem:[%s153 + $0x88] sm:$0xff] %v188
                %v190 = vld [vmem:[%s152 + $0x120] sm:$0xff]
                %191 = vst [vmem:[%s153 + $0x90] sm:$0xff] %v190
                %v192 = vld [vmem:[%s152 + $0x128] sm:$0xff]
                %193 = vst [vmem:[%s153 + $0x98] sm:$0xff] %v192
                %v194 = vld [vmem:[%s152 + $0x130] sm:$0xff]
                %195 = vst [vmem:[%s153 + $0xa0] sm:$0xff] %v194
                %v196 = vld [vmem:[%s152 + $0x150] sm:$0xff]
                %197 = vst [vmem:[%s153 + $0xa8] sm:$0xff] %v196
                %v198 = vld [vmem:[%s152 + $0x158] sm:$0xff]
                %199 = vst [vmem:[%s153 + $0xb0] sm:$0xff] %v198
                %v200 = vld [vmem:[%s152 + $0x160] sm:$0xff]
                %201 = vst [vmem:[%s153 + $0xb8] sm:$0xff] %v200
                %v202 = vld [vmem:[%s152 + $0x180] sm:$0xff]
                %203 = vst [vmem:[%s153 + $0xc0] sm:$0xff] %v202
                %v204 = vld [vmem:[%s152 + $0x188] sm:$0xff]
                %205 = vst [vmem:[%s153 + $0xc8] sm:$0xff] %v204
                %v206 = vld [vmem:[%s152 + $0x190] sm:$0xff]
                %207 = vst [vmem:[%s153 + $0xd0] sm:$0xff] %v206
                %v208 = vld [vmem:[%s152 + $0x1b0] sm:$0xff]
                %209 = vst [vmem:[%s153 + $0xd8] sm:$0xff] %v208
                %v210 = vld [vmem:[%s152 + $0x1b8] sm:$0xff]
                %211 = vst [vmem:[%s153 + $0xe0] sm:$0xff] %v210
                %v212 = vld [vmem:[%s152 + $0x1c0] sm:$0xff]
                %213 = vst [vmem:[%s153 + $0xe8] sm:$0xff] %v212
                %v214 = vld [vmem:[%s152 + $0x1e0] sm:$0xff]
                %215 = vst [vmem:[%s153 + $0xf0] sm:$0xff] %v214
                %v216 = vld [vmem:[%s152 + $0x1e8] sm:$0xff]
                %217 = vst [vmem:[%s153 + $0xf8] sm:$0xff] %v216
                %v218 = vld [vmem:[%s152 + $0x1f0] sm:$0xff]
                %219 = vst [vmem:[%s153 + $0x100] sm:$0xff] %v218
                %v220 = vld [vmem:[%s152 + $0x210] sm:$0xff]
                %221 = vst [vmem:[%s153 + $0x108] sm:$0xff] %v220
                %v222 = vld [vmem:[%s152 + $0x218] sm:$0xff]
                %223 = vst [vmem:[%s153 + $0x110] sm:$0xff] %v222
                %v224 = vld [vmem:[%s152 + $0x220] sm:$0xff]
                %225 = vst [vmem:[%s153 + $0x118] sm:$0xff] %v224
                %v226 = vld [vmem:[%s152 + $0x240] sm:$0xff]
                %227 = vst [vmem:[%s153 + $0x120] sm:$0xff] %v226
                %v228 = vld [vmem:[%s152 + $0x248] sm:$0xff]
                %229 = vst [vmem:[%s153 + $0x128] sm:$0xff] %v228
                %v230 = vld [vmem:[%s152 + $0x250] sm:$0xff]
                %231 = vst [vmem:[%s153 + $0x130] sm:$0xff] %v230
                %v232 = vld [vmem:[%s152 + $0x270] sm:$0xff]
                %233 = vst [vmem:[%s153 + $0x138] sm:$0xff] %v232
                %v234 = vld [vmem:[%s152 + $0x278] sm:$0xff]
                %235 = vst [vmem:[%s153 + $0x140] sm:$0xff] %v234
                %v236 = vld [vmem:[%s152 + $0x280] sm:$0xff]
                %237 = vst [vmem:[%s153 + $0x148] sm:$0xff] %v236
                %v238 = vld [vmem:[%s152 + $0x2a0] sm:$0xff]
                %239 = vst [vmem:[%s153 + $0x150] sm:$0xff] %v238
                %v240 = vld [vmem:[%s152 + $0x2a8] sm:$0xff]
                %241 = vst [vmem:[%s153 + $0x158] sm:$0xff] %v240
                %v242 = vld [vmem:[%s152 + $0x2b0] sm:$0xff]
                %243 = vst [vmem:[%s153 + $0x160] sm:$0xff] %v242
                %v244 = vld [vmem:[%s152 + $0x2d0] sm:$0xff]
                %245 = vst [vmem:[%s153 + $0x168] sm:$0xff] %v244
                %v246 = vld [vmem:[%s152 + $0x2d8] sm:$0xff]
                %247 = vst [vmem:[%s153 + $0x170] sm:$0xff] %v246
                %v248 = vld [vmem:[%s152 + $0x2e0] sm:$0xff]
                %249 = vst [vmem:[%s153 + $0x178] sm:$0xff] %v248
                %v250 = vld [vmem:[%s152 + $0x300] sm:$0xff]
                %251 = vst [vmem:[%s153 + $0x180] sm:$0xff] %v250
                %v252 = vld [vmem:[%s152 + $0x308] sm:$0xff]
                %253 = vst [vmem:[%s153 + $0x188] sm:$0xff] %v252
                %v254 = vld [vmem:[%s152 + $0x310] sm:$0xff]
                %255 = vst [vmem:[%s153 + $0x190] sm:$0xff] %v254
                %v256 = vld [vmem:[%s152 + $0x330] sm:$0xff]
                %257 = vst [vmem:[%s153 + $0x198] sm:$0xff] %v256
                %v258 = vld [vmem:[%s152 + $0x338] sm:$0xff]
                %259 = vst [vmem:[%s153 + $0x1a0] sm:$0xff] %v258
                %v260 = vld [vmem:[%s152 + $0x340] sm:$0xff]
                %261 = vst [vmem:[%s153 + $0x1a8] sm:$0xff] %v260
                %v262 = vld [vmem:[%s152 + $0x360] sm:$0xff]
                %263 = vst [vmem:[%s153 + $0x1b0] sm:$0xff] %v262
                %v264 = vld [vmem:[%s152 + $0x368] sm:$0xff]
                %265 = vst [vmem:[%s153 + $0x1b8] sm:$0xff] %v264
                %v266 = vld [vmem:[%s152 + $0x370] sm:$0xff]
                %267 = vst [vmem:[%s153 + $0x1c0] sm:$0xff] %v266
                %v268 = vld [vmem:[%s152 + $0x390] sm:$0xff]
                %269 = vst [vmem:[%s153 + $0x1c8] sm:$0xff] %v268
                %v270 = vld [vmem:[%s152 + $0x398] sm:$0xff]
                %271 = vst [vmem:[%s153 + $0x1d0] sm:$0xff] %v270
                %v272 = vld [vmem:[%s152 + $0x3a0] sm:$0xff]
                %273 = vst [vmem:[%s153 + $0x1d8] sm:$0xff] %v272
                %v274 = vld [vmem:[%s152 + $0x3c0] sm:$0xff]
                %275 = vst [vmem:[%s153 + $0x1e0] sm:$0xff] %v274
                %v276 = vld [vmem:[%s152 + $0x3c8] sm:$0xff]
                %277 = vst [vmem:[%s153 + $0x1e8] sm:$0xff] %v276
                %v278 = vld [vmem:[%s152 + $0x3d0] sm:$0xff]
                %279 = vst [vmem:[%s153 + $0x1f0] sm:$0xff] %v278
                %v280 = vld [vmem:[%s152 + $0x3f0] sm:$0xff]
                %281 = vst [vmem:[%s153 + $0x1f8] sm:$0xff] %v280
                %v282 = vld [vmem:[%s152 + $0x3f8] sm:$0xff]
                %283 = vst [vmem:[%s153 + $0x200] sm:$0xff] %v282
                %v284 = vld [vmem:[%s152 + $0x400] sm:$0xff]
                %285 = vst [vmem:[%s153 + $0x208] sm:$0xff] %v284
                %v286 = vld [vmem:[%s152 + $0x420] sm:$0xff]
                %287 = vst [vmem:[%s153 + $0x210] sm:$0xff] %v286
                %v288 = vld [vmem:[%s152 + $0x428] sm:$0xff]
                %289 = vst [vmem:[%s153 + $0x218] sm:$0xff] %v288
                %v290 = vld [vmem:[%s152 + $0x430] sm:$0xff]
                %291 = vst [vmem:[%s153 + $0x220] sm:$0xff] %v290
                %v292 = vld [vmem:[%s152 + $0x450] sm:$0xff]
                %293 = vst [vmem:[%s153 + $0x228] sm:$0xff] %v292
                %v294 = vld [vmem:[%s152 + $0x458] sm:$0xff]
                %295 = vst [vmem:[%s153 + $0x230] sm:$0xff] %v294
                %v296 = vld [vmem:[%s152 + $0x460] sm:$0xff]
                %297 = vst [vmem:[%s153 + $0x238] sm:$0xff] %v296
                %v298 = vld [vmem:[%s152 + $0x480] sm:$0xff]
                %299 = vst [vmem:[%s153 + $0x240] sm:$0xff] %v298
                %v300 = vld [vmem:[%s152 + $0x488] sm:$0xff]
                %301 = vst [vmem:[%s153 + $0x248] sm:$0xff] %v300
                %v302 = vld [vmem:[%s152 + $0x490] sm:$0xff]
                %303 = vst [vmem:[%s153 + $0x250] sm:$0xff] %v302
                %v304 = vld [vmem:[%s152 + $0x4b0] sm:$0xff]
                %305 = vst [vmem:[%s153 + $0x258] sm:$0xff] %v304
                %v306 = vld [vmem:[%s152 + $0x4b8] sm:$0xff]
                %307 = vst [vmem:[%s153 + $0x260] sm:$0xff] %v306
                %v308 = vld [vmem:[%s152 + $0x4c0] sm:$0xff]
                %309 = vst [vmem:[%s153 + $0x268] sm:$0xff] %v308
                %v310 = vld [vmem:[%s152 + $0x4e0] sm:$0xff]
                %311 = vst [vmem:[%s153 + $0x270] sm:$0xff] %v310
                %v312 = vld [vmem:[%s152 + $0x4e8] sm:$0xff]
                %313 = vst [vmem:[%s153 + $0x278] sm:$0xff] %v312
                %v314 = vld [vmem:[%s152 + $0x4f0] sm:$0xff]
                %315 = vst [vmem:[%s153 + $0x280] sm:$0xff] %v314
                %v316 = vld [vmem:[%s152 + $0x510] sm:$0xff]
                %317 = vst [vmem:[%s153 + $0x288] sm:$0xff] %v316
                %v318 = vld [vmem:[%s152 + $0x518] sm:$0xff]
                %319 = vst [vmem:[%s153 + $0x290] sm:$0xff] %v318
                %v320 = vld [vmem:[%s152 + $0x520] sm:$0xff]
                %321 = vst [vmem:[%s153 + $0x298] sm:$0xff] %v320
                %v322 = vld [vmem:[%s152 + $0x540] sm:$0xff]
                %323 = vst [vmem:[%s153 + $0x2a0] sm:$0xff] %v322
                %v324 = vld [vmem:[%s152 + $0x548] sm:$0xff]
                %325 = vst [vmem:[%s153 + $0x2a8] sm:$0xff] %v324
                %v326 = vld [vmem:[%s152 + $0x550] sm:$0xff]
                %327 = vst [vmem:[%s153 + $0x2b0] sm:$0xff] %v326
                %v328 = vld [vmem:[%s152 + $0x570] sm:$0xff]
                %329 = vst [vmem:[%s153 + $0x2b8] sm:$0xff] %v328
                %v330 = vld [vmem:[%s152 + $0x578] sm:$0xff]
                %331 = vst [vmem:[%s153 + $0x2c0] sm:$0xff] %v330
                %v332 = vld [vmem:[%s152 + $0x580] sm:$0xff]
                %333 = vst [vmem:[%s153 + $0x2c8] sm:$0xff] %v332
                %v334 = vld [vmem:[%s152 + $0x5a0] sm:$0xff]
                %335 = vst [vmem:[%s153 + $0x2d0] sm:$0xff] %v334
                %v336 = vld [vmem:[%s152 + $0x5a8] sm:$0xff]
                %337 = vst [vmem:[%s153 + $0x2d8] sm:$0xff] %v336
                %v338 = vld [vmem:[%s152 + $0x5b0] sm:$0xff]
                %339 = vst [vmem:[%s153 + $0x2e0] sm:$0xff] %v338
                %v340 = vld [vmem:[%s152 + $0x5d0] sm:$0xff]
                %341 = vst [vmem:[%s153 + $0x2e8] sm:$0xff] %v340
                %v342 = vld [vmem:[%s152 + $0x5d8] sm:$0xff]
                %343 = vst [vmem:[%s153 + $0x2f0] sm:$0xff] %v342
                %v344 = vld [vmem:[%s152 + $0x5e0] sm:$0xff]
                %345 = vst [vmem:[%s153 + $0x2f8] sm:$0xff] %v344
                %v346 = vld [vmem:[%s152 + $0x600] sm:$0xff]
                %347 = vst [vmem:[%s153 + $0x300] sm:$0xff] %v346
                %v348 = vld [vmem:[%s152 + $0x608] sm:$0xff]
                %349 = vst [vmem:[%s153 + $0x308] sm:$0xff] %v348
                %v350 = vld [vmem:[%s152 + $0x610] sm:$0xff]
                %351 = vst [vmem:[%s153 + $0x310] sm:$0xff] %v350
                %v352 = vld [vmem:[%s152 + $0x630] sm:$0xff]
                %353 = vst [vmem:[%s153 + $0x318] sm:$0xff] %v352
                %v354 = vld [vmem:[%s152 + $0x638] sm:$0xff]
                %355 = vst [vmem:[%s153 + $0x320] sm:$0xff] %v354
                %v356 = vld [vmem:[%s152 + $0x640] sm:$0xff]
                %357 = vst [vmem:[%s153 + $0x328] sm:$0xff] %v356
                %v358 = vld [vmem:[%s152 + $0x660] sm:$0xff]
                %359 = vst [vmem:[%s153 + $0x330] sm:$0xff] %v358
                %v360 = vld [vmem:[%s152 + $0x668] sm:$0xff]
                %361 = vst [vmem:[%s153 + $0x338] sm:$0xff] %v360
                %v362 = vld [vmem:[%s152 + $0x670] sm:$0xff]
                %363 = vst [vmem:[%s153 + $0x340] sm:$0xff] %v362
                %v364 = vld [vmem:[%s152 + $0x690] sm:$0xff]
                %365 = vst [vmem:[%s153 + $0x348] sm:$0xff] %v364
                %v366 = vld [vmem:[%s152 + $0x698] sm:$0xff]
                %367 = vst [vmem:[%s153 + $0x350] sm:$0xff] %v366
                %v368 = vld [vmem:[%s152 + $0x6a0] sm:$0xff]
                %369 = vst [vmem:[%s153 + $0x358] sm:$0xff] %v368
                %v370 = vld [vmem:[%s152 + $0x6c0] sm:$0xff]
                %371 = vst [vmem:[%s153 + $0x360] sm:$0xff] %v370
                %v372 = vld [vmem:[%s152 + $0x6c8] sm:$0xff]
                %373 = vst [vmem:[%s153 + $0x368] sm:$0xff] %v372
                %v374 = vld [vmem:[%s152 + $0x6d0] sm:$0xff]
                %375 = vst [vmem:[%s153 + $0x370] sm:$0xff] %v374
                %v376 = vld [vmem:[%s152 + $0x6f0] sm:$0xff]
                %377 = vst [vmem:[%s153 + $0x378] sm:$0xff] %v376
                %v378 = vld [vmem:[%s152 + $0x6f8] sm:$0xff]
                %379 = vst [vmem:[%s153 + $0x380] sm:$0xff] %v378
                %v380 = vld [vmem:[%s152 + $0x700] sm:$0xff]
                %381 = vst [vmem:[%s153 + $0x388] sm:$0xff] %v380
                %v382 = vld [vmem:[%s152 + $0x720] sm:$0xff]
                %383 = vst [vmem:[%s153 + $0x390] sm:$0xff] %v382
                %v384 = vld [vmem:[%s152 + $0x728] sm:$0xff]
                %385 = vst [vmem:[%s153 + $0x398] sm:$0xff] %v384
                %v386 = vld [vmem:[%s152 + $0x730] sm:$0xff]
                %387 = vst [vmem:[%s153 + $0x3a0] sm:$0xff] %v386
                %v388 = vld [vmem:[%s152 + $0x750] sm:$0xff]
                %389 = vst [vmem:[%s153 + $0x3a8] sm:$0xff] %v388
                %v390 = vld [vmem:[%s152 + $0x758] sm:$0xff]
                %391 = vst [vmem:[%s153 + $0x3b0] sm:$0xff] %v390
                %v392 = vld [vmem:[%s152 + $0x760] sm:$0xff]
                %393 = vst [vmem:[%s153 + $0x3b8] sm:$0xff] %v392
                %v394 = vld [vmem:[%s152 + $0x780] sm:$0xff]
                %395 = vst [vmem:[%s153 + $0x3c0] sm:$0xff] %v394
                %v396 = vld [vmem:[%s152 + $0x788] sm:$0xff]
                %397 = vst [vmem:[%s153 + $0x3c8] sm:$0xff] %v396
                %v398 = vld [vmem:[%s152 + $0x790] sm:$0xff]
                %399 = vst [vmem:[%s153 + $0x3d0] sm:$0xff] %v398
                %v400 = vld [vmem:[%s152 + $0x7b0] sm:$0xff]
                %401 = vst [vmem:[%s153 + $0x3d8] sm:$0xff] %v400
                %v402 = vld [vmem:[%s152 + $0x7b8] sm:$0xff]
                %403 = vst [vmem:[%s153 + $0x3e0] sm:$0xff] %v402
                %v404 = vld [vmem:[%s152 + $0x7c0] sm:$0xff]
                %405 = vst [vmem:[%s153 + $0x3e8] sm:$0xff] %v404
                %v406 = vld [vmem:[%s152 + $0x7e0] sm:$0xff]
                %407 = vst [vmem:[%s153 + $0x3f0] sm:$0xff] %v406
                %v408 = vld [vmem:[%s152 + $0x7e8] sm:$0xff]
                %409 = vst [vmem:[%s153 + $0x3f8] sm:$0xff] %v408
                %v410 = vld [vmem:[%s152 + $0x7f0] sm:$0xff]
                %411 = vst [vmem:[%s153 + $0x400] sm:$0xff] %v410
                %v412 = vld [vmem:[%s152 + $0x810] sm:$0xff]
                %413 = vst [vmem:[%s153 + $0x408] sm:$0xff] %v412
                %v414 = vld [vmem:[%s152 + $0x818] sm:$0xff]
                %415 = vst [vmem:[%s153 + $0x410] sm:$0xff] %v414
                %v416 = vld [vmem:[%s152 + $0x820] sm:$0xff]
                %417 = vst [vmem:[%s153 + $0x418] sm:$0xff] %v416
                %v418 = vld [vmem:[%s152 + $0x840] sm:$0xff]
                %419 = vst [vmem:[%s153 + $0x420] sm:$0xff] %v418
                %v420 = vld [vmem:[%s152 + $0x848] sm:$0xff]
                %421 = vst [vmem:[%s153 + $0x428] sm:$0xff] %v420
                %v422 = vld [vmem:[%s152 + $0x850] sm:$0xff]
                %423 = vst [vmem:[%s153 + $0x430] sm:$0xff] %v422
                %v424 = vld [vmem:[%s152 + $0x870] sm:$0xff]
                %425 = vst [vmem:[%s153 + $0x438] sm:$0xff] %v424
                %v426 = vld [vmem:[%s152 + $0x878] sm:$0xff]
                %427 = vst [vmem:[%s153 + $0x440] sm:$0xff] %v426
                %v428 = vld [vmem:[%s152 + $0x880] sm:$0xff]
                %429 = vst [vmem:[%s153 + $0x448] sm:$0xff] %v428
                %v430 = vld [vmem:[%s152 + $0x8a0] sm:$0xff]
                %431 = vst [vmem:[%s153 + $0x450] sm:$0xff] %v430
                %v432 = vld [vmem:[%s152 + $0x8a8] sm:$0xff]
                %433 = vst [vmem:[%s153 + $0x458] sm:$0xff] %v432
                %v434 = vld [vmem:[%s152 + $0x8b0] sm:$0xff]
                %435 = vst [vmem:[%s153 + $0x460] sm:$0xff] %v434
                %v436 = vld [vmem:[%s152 + $0x8d0] sm:$0xff]
                %437 = vst [vmem:[%s153 + $0x468] sm:$0xff] %v436
                %v438 = vld [vmem:[%s152 + $0x8d8] sm:$0xff]
                %439 = vst [vmem:[%s153 + $0x470] sm:$0xff] %v438
                %v440 = vld [vmem:[%s152 + $0x8e0] sm:$0xff]
                %441 = vst [vmem:[%s153 + $0x478] sm:$0xff] %v440
                %v442 = vld [vmem:[%s152 + $0x900] sm:$0xff]
                %443 = vst [vmem:[%s153 + $0x480] sm:$0xff] %v442
                %v444 = vld [vmem:[%s152 + $0x908] sm:$0xff]
                %445 = vst [vmem:[%s153 + $0x488] sm:$0xff] %v444
                %v446 = vld [vmem:[%s152 + $0x910] sm:$0xff]
                %447 = vst [vmem:[%s153 + $0x490] sm:$0xff] %v446
                %v448 = vld [vmem:[%s152 + $0x930] sm:$0xff]
                %449 = vst [vmem:[%s153 + $0x498] sm:$0xff] %v448
                %v450 = vld [vmem:[%s152 + $0x938] sm:$0xff]
                %451 = vst [vmem:[%s153 + $0x4a0] sm:$0xff] %v450
                %v452 = vld [vmem:[%s152 + $0x940] sm:$0xff]
                %453 = vst [vmem:[%s153 + $0x4a8] sm:$0xff] %v452
                %v454 = vld [vmem:[%s152 + $0x960] sm:$0xff]
                %455 = vst [vmem:[%s153 + $0x4b0] sm:$0xff] %v454
                %v456 = vld [vmem:[%s152 + $0x968] sm:$0xff]
                %457 = vst [vmem:[%s153 + $0x4b8] sm:$0xff] %v456
                %v458 = vld [vmem:[%s152 + $0x970] sm:$0xff]
                %459 = vst [vmem:[%s153 + $0x4c0] sm:$0xff] %v458
                %v460 = vld [vmem:[%s152 + $0x990] sm:$0xff]
                %461 = vst [vmem:[%s153 + $0x4c8] sm:$0xff] %v460
                %v462 = vld [vmem:[%s152 + $0x998] sm:$0xff]
                %463 = vst [vmem:[%s153 + $0x4d0] sm:$0xff] %v462
                %v464 = vld [vmem:[%s152 + $0x9a0] sm:$0xff]
                %465 = vst [vmem:[%s153 + $0x4d8] sm:$0xff] %v464
                %v466 = vld [vmem:[%s152 + $0x9c0] sm:$0xff]
                %467 = vst [vmem:[%s153 + $0x4e0] sm:$0xff] %v466
                %v468 = vld [vmem:[%s152 + $0x9c8] sm:$0xff]
                %469 = vst [vmem:[%s153 + $0x4e8] sm:$0xff] %v468
                %v470 = vld [vmem:[%s152 + $0x9d0] sm:$0xff]
                %471 = vst [vmem:[%s153 + $0x4f0] sm:$0xff] %v470
                %v472 = vld [vmem:[%s152 + $0x9f0] sm:$0xff]
                %473 = vst [vmem:[%s153 + $0x4f8] sm:$0xff] %v472
                %v474 = vld [vmem:[%s152 + $0x9f8] sm:$0xff]
                %475 = vst [vmem:[%s153 + $0x500] sm:$0xff] %v474
                %v476 = vld [vmem:[%s152 + $0xa00] sm:$0xff]
                %477 = vst [vmem:[%s153 + $0x508] sm:$0xff] %v476
                %v478 = vld [vmem:[%s152 + $0xa20] sm:$0xff]
                %479 = vst [vmem:[%s153 + $0x510] sm:$0xff] %v478
                %v480 = vld [vmem:[%s152 + $0xa28] sm:$0xff]
                %481 = vst [vmem:[%s153 + $0x518] sm:$0xff] %v480
                %v482 = vld [vmem:[%s152 + $0xa30] sm:$0xff]
                %483 = vst [vmem:[%s153 + $0x520] sm:$0xff] %v482
                %v484 = vld [vmem:[%s152 + $0xa50] sm:$0xff]
                %485 = vst [vmem:[%s153 + $0x528] sm:$0xff] %v484
                %v486 = vld [vmem:[%s152 + $0xa58] sm:$0xff]
                %487 = vst [vmem:[%s153 + $0x530] sm:$0xff] %v486
                %v488 = vld [vmem:[%s152 + $0xa60] sm:$0xff]
                %489 = vst [vmem:[%s153 + $0x538] sm:$0xff] %v488
                %v490 = vld [vmem:[%s152 + $0xa80] sm:$0xff]
                %491 = vst [vmem:[%s153 + $0x540] sm:$0xff] %v490
                %v492 = vld [vmem:[%s152 + $0xa88] sm:$0xff]
                %493 = vst [vmem:[%s153 + $0x548] sm:$0xff] %v492
                %v494 = vld [vmem:[%s152 + $0xa90] sm:$0xff]
                %495 = vst [vmem:[%s153 + $0x550] sm:$0xff] %v494
                %v496 = vld [vmem:[%s152 + $0xab0] sm:$0xff]
                %497 = vst [vmem:[%s153 + $0x558] sm:$0xff] %v496
                %v498 = vld [vmem:[%s152 + $0xab8] sm:$0xff]
                %499 = vst [vmem:[%s153 + $0x560] sm:$0xff] %v498
                %v500 = vld [vmem:[%s152 + $0xac0] sm:$0xff]
                %501 = vst [vmem:[%s153 + $0x568] sm:$0xff] %v500
                %v502 = vld [vmem:[%s152 + $0xae0] sm:$0xff]
                %503 = vst [vmem:[%s153 + $0x570] sm:$0xff] %v502
                %v504 = vld [vmem:[%s152 + $0xae8] sm:$0xff]
                %505 = vst [vmem:[%s153 + $0x578] sm:$0xff] %v504
                %v506 = vld [vmem:[%s152 + $0xaf0] sm:$0xff]
                %507 = vst [vmem:[%s153 + $0x580] sm:$0xff] %v506
                %v508 = vld [vmem:[%s152 + $0xb10] sm:$0xff]
                %509 = vst [vmem:[%s153 + $0x588] sm:$0xff] %v508
                %v510 = vld [vmem:[%s152 + $0xb18] sm:$0xff]
                %511 = vst [vmem:[%s153 + $0x590] sm:$0xff] %v510
                %v512 = vld [vmem:[%s152 + $0xb20] sm:$0xff]
                %513 = vst [vmem:[%s153 + $0x598] sm:$0xff] %v512
                %v514 = vld [vmem:[%s152 + $0xb40] sm:$0xff]
                %515 = vst [vmem:[%s153 + $0x5a0] sm:$0xff] %v514
                %v516 = vld [vmem:[%s152 + $0xb48] sm:$0xff]
                %517 = vst [vmem:[%s153 + $0x5a8] sm:$0xff] %v516
                %v518 = vld [vmem:[%s152 + $0xb50] sm:$0xff]
                %519 = vst [vmem:[%s153 + $0x5b0] sm:$0xff] %v518
                %v520 = vld [vmem:[%s152 + $0xb70] sm:$0xff]
                %521 = vst [vmem:[%s153 + $0x5b8] sm:$0xff] %v520
                %v522 = vld [vmem:[%s152 + $0xb78] sm:$0xff]
                %523 = vst [vmem:[%s153 + $0x5c0] sm:$0xff] %v522
                %v524 = vld [vmem:[%s152 + $0xb80] sm:$0xff]
                %525 = vst [vmem:[%s153 + $0x5c8] sm:$0xff] %v524
                %v526 = vld [vmem:[%s152 + $0xba0] sm:$0xff]
                %527 = vst [vmem:[%s153 + $0x5d0] sm:$0xff] %v526
                %v528 = vld [vmem:[%s152 + $0xba8] sm:$0xff]
                %529 = vst [vmem:[%s153 + $0x5d8] sm:$0xff] %v528
                %v530 = vld [vmem:[%s152 + $0xbb0] sm:$0xff]
                %531 = vst [vmem:[%s153 + $0x5e0] sm:$0xff] %v530
                %v532 = vld [vmem:[%s152 + $0xbd0] sm:$0xff]
                %533 = vst [vmem:[%s153 + $0x5e8] sm:$0xff] %v532
                %v534 = vld [vmem:[%s152 + $0xbd8] sm:$0xff]
                %535 = vst [vmem:[%s153 + $0x5f0] sm:$0xff] %v534
                %v536 = vld [vmem:[%s152 + $0xbe0] sm:$0xff]
                %537 = vst [vmem:[%s153 + $0x5f8] sm:$0xff] %v536
                %v538 = vld [vmem:[%s152 + $0xc00] sm:$0xff]
                %539 = vst [vmem:[%s153 + $0x600] sm:$0xff] %v538
                %v540 = vld [vmem:[%s152 + $0xc08] sm:$0xff]
                %541 = vst [vmem:[%s153 + $0x608] sm:$0xff] %v540
                %v542 = vld [vmem:[%s152 + $0xc10] sm:$0xff]
                %543 = vst [vmem:[%s153 + $0x610] sm:$0xff] %v542
                %v544 = vld [vmem:[%s152 + $0xc30] sm:$0xff]
                %545 = vst [vmem:[%s153 + $0x618] sm:$0xff] %v544
                %v546 = vld [vmem:[%s152 + $0xc38] sm:$0xff]
                %547 = vst [vmem:[%s153 + $0x620] sm:$0xff] %v546
                %v548 = vld [vmem:[%s152 + $0xc40] sm:$0xff]
                %549 = vst [vmem:[%s153 + $0x628] sm:$0xff] %v548
                %v550 = vld [vmem:[%s152 + $0xc60] sm:$0xff]
                %551 = vst [vmem:[%s153 + $0x630] sm:$0xff] %v550
                %v552 = vld [vmem:[%s152 + $0xc68] sm:$0xff]
                %553 = vst [vmem:[%s153 + $0x638] sm:$0xff] %v552
                %v554 = vld [vmem:[%s152 + $0xc70] sm:$0xff]
                %555 = vst [vmem:[%s153 + $0x640] sm:$0xff] %v554
                %v556 = vld [vmem:[%s152 + $0xc90] sm:$0xff]
                %557 = vst [vmem:[%s153 + $0x648] sm:$0xff] %v556
                %v558 = vld [vmem:[%s152 + $0xc98] sm:$0xff]
                %559 = vst [vmem:[%s153 + $0x650] sm:$0xff] %v558
                %v560 = vld [vmem:[%s152 + $0xca0] sm:$0xff]
                %561 = vst [vmem:[%s153 + $0x658] sm:$0xff] %v560
                %v562 = vld [vmem:[%s152 + $0xcc0] sm:$0xff]
                %563 = vst [vmem:[%s153 + $0x660] sm:$0xff] %v562
                %v564 = vld [vmem:[%s152 + $0xcc8] sm:$0xff]
                %565 = vst [vmem:[%s153 + $0x668] sm:$0xff] %v564
                %v566 = vld [vmem:[%s152 + $0xcd0] sm:$0xff]
                %567 = vst [vmem:[%s153 + $0x670] sm:$0xff] %v566
                %v568 = vld [vmem:[%s152 + $0xcf0] sm:$0xff]
                %569 = vst [vmem:[%s153 + $0x678] sm:$0xff] %v568
                %v570 = vld [vmem:[%s152 + $0xcf8] sm:$0xff]
                %571 = vst [vmem:[%s153 + $0x680] sm:$0xff] %v570
                %v572 = vld [vmem:[%s152 + $0xd00] sm:$0xff]
                %573 = vst [vmem:[%s153 + $0x688] sm:$0xff] %v572
                %v574 = vld [vmem:[%s152 + $0xd20] sm:$0xff]
                %575 = vst [vmem:[%s153 + $0x690] sm:$0xff] %v574
                %v576 = vld [vmem:[%s152 + $0xd28] sm:$0xff]
                %577 = vst [vmem:[%s153 + $0x698] sm:$0xff] %v576
                %v578 = vld [vmem:[%s152 + $0xd30] sm:$0xff]
                %579 = vst [vmem:[%s153 + $0x6a0] sm:$0xff] %v578
                %v580 = vld [vmem:[%s152 + $0xd50] sm:$0xff]
                %581 = vst [vmem:[%s153 + $0x6a8] sm:$0xff] %v580
                %v582 = vld [vmem:[%s152 + $0xd58] sm:$0xff]
                %583 = vst [vmem:[%s153 + $0x6b0] sm:$0xff] %v582
                %v584 = vld [vmem:[%s152 + $0xd60] sm:$0xff]
                %585 = vst [vmem:[%s153 + $0x6b8] sm:$0xff] %v584
                %v586 = vld [vmem:[%s152 + $0xd80] sm:$0xff]
                %587 = vst [vmem:[%s153 + $0x6c0] sm:$0xff] %v586
                %v588 = vld [vmem:[%s152 + $0xd88] sm:$0xff]
                %589 = vst [vmem:[%s153 + $0x6c8] sm:$0xff] %v588
                %v590 = vld [vmem:[%s152 + $0xd90] sm:$0xff]
                %591 = vst [vmem:[%s153 + $0x6d0] sm:$0xff] %v590
                %v592 = vld [vmem:[%s152 + $0xdb0] sm:$0xff]
                %593 = vst [vmem:[%s153 + $0x6d8] sm:$0xff] %v592
                %v594 = vld [vmem:[%s152 + $0xdb8] sm:$0xff]
                %595 = vst [vmem:[%s153 + $0x6e0] sm:$0xff] %v594
                %v596 = vld [vmem:[%s152 + $0xdc0] sm:$0xff]
                %597 = vst [vmem:[%s153 + $0x6e8] sm:$0xff] %v596
                %v598 = vld [vmem:[%s152 + $0xde0] sm:$0xff]
                %599 = vst [vmem:[%s153 + $0x6f0] sm:$0xff] %v598
                %v600 = vld [vmem:[%s152 + $0xde8] sm:$0xff]
                %601 = vst [vmem:[%s153 + $0x6f8] sm:$0xff] %v600
                %v602 = vld [vmem:[%s152 + $0xdf0] sm:$0xff]
                %603 = vst [vmem:[%s153 + $0x700] sm:$0xff] %v602
                %v604 = vld [vmem:[%s152 + $0xe10] sm:$0xff]
                %605 = vst [vmem:[%s153 + $0x708] sm:$0xff] %v604
                %v606 = vld [vmem:[%s152 + $0xe18] sm:$0xff]
                %607 = vst [vmem:[%s153 + $0x710] sm:$0xff] %v606
                %v608 = vld [vmem:[%s152 + $0xe20] sm:$0xff]
                %609 = vst [vmem:[%s153 + $0x718] sm:$0xff] %v608
                %v610 = vld [vmem:[%s152 + $0xe40] sm:$0xff]
                %611 = vst [vmem:[%s153 + $0x720] sm:$0xff] %v610
                %v612 = vld [vmem:[%s152 + $0xe48] sm:$0xff]
                %613 = vst [vmem:[%s153 + $0x728] sm:$0xff] %v612
                %v614 = vld [vmem:[%s152 + $0xe50] sm:$0xff]
                %615 = vst [vmem:[%s153 + $0x730] sm:$0xff] %v614
                %v616 = vld [vmem:[%s152 + $0xe70] sm:$0xff]
                %617 = vst [vmem:[%s153 + $0x738] sm:$0xff] %v616
                %v618 = vld [vmem:[%s152 + $0xe78] sm:$0xff]
                %619 = vst [vmem:[%s153 + $0x740] sm:$0xff] %v618
                %v620 = vld [vmem:[%s152 + $0xe80] sm:$0xff]
                %621 = vst [vmem:[%s153 + $0x748] sm:$0xff] %v620
                %v622 = vld [vmem:[%s152 + $0xea0] sm:$0xff]
                %623 = vst [vmem:[%s153 + $0x750] sm:$0xff] %v622
                %v624 = vld [vmem:[%s152 + $0xea8] sm:$0xff]
                %625 = vst [vmem:[%s153 + $0x758] sm:$0xff] %v624
                %v626 = vld [vmem:[%s152 + $0xeb0] sm:$0xff]
                %627 = vst [vmem:[%s153 + $0x760] sm:$0xff] %v626
                %v628 = vld [vmem:[%s152 + $0xed0] sm:$0xff]
                %629 = vst [vmem:[%s153 + $0x768] sm:$0xff] %v628
                %v630 = vld [vmem:[%s152 + $0xed8] sm:$0xff]
                %631 = vst [vmem:[%s153 + $0x770] sm:$0xff] %v630
                %v632 = vld [vmem:[%s152 + $0xee0] sm:$0xff]
                %633 = vst [vmem:[%s153 + $0x778] sm:$0xff] %v632
                %v634 = vld [vmem:[%s152 + $0xf00] sm:$0xff]
                %635 = vst [vmem:[%s153 + $0x780] sm:$0xff] %v634
                %v636 = vld [vmem:[%s152 + $0xf08] sm:$0xff]
                %637 = vst [vmem:[%s153 + $0x788] sm:$0xff] %v636
                %v638 = vld [vmem:[%s152 + $0xf10] sm:$0xff]
                %639 = vst [vmem:[%s153 + $0x790] sm:$0xff] %v638
                %v640 = vld [vmem:[%s152 + $0xf30] sm:$0xff]
                %641 = vst [vmem:[%s153 + $0x798] sm:$0xff] %v640
                %v642 = vld [vmem:[%s152 + $0xf38] sm:$0xff]
                %643 = vst [vmem:[%s153 + $0x7a0] sm:$0xff] %v642
                %v644 = vld [vmem:[%s152 + $0xf40] sm:$0xff]
                %645 = vst [vmem:[%s153 + $0x7a8] sm:$0xff] %v644
                %v646 = vld [vmem:[%s152 + $0xf60] sm:$0xff]
                %647 = vst [vmem:[%s153 + $0x7b0] sm:$0xff] %v646
                %v648 = vld [vmem:[%s152 + $0xf68] sm:$0xff]
                %649 = vst [vmem:[%s153 + $0x7b8] sm:$0xff] %v648
                %v650 = vld [vmem:[%s152 + $0xf70] sm:$0xff]
                %651 = vst [vmem:[%s153 + $0x7c0] sm:$0xff] %v650
                %v652 = vld [vmem:[%s152 + $0xf90] sm:$0xff]
                %653 = vst [vmem:[%s153 + $0x7c8] sm:$0xff] %v652
                %v654 = vld [vmem:[%s152 + $0xf98] sm:$0xff]
                %655 = vst [vmem:[%s153 + $0x7d0] sm:$0xff] %v654
                %v656 = vld [vmem:[%s152 + $0xfa0] sm:$0xff]
                %657 = vst [vmem:[%s153 + $0x7d8] sm:$0xff] %v656
                %v658 = vld [vmem:[%s152 + $0xfc0] sm:$0xff]
                %659 = vst [vmem:[%s153 + $0x7e0] sm:$0xff] %v658
                %v660 = vld [vmem:[%s152 + $0xfc8] sm:$0xff]
                %661 = vst [vmem:[%s153 + $0x7e8] sm:$0xff] %v660
                %v662 = vld [vmem:[%s152 + $0xfd0] sm:$0xff]
                %663 = vst [vmem:[%s153 + $0x7f0] sm:$0xff] %v662
                %v664 = vld [vmem:[%s152 + $0xff0] sm:$0xff]
                %665 = vst [vmem:[%s153 + $0x7f8] sm:$0xff] %v664
                %v666 = vld [vmem:[%s152 + $0xff8] sm:$0xff]
                %667 = vst [vmem:[%s153 + $0x800] sm:$0xff] %v666
                %v668 = vld [vmem:[%s152 + $0x1000] sm:$0xff]
                %669 = vst [vmem:[%s153 + $0x808] sm:$0xff] %v668
                %v670 = vld [vmem:[%s152 + $0x1020] sm:$0xff]
                %671 = vst [vmem:[%s153 + $0x810] sm:$0xff] %v670
                %v672 = vld [vmem:[%s152 + $0x1028] sm:$0xff]
                %673 = vst [vmem:[%s153 + $0x818] sm:$0xff] %v672
                %v674 = vld [vmem:[%s152 + $0x1030] sm:$0xff]
                %675 = vst [vmem:[%s153 + $0x820] sm:$0xff] %v674
                %v676 = vld [vmem:[%s152 + $0x1050] sm:$0xff]
                %677 = vst [vmem:[%s153 + $0x828] sm:$0xff] %v676
                %v678 = vld [vmem:[%s152 + $0x1058] sm:$0xff]
                %679 = vst [vmem:[%s153 + $0x830] sm:$0xff] %v678
                %v680 = vld [vmem:[%s152 + $0x1060] sm:$0xff]
                %681 = vst [vmem:[%s153 + $0x838] sm:$0xff] %v680
                %v682 = vld [vmem:[%s152 + $0x1080] sm:$0xff]
                %683 = vst [vmem:[%s153 + $0x840] sm:$0xff] %v682
                %v684 = vld [vmem:[%s152 + $0x1088] sm:$0xff]
                %685 = vst [vmem:[%s153 + $0x848] sm:$0xff] %v684
                %v686 = vld [vmem:[%s152 + $0x1090] sm:$0xff]
                %687 = vst [vmem:[%s153 + $0x850] sm:$0xff] %v686
                %v688 = vld [vmem:[%s152 + $0x10b0] sm:$0xff]
                %689 = vst [vmem:[%s153 + $0x858] sm:$0xff] %v688
                %v690 = vld [vmem:[%s152 + $0x10b8] sm:$0xff]
                %691 = vst [vmem:[%s153 + $0x860] sm:$0xff] %v690
                %v692 = vld [vmem:[%s152 + $0x10c0] sm:$0xff]
                %693 = vst [vmem:[%s153 + $0x868] sm:$0xff] %v692
              $region33: #{dwconv_bn.1} parent=27 // loop_footer
                %s151 = sadd.s32 1, %s147
              $region34: #{dwconv_bn.1} parent=27 // loop_footer_branch
                %146 = sbr.rel target = $region30
              $region35: #{dwconv_bn.1} parent=27 // loop_exit
                _
            $region28: #{dwconv_bn.1} parent=23 // pred_fallthru
              _
            // Predicated region
            $region36: #{dwconv_bn.1} parent=23 // pred_check
              _
            $region37: #{dwconv_bn.1} parent=23 // pred_check_branch
              %695 = sbr.rel target = $region39
            $region38: #{dwconv_bn.1} parent=23 // pred_region
              _
            $region39: #{dwconv_bn.1} parent=23 // pred_fallthru
              _
          $region24: #{dwconv_bn.1} parent=19 // pred_fallthru
            _
          %696 = vnop
        $region20: #{dwconv_bn.1} parent=15 // pred_fallthru
          _
        // Predicated region
        $region40: #{dwconv_bn.1} parent=15 // pred_check
          %p697 = pneg %p55
        $region41: #{dwconv_bn.1} parent=15 // pred_check_branch
          %699 = sbr.rel (%p697) target = $region43
        $region42: #{dwconv_bn.1} parent=15 // pred_region
          %s700 = sand.u32 %s45, 1
          %s701 = sand.u32 %s45, 1
          %s702 = smul.addr %s701, 96
          %s703 = scalar_lea.vmem [#allocation3], %s702
          %s704 = smul.u32 3, %s9
          %s705 = smul.addr %s704, 8
          %s706 = scalar_lea.vmem %s1, %s705
          // Predicated region
          $region44: #{dwconv_bn.1} parent=42 // pred_check
            _
          $region45: #{dwconv_bn.1} parent=42 // pred_check_branch
            %708 = sbr.rel (0) target = $region47
          $region46: #{dwconv_bn.1} parent=42 // pred_region
            // Predicated region
            $region48: #{dwconv_bn.1} parent=46 // pred_check
              _
            $region49: #{dwconv_bn.1} parent=46 // pred_check_branch
              %710 = sbr.rel (0) target = $region51
            $region50: #{dwconv_bn.1} parent=46 // pred_region
              loop: start=0, step=1, limit=1
              $region52: #{dwconv_bn.1} parent=50 // loop_pre_header
                _
              $region53: #{dwconv_bn.1} parent=50 // loop_header
                %s712 = sphi 0, %s716
                %p713 = scmp.ge.s32.totalorder %s712, 1
                %s717 = sphi %s706, %s706
                %s718 = sphi %s703, %s703
              $region54: #{dwconv_bn.1} parent=50 // loop_header_branch
                %715 = sbr.rel (%p713) target = $region58
              $region55: #{dwconv_bn.1} parent=50 // loop_body
                %v719 = vld [vmem:[%s717] sm:$0xff]
                %720 = vst [vmem:[%s718] sm:$0xff] %v719
                %v721 = vld [vmem:[%s717 + $0x8] sm:$0xff]
                %722 = vst [vmem:[%s718 + $0x8] sm:$0xff] %v721
                %v723 = vld [vmem:[%s717 + $0x10] sm:$0xff]
                %724 = vst [vmem:[%s718 + $0x10] sm:$0xff] %v723
                %v725 = vld [vmem:[%s717 + $0x30] sm:$0xff]
                %726 = vst [vmem:[%s718 + $0x18] sm:$0xff] %v725
                %v727 = vld [vmem:[%s717 + $0x38] sm:$0xff]
                %728 = vst [vmem:[%s718 + $0x20] sm:$0xff] %v727
                %v729 = vld [vmem:[%s717 + $0x40] sm:$0xff]
                %730 = vst [vmem:[%s718 + $0x28] sm:$0xff] %v729
                %v731 = vld [vmem:[%s717 + $0x60] sm:$0xff]
                %732 = vst [vmem:[%s718 + $0x30] sm:$0xff] %v731
                %v733 = vld [vmem:[%s717 + $0x68] sm:$0xff]
                %734 = vst [vmem:[%s718 + $0x38] sm:$0xff] %v733
                %v735 = vld [vmem:[%s717 + $0x70] sm:$0xff]
                %736 = vst [vmem:[%s718 + $0x40] sm:$0xff] %v735
                %v737 = vld [vmem:[%s717 + $0x90] sm:$0xff]
                %738 = vst [vmem:[%s718 + $0x48] sm:$0xff] %v737
                %v739 = vld [vmem:[%s717 + $0x98] sm:$0xff]
                %740 = vst [vmem:[%s718 + $0x50] sm:$0xff] %v739
                %v741 = vld [vmem:[%s717 + $0xa0] sm:$0xff]
                %742 = vst [vmem:[%s718 + $0x58] sm:$0xff] %v741
              $region56: #{dwconv_bn.1} parent=50 // loop_footer
                %s716 = sadd.s32 1, %s712
              $region57: #{dwconv_bn.1} parent=50 // loop_footer_branch
                %711 = sbr.rel target = $region53
              $region58: #{dwconv_bn.1} parent=50 // loop_exit
                _
            $region51: #{dwconv_bn.1} parent=46 // pred_fallthru
              _
            // Predicated region
            $region59: #{dwconv_bn.1} parent=46 // pred_check
              _
            $region60: #{dwconv_bn.1} parent=46 // pred_check_branch
              %744 = sbr.rel target = $region62
            $region61: #{dwconv_bn.1} parent=46 // pred_region
              _
            $region62: #{dwconv_bn.1} parent=46 // pred_fallthru
              _
          $region47: #{dwconv_bn.1} parent=42 // pred_fallthru
            _
          %745 = vnop
        $region43: #{dwconv_bn.1} parent=15 // pred_fallthru
          _
        // Predicated region
        $region63: #{dwconv_bn.1} parent=15 // pred_check
          %p746 = pneg %p81
        $region64: #{dwconv_bn.1} parent=15 // pred_check_branch
          %748 = sbr.rel (%p746) target = $region66
        $region65: #{dwconv_bn.1} parent=15 // pred_region
          %s749 = smul.u32 3, %s9
          %p750 = scmp.lt.s32.totalorder %s749, 5
          %s751 = scalar_select %p750, %s749, 5
          %s752 = smul.addr %s751, 2
          %s753 = scalar_lea.vmem %s2, %s752
          %s754 = smul.u32 3, %s9
        $region66: #{dwconv_bn.1} parent=15 // pred_fallthru
          _
      $region16: #{dwconv_bn.1} parent=5 // pred_fallthru
        _
      %p755 = scmp.le.s32.totalorder 1, %s9
      %p756 = scmp.lt.s32.totalorder %s9, 3
      %p757 = pnand %p755, %p756
      %p758 = pneg %p757
      // Predicated region
      $region67: #{dwconv_bn.1} parent=5 // pred_check
        _
      $region68: #{dwconv_bn.1} parent=5 // pred_check_branch
        %760 = sbr.rel (%p757) target = $region70
      $region69: #{dwconv_bn.1} parent=5 // pred_region
        %s761 = ssub.s32 %s9, 1
        %s762 = sand.u32 %s22, 1
        %s763 = sand.u32 %s22, 1
        %s764 = smul.addr %s763, 2160
        %s765 = scalar_lea.vmem [#allocation2], %s764
        // Predicated region
        $region71: #{dwconv_bn.1} parent=69 // pred_check
          %p766 = pneg %p35
        $region72: #{dwconv_bn.1} parent=69 // pred_check_branch
          %768 = sbr.rel (%p766) target = $region74
        $region73: #{dwconv_bn.1} parent=69 // pred_region
          _
        $region74: #{dwconv_bn.1} parent=69 // pred_fallthru
          _
        %s769 = sand.u32 %s48, 1
        %s770 = sand.u32 %s48, 1
        %s771 = smul.addr %s770, 96
        %s772 = scalar_lea.vmem [#allocation3], %s771
        // Predicated region
        $region75: #{dwconv_bn.1} parent=69 // pred_check
          %p773 = pneg %p61
        $region76: #{dwconv_bn.1} parent=69 // pred_check_branch
          %775 = sbr.rel (%p773) target = $region78
        $region77: #{dwconv_bn.1} parent=69 // pred_region
          _
        $region78: #{dwconv_bn.1} parent=69 // pred_fallthru
          _
        %s776 = sand.u32 %s22, 1
        %s777 = sand.u32 %s22, 1
        %s778 = smul.addr %s777, 2160
        %s779 = scalar_lea.vmem [#allocation2], %s778
        %p780 = pneg %p35
        %p781 = pneg %p32
        %s782 = sand.u32 %s48, 1
        %s783 = sand.u32 %s48, 1
        %s784 = smul.addr %s783, 96
        %s785 = scalar_lea.vmem [#allocation3], %s784
        %p786 = pneg %p61
        %p787 = pneg %p58
        %s788 = smul.u32 3, %s14
        %p789 = scmp.lt.s32.totalorder %s788, 5
        %s790 = scalar_select %p789, %s788, 5
        %s791 = smul.addr %s790, 2
        %s792 = scalar_lea.vmem %s2, %s791
        %p793 = pneg %p87
        %p794 = pneg %p84
        %p795 = pneg %p113
        %p796 = pneg %p110
        %s797 = sand.u32 %s100, 1
        %s798 = sand.u32 %s100, 1
        %s799 = smul.addr %s798, 168
        %s800 = scalar_lea.vmem [#allocation4], %s799
        %s801 = smul.u32 3, %s14
        %s802 = smul.u32 3, %s14
        %s803 = smul.u32 3, %s14
        %p804 = scmp.lt.s32.totalorder %s803, 5
        %s805 = scalar_select %p804, %s803, 5
        %s806 = smul.addr %s805, 2
        %s807 = scalar_lea.vmem %s2, %s806
        %s808 = smul.u32 3, %s14
        %s809 = smul.u32 3, %s14
        %v810 = vld [vmem:[%s772] ss:$8 sm:$0x7]
        %v811 = vld [vmem:[%s765] sm:$0xff]
        %v812 = vld [vmem:[%s765 + $0x8] sm:$0xff]
        %v813 = vld [vmem:[%s765 + $0x10] sm:$0xff]
        %v814 = vld [vmem:[%s765 + $0xf0] sm:$0xff]
        %v815 = vld [vmem:[%s765 + $0xf8] sm:$0xff]
        %v816 = vld [vmem:[%s765 + $0x100] sm:$0xff]
        %v817 = vld [vmem:[%s765 + $0x1e0] sm:$0xff]
        %v818 = vld [vmem:[%s765 + $0x1e8] sm:$0xff]
        %v819 = vld [vmem:[%s765 + $0x1f0] sm:$0xff]
        %v820 = vld [vmem:[%s765 + $0x2d0] sm:$0xff]
        %v821 = vld [vmem:[%s765 + $0x2d8] sm:$0xff]
        %v822 = vld [vmem:[%s765 + $0x2e0] sm:$0xff]
        %v823 = vld [vmem:[%s765 + $0x3c0] sm:$0xff]
        %v824 = vld [vmem:[%s765 + $0x3c8] sm:$0xff]
        %v825 = vld [vmem:[%s765 + $0x3d0] sm:$0xff]
        %v826 = vld [vmem:[%s765 + $0x4b0] sm:$0xff]
        %v827 = vld [vmem:[%s765 + $0x4b8] sm:$0xff]
        %v828 = vld [vmem:[%s765 + $0x4c0] sm:$0xff]
        %v829 = vld [vmem:[%s765 + $0x5a0] sm:$0xff]
        %v830 = vld [vmem:[%s765 + $0x5a8] sm:$0xff]
        %v831 = vld [vmem:[%s765 + $0x5b0] sm:$0xff]
        %v833 = vlaneseq
        %v834 = vshrl.u32 %v833, 7
        %v835 = vsub.s32 0, %v834
        %v836 = vrot.slane %v810, %v835
        %v837 = vlaneseq
        %v838 = vshrl.u32 %v837, 7
        %v839 = vsub.s32 1, %v838
        %v840 = vrot.slane %v810, %v839
        %v841 = vlaneseq
        %v842 = vshrl.u32 %v841, 7
        %v843 = vsub.s32 2, %v842
        %v844 = vrot.slane %v810, %v843
        %v848 = vmul.f32 %v811, %v836
        %v849 = vmul.f32 %v812, %v840
        %v850 = vmul.f32 %v813, %v844
        %v851 = vmul.f32 %v814, %v836
        %v852 = vmul.f32 %v815, %v840
        %v853 = vmul.f32 %v816, %v844
        %v854 = vmul.f32 %v817, %v836
        %v855 = vmul.f32 %v818, %v840
        %v856 = vmul.f32 %v819, %v844
        %v857 = vmul.f32 %v820, %v836
        %v858 = vmul.f32 %v821, %v840
        %v859 = vmul.f32 %v822, %v844
        %v860 = vmul.f32 %v823, %v836
        %v861 = vmul.f32 %v824, %v840
        %v862 = vmul.f32 %v825, %v844
        %v863 = vmul.f32 %v826, %v836
        %v864 = vmul.f32 %v827, %v840
        %v865 = vmul.f32 %v828, %v844
        %v866 = vmul.f32 %v829, %v836
        %v867 = vmul.f32 %v830, %v840
        %v868 = vmul.f32 %v831, %v844
        %v869 = vadd.f32 %v848, 0.0
        %v870 = vadd.f32 %v849, 0.0
        %v871 = vadd.f32 %v850, 0.0
        %v872 = vadd.f32 %v851, 0.0
        %v873 = vadd.f32 %v852, 0.0
        %v874 = vadd.f32 %v853, 0.0
        %v875 = vadd.f32 %v854, 0.0
        %v876 = vadd.f32 %v855, 0.0
        %v877 = vadd.f32 %v856, 0.0
        %v878 = vadd.f32 %v857, 0.0
        %v879 = vadd.f32 %v858, 0.0
        %v880 = vadd.f32 %v859, 0.0
        %v881 = vadd.f32 %v860, 0.0
        %v882 = vadd.f32 %v861, 0.0
        %v883 = vadd.f32 %v862, 0.0
        %v884 = vadd.f32 %v863, 0.0
        %v885 = vadd.f32 %v864, 0.0
        %v886 = vadd.f32 %v865, 0.0
        %v887 = vadd.f32 %v866, 0.0
        %v888 = vadd.f32 %v867, 0.0
        %v889 = vadd.f32 %v868, 0.0
        %s890 = scalar_lea.vmem %s772, 1 [#allocation3]
        %v891 = vld [vmem:[%s890] ss:$8 sm:$0x7]
        %s892 = scalar_lea.vmem %s765, 24 [#allocation2]
        %v893 = vld [vmem:[%s892] sm:$0xff]
        %v894 = vld [vmem:[%s892 + $0x8] sm:$0xff]
        %v895 = vld [vmem:[%s892 + $0x10] sm:$0xff]
        %v896 = vld [vmem:[%s892 + $0xf0] sm:$0xff]
        %v897 = vld [vmem:[%s892 + $0xf8] sm:$0xff]
        %v898 = vld [vmem:[%s892 + $0x100] sm:$0xff]
        %v899 = vld [vmem:[%s892 + $0x1e0] sm:$0xff]
        %v900 = vld [vmem:[%s892 + $0x1e8] sm:$0xff]
        %v901 = vld [vmem:[%s892 + $0x1f0] sm:$0xff]
        %v902 = vld [vmem:[%s892 + $0x2d0] sm:$0xff]
        %v903 = vld [vmem:[%s892 + $0x2d8] sm:$0xff]
        %v904 = vld [vmem:[%s892 + $0x2e0] sm:$0xff]
        %v905 = vld [vmem:[%s892 + $0x3c0] sm:$0xff]
        %v906 = vld [vmem:[%s892 + $0x3c8] sm:$0xff]
        %v907 = vld [vmem:[%s892 + $0x3d0] sm:$0xff]
        %v908 = vld [vmem:[%s892 + $0x4b0] sm:$0xff]
        %v909 = vld [vmem:[%s892 + $0x4b8] sm:$0xff]
        %v910 = vld [vmem:[%s892 + $0x4c0] sm:$0xff]
        %v911 = vld [vmem:[%s892 + $0x5a0] sm:$0xff]
        %v912 = vld [vmem:[%s892 + $0x5a8] sm:$0xff]
        %v913 = vld [vmem:[%s892 + $0x5b0] sm:$0xff]
        %v915 = vlaneseq
        %v916 = vshrl.u32 %v915, 7
        %v917 = vsub.s32 0, %v916
        %v918 = vrot.slane %v891, %v917
        %v919 = vlaneseq
        %v920 = vshrl.u32 %v919, 7
        %v921 = vsub.s32 1, %v920
        %v922 = vrot.slane %v891, %v921
        %v923 = vlaneseq
        %v924 = vshrl.u32 %v923, 7
        %v925 = vsub.s32 2, %v924
        %v926 = vrot.slane %v891, %v925
        %v930 = vmul.f32 %v893, %v918
        %v931 = vmul.f32 %v894, %v922
        %v932 = vmul.f32 %v895, %v926
        %v933 = vmul.f32 %v896, %v918
        %v934 = vmul.f32 %v897, %v922
        %v935 = vmul.f32 %v898, %v926
        %v936 = vmul.f32 %v899, %v918
        %v937 = vmul.f32 %v900, %v922
        %v938 = vmul.f32 %v901, %v926
        %v939 = vmul.f32 %v902, %v918
        %v940 = vmul.f32 %v903, %v922
        %v941 = vmul.f32 %v904, %v926
        %v942 = vmul.f32 %v905, %v918
        %v943 = vmul.f32 %v906, %v922
        %v944 = vmul.f32 %v907, %v926
        %v945 = vmul.f32 %v908, %v918
        %v946 = vmul.f32 %v909, %v922
        %v947 = vmul.f32 %v910, %v926
        %v948 = vmul.f32 %v911, %v918
        %v949 = vmul.f32 %v912, %v922
        %v950 = vmul.f32 %v913, %v926
        %v951 = vadd.f32 %v869, %v930
        %v952 = vadd.f32 %v870, %v931
        %v953 = vadd.f32 %v871, %v932
        %v954 = vadd.f32 %v872, %v933
        %v955 = vadd.f32 %v873, %v934
        %v956 = vadd.f32 %v874, %v935
        %v957 = vadd.f32 %v875, %v936
        %v958 = vadd.f32 %v876, %v937
        %v959 = vadd.f32 %v877, %v938
        %v960 = vadd.f32 %v878, %v939
        %v961 = vadd.f32 %v879, %v940
        %v962 = vadd.f32 %v880, %v941
        %v963 = vadd.f32 %v881, %v942
        %v964 = vadd.f32 %v882, %v943
        %v965 = vadd.f32 %v883, %v944
        %v966 = vadd.f32 %v884, %v945
        %v967 = vadd.f32 %v885, %v946
        %v968 = vadd.f32 %v886, %v947
        %v969 = vadd.f32 %v887, %v948
        %v970 = vadd.f32 %v888, %v949
        %v971 = vadd.f32 %v889, %v950
        %s972 = scalar_lea.vmem %s772, 2 [#allocation3]
        %v973 = vld [vmem:[%s972] ss:$8 sm:$0x7]
        %s974 = scalar_lea.vmem %s765, 48 [#allocation2]
        %v975 = vld [vmem:[%s974] sm:$0xff]
        %v976 = vld [vmem:[%s974 + $0x8] sm:$0xff]
        %v977 = vld [vmem:[%s974 + $0x10] sm:$0xff]
        %v978 = vld [vmem:[%s974 + $0xf0] sm:$0xff]
        %v979 = vld [vmem:[%s974 + $0xf8] sm:$0xff]
        %v980 = vld [vmem:[%s974 + $0x100] sm:$0xff]
        %v981 = vld [vmem:[%s974 + $0x1e0] sm:$0xff]
        %v982 = vld [vmem:[%s974 + $0x1e8] sm:$0xff]
        %v983 = vld [vmem:[%s974 + $0x1f0] sm:$0xff]
        %v984 = vld [vmem:[%s974 + $0x2d0] sm:$0xff]
        %v985 = vld [vmem:[%s974 + $0x2d8] sm:$0xff]
        %v986 = vld [vmem:[%s974 + $0x2e0] sm:$0xff]
        %v987 = vld [vmem:[%s974 + $0x3c0] sm:$0xff]
        %v988 = vld [vmem:[%s974 + $0x3c8] sm:$0xff]
        %v989 = vld [vmem:[%s974 + $0x3d0] sm:$0xff]
        %v990 = vld [vmem:[%s974 + $0x4b0] sm:$0xff]
        %v991 = vld [vmem:[%s974 + $0x4b8] sm:$0xff]
        %v992 = vld [vmem:[%s974 + $0x4c0] sm:$0xff]
        %v993 = vld [vmem:[%s974 + $0x5a0] sm:$0xff]
        %v994 = vld [vmem:[%s974 + $0x5a8] sm:$0xff]
        %v995 = vld [vmem:[%s974 + $0x5b0] sm:$0xff]
        %v997 = vlaneseq
        %v998 = vshrl.u32 %v997, 7
        %v999 = vsub.s32 0, %v998
        %v1000 = vrot.slane %v973, %v999
        %v1001 = vlaneseq
        %v1002 = vshrl.u32 %v1001, 7
        %v1003 = vsub.s32 1, %v1002
        %v1004 = vrot.slane %v973, %v1003
        %v1005 = vlaneseq
        %v1006 = vshrl.u32 %v1005, 7
        %v1007 = vsub.s32 2, %v1006
        %v1008 = vrot.slane %v973, %v1007
        %v1012 = vmul.f32 %v975, %v1000
        %v1013 = vmul.f32 %v976, %v1004
        %v1014 = vmul.f32 %v977, %v1008
        %v1015 = vmul.f32 %v978, %v1000
        %v1016 = vmul.f32 %v979, %v1004
        %v1017 = vmul.f32 %v980, %v1008
        %v1018 = vmul.f32 %v981, %v1000
        %v1019 = vmul.f32 %v982, %v1004
        %v1020 = vmul.f32 %v983, %v1008
        %v1021 = vmul.f32 %v984, %v1000
        %v1022 = vmul.f32 %v985, %v1004
        %v1023 = vmul.f32 %v986, %v1008
        %v1024 = vmul.f32 %v987, %v1000
        %v1025 = vmul.f32 %v988, %v1004
        %v1026 = vmul.f32 %v989, %v1008
        %v1027 = vmul.f32 %v990, %v1000
        %v1028 = vmul.f32 %v991, %v1004
        %v1029 = vmul.f32 %v992, %v1008
        %v1030 = vmul.f32 %v993, %v1000
        %v1031 = vmul.f32 %v994, %v1004
        %v1032 = vmul.f32 %v995, %v1008
        %v1033 = vadd.f32 %v951, %v1012
        %v1034 = vadd.f32 %v952, %v1013
        %v1035 = vadd.f32 %v953, %v1014
        %v1036 = vadd.f32 %v954, %v1015
        %v1037 = vadd.f32 %v955, %v1016
        %v1038 = vadd.f32 %v956, %v1017
        %v1039 = vadd.f32 %v957, %v1018
        %v1040 = vadd.f32 %v958, %v1019
        %v1041 = vadd.f32 %v959, %v1020
        %v1042 = vadd.f32 %v960, %v1021
        %v1043 = vadd.f32 %v961, %v1022
        %v1044 = vadd.f32 %v962, %v1023
        %v1045 = vadd.f32 %v963, %v1024
        %v1046 = vadd.f32 %v964, %v1025
        %v1047 = vadd.f32 %v965, %v1026
        %v1048 = vadd.f32 %v966, %v1027
        %v1049 = vadd.f32 %v967, %v1028
        %v1050 = vadd.f32 %v968, %v1029
        %v1051 = vadd.f32 %v969, %v1030
        %v1052 = vadd.f32 %v970, %v1031
        %v1053 = vadd.f32 %v971, %v1032
        %s1054 = scalar_lea.vmem %s772, 3 [#allocation3]
        %v1055 = vld [vmem:[%s1054] ss:$8 sm:$0x7]
        %s1056 = scalar_lea.vmem %s765, 72 [#allocation2]
        %v1057 = vld [vmem:[%s1056] sm:$0xff]
        %v1058 = vld [vmem:[%s1056 + $0x8] sm:$0xff]
        %v1059 = vld [vmem:[%s1056 + $0x10] sm:$0xff]
        %v1060 = vld [vmem:[%s1056 + $0xf0] sm:$0xff]
        %v1061 = vld [vmem:[%s1056 + $0xf8] sm:$0xff]
        %v1062 = vld [vmem:[%s1056 + $0x100] sm:$0xff]
        %v1063 = vld [vmem:[%s1056 + $0x1e0] sm:$0xff]
        %v1064 = vld [vmem:[%s1056 + $0x1e8] sm:$0xff]
        %v1065 = vld [vmem:[%s1056 + $0x1f0] sm:$0xff]
        %v1066 = vld [vmem:[%s1056 + $0x2d0] sm:$0xff]
        %v1067 = vld [vmem:[%s1056 + $0x2d8] sm:$0xff]
        %v1068 = vld [vmem:[%s1056 + $0x2e0] sm:$0xff]
        %v1069 = vld [vmem:[%s1056 + $0x3c0] sm:$0xff]
        %v1070 = vld [vmem:[%s1056 + $0x3c8] sm:$0xff]
        %v1071 = vld [vmem:[%s1056 + $0x3d0] sm:$0xff]
        %v1072 = vld [vmem:[%s1056 + $0x4b0] sm:$0xff]
        %v1073 = vld [vmem:[%s1056 + $0x4b8] sm:$0xff]
        %v1074 = vld [vmem:[%s1056 + $0x4c0] sm:$0xff]
        %v1075 = vld [vmem:[%s1056 + $0x5a0] sm:$0xff]
        %v1076 = vld [vmem:[%s1056 + $0x5a8] sm:$0xff]
        %v1077 = vld [vmem:[%s1056 + $0x5b0] sm:$0xff]
        %v1079 = vlaneseq
        %v1080 = vshrl.u32 %v1079, 7
        %v1081 = vsub.s32 0, %v1080
        %v1082 = vrot.slane %v1055, %v1081
        %v1083 = vlaneseq
        %v1084 = vshrl.u32 %v1083, 7
        %v1085 = vsub.s32 1, %v1084
        %v1086 = vrot.slane %v1055, %v1085
        %v1087 = vlaneseq
        %v1088 = vshrl.u32 %v1087, 7
        %v1089 = vsub.s32 2, %v1088
        %v1090 = vrot.slane %v1055, %v1089
        %v1094 = vmul.f32 %v1057, %v1082
        %v1095 = vmul.f32 %v1058, %v1086
        %v1096 = vmul.f32 %v1059, %v1090
        %v1097 = vmul.f32 %v1060, %v1082
        %v1098 = vmul.f32 %v1061, %v1086
        %v1099 = vmul.f32 %v1062, %v1090
        %v1100 = vmul.f32 %v1063, %v1082
        %v1101 = vmul.f32 %v1064, %v1086
        %v1102 = vmul.f32 %v1065, %v1090
        %v1103 = vmul.f32 %v1066, %v1082
        %v1104 = vmul.f32 %v1067, %v1086
        %v1105 = vmul.f32 %v1068, %v1090
        %v1106 = vmul.f32 %v1069, %v1082
        %v1107 = vmul.f32 %v1070, %v1086
        %v1108 = vmul.f32 %v1071, %v1090
        %v1109 = vmul.f32 %v1072, %v1082
        %v1110 = vmul.f32 %v1073, %v1086
        %v1111 = vmul.f32 %v1074, %v1090
        %v1112 = vmul.f32 %v1075, %v1082
        %v1113 = vmul.f32 %v1076, %v1086
        %v1114 = vmul.f32 %v1077, %v1090
        %v1115 = vadd.f32 %v1033, %v1094
        %v1116 = vadd.f32 %v1034, %v1095
        %v1117 = vadd.f32 %v1035, %v1096
        %v1118 = vadd.f32 %v1036, %v1097
        %v1119 = vadd.f32 %v1037, %v1098
        %v1120 = vadd.f32 %v1038, %v1099
        %v1121 = vadd.f32 %v1039, %v1100
        %v1122 = vadd.f32 %v1040, %v1101
        %v1123 = vadd.f32 %v1041, %v1102
        %v1124 = vadd.f32 %v1042, %v1103
        %v1125 = vadd.f32 %v1043, %v1104
        %v1126 = vadd.f32 %v1044, %v1105
        %v1127 = vadd.f32 %v1045, %v1106
        %v1128 = vadd.f32 %v1046, %v1107
        %v1129 = vadd.f32 %v1047, %v1108
        %v1130 = vadd.f32 %v1048, %v1109
        %v1131 = vadd.f32 %v1049, %v1110
        %v1132 = vadd.f32 %v1050, %v1111
        %v1133 = vadd.f32 %v1051, %v1112
        %v1134 = vadd.f32 %v1052, %v1113
        %v1135 = vadd.f32 %v1053, %v1114
        %s1136 = scalar_lea.vmem %s772, 4 [#allocation3]
        %v1137 = vld [vmem:[%s1136] ss:$8 sm:$0x7]
        %s1138 = scalar_lea.vmem %s765, 96 [#allocation2]
        %v1139 = vld [vmem:[%s1138] sm:$0xff]
        %v1140 = vld [vmem:[%s1138 + $0x8] sm:$0xff]
        %v1141 = vld [vmem:[%s1138 + $0x10] sm:$0xff]
        %v1142 = vld [vmem:[%s1138 + $0xf0] sm:$0xff]
        %v1143 = vld [vmem:[%s1138 + $0xf8] sm:$0xff]
        %v1144 = vld [vmem:[%s1138 + $0x100] sm:$0xff]
        %v1145 = vld [vmem:[%s1138 + $0x1e0] sm:$0xff]
        %v1146 = vld [vmem:[%s1138 + $0x1e8] sm:$0xff]
        %v1147 = vld [vmem:[%s1138 + $0x1f0] sm:$0xff]
        %v1148 = vld [vmem:[%s1138 + $0x2d0] sm:$0xff]
        %v1149 = vld [vmem:[%s1138 + $0x2d8] sm:$0xff]
        %v1150 = vld [vmem:[%s1138 + $0x2e0] sm:$0xff]
        %v1151 = vld [vmem:[%s1138 + $0x3c0] sm:$0xff]
        %v1152 = vld [vmem:[%s1138 + $0x3c8] sm:$0xff]
        %v1153 = vld [vmem:[%s1138 + $0x3d0] sm:$0xff]
        %v1154 = vld [vmem:[%s1138 + $0x4b0] sm:$0xff]
        %v1155 = vld [vmem:[%s1138 + $0x4b8] sm:$0xff]
        %v1156 = vld [vmem:[%s1138 + $0x4c0] sm:$0xff]
        %v1157 = vld [vmem:[%s1138 + $0x5a0] sm:$0xff]
        %v1158 = vld [vmem:[%s1138 + $0x5a8] sm:$0xff]
        %v1159 = vld [vmem:[%s1138 + $0x5b0] sm:$0xff]
        %v1161 = vlaneseq
        %v1162 = vshrl.u32 %v1161, 7
        %v1163 = vsub.s32 0, %v1162
        %v1164 = vrot.slane %v1137, %v1163
        %v1165 = vlaneseq
        %v1166 = vshrl.u32 %v1165, 7
        %v1167 = vsub.s32 1, %v1166
        %v1168 = vrot.slane %v1137, %v1167
        %v1169 = vlaneseq
        %v1170 = vshrl.u32 %v1169, 7
        %v1171 = vsub.s32 2, %v1170
        %v1172 = vrot.slane %v1137, %v1171
        %v1176 = vmul.f32 %v1139, %v1164
        %v1177 = vmul.f32 %v1140, %v1168
        %v1178 = vmul.f32 %v1141, %v1172
        %v1179 = vmul.f32 %v1142, %v1164
        %v1180 = vmul.f32 %v1143, %v1168
        %v1181 = vmul.f32 %v1144, %v1172
        %v1182 = vmul.f32 %v1145, %v1164
        %v1183 = vmul.f32 %v1146, %v1168
        %v1184 = vmul.f32 %v1147, %v1172
        %v1185 = vmul.f32 %v1148, %v1164
        %v1186 = vmul.f32 %v1149, %v1168
        %v1187 = vmul.f32 %v1150, %v1172
        %v1188 = vmul.f32 %v1151, %v1164
        %v1189 = vmul.f32 %v1152, %v1168
        %v1190 = vmul.f32 %v1153, %v1172
        %v1191 = vmul.f32 %v1154, %v1164
        %v1192 = vmul.f32 %v1155, %v1168
        %v1193 = vmul.f32 %v1156, %v1172
        %v1194 = vmul.f32 %v1157, %v1164
        %v1195 = vmul.f32 %v1158, %v1168
        %v1196 = vmul.f32 %v1159, %v1172
        %v1197 = vadd.f32 %v1115, %v1176
        %v1198 = vadd.f32 %v1116, %v1177
        %v1199 = vadd.f32 %v1117, %v1178
        %v1200 = vadd.f32 %v1118, %v1179
        %v1201 = vadd.f32 %v1119, %v1180
        %v1202 = vadd.f32 %v1120, %v1181
        %v1203 = vadd.f32 %v1121, %v1182
        %v1204 = vadd.f32 %v1122, %v1183
        %v1205 = vadd.f32 %v1123, %v1184
        %v1206 = vadd.f32 %v1124, %v1185
        %v1207 = vadd.f32 %v1125, %v1186
        %v1208 = vadd.f32 %v1126, %v1187
        %v1209 = vadd.f32 %v1127, %v1188
        %v1210 = vadd.f32 %v1128, %v1189
        %v1211 = vadd.f32 %v1129, %v1190
        %v1212 = vadd.f32 %v1130, %v1191
        %v1213 = vadd.f32 %v1131, %v1192
        %v1214 = vadd.f32 %v1132, %v1193
        %v1215 = vadd.f32 %v1133, %v1194
        %v1216 = vadd.f32 %v1134, %v1195
        %v1217 = vadd.f32 %v1135, %v1196
        %s1218 = scalar_lea.vmem %s772, 5 [#allocation3]
        %v1219 = vld [vmem:[%s1218] ss:$8 sm:$0x7]
        %s1220 = scalar_lea.vmem %s765, 120 [#allocation2]
        %v1221 = vld [vmem:[%s1220] sm:$0xff]
        %v1222 = vld [vmem:[%s1220 + $0x8] sm:$0xff]
        %v1223 = vld [vmem:[%s1220 + $0x10] sm:$0xff]
        %v1224 = vld [vmem:[%s1220 + $0xf0] sm:$0xff]
        %v1225 = vld [vmem:[%s1220 + $0xf8] sm:$0xff]
        %v1226 = vld [vmem:[%s1220 + $0x100] sm:$0xff]
        %v1227 = vld [vmem:[%s1220 + $0x1e0] sm:$0xff]
        %v1228 = vld [vmem:[%s1220 + $0x1e8] sm:$0xff]
        %v1229 = vld [vmem:[%s1220 + $0x1f0] sm:$0xff]
        %v1230 = vld [vmem:[%s1220 + $0x2d0] sm:$0xff]
        %v1231 = vld [vmem:[%s1220 + $0x2d8] sm:$0xff]
        %v1232 = vld [vmem:[%s1220 + $0x2e0] sm:$0xff]
        %v1233 = vld [vmem:[%s1220 + $0x3c0] sm:$0xff]
        %v1234 = vld [vmem:[%s1220 + $0x3c8] sm:$0xff]
        %v1235 = vld [vmem:[%s1220 + $0x3d0] sm:$0xff]
        %v1236 = vld [vmem:[%s1220 + $0x4b0] sm:$0xff]
        %v1237 = vld [vmem:[%s1220 + $0x4b8] sm:$0xff]
        %v1238 = vld [vmem:[%s1220 + $0x4c0] sm:$0xff]
        %v1239 = vld [vmem:[%s1220 + $0x5a0] sm:$0xff]
        %v1240 = vld [vmem:[%s1220 + $0x5a8] sm:$0xff]
        %v1241 = vld [vmem:[%s1220 + $0x5b0] sm:$0xff]
        %v1243 = vlaneseq
        %v1244 = vshrl.u32 %v1243, 7
        %v1245 = vsub.s32 0, %v1244
        %v1246 = vrot.slane %v1219, %v1245
        %v1247 = vlaneseq
        %v1248 = vshrl.u32 %v1247, 7
        %v1249 = vsub.s32 1, %v1248
        %v1250 = vrot.slane %v1219, %v1249
        %v1251 = vlaneseq
        %v1252 = vshrl.u32 %v1251, 7
        %v1253 = vsub.s32 2, %v1252
        %v1254 = vrot.slane %v1219, %v1253
        %v1258 = vmul.f32 %v1221, %v1246
        %v1259 = vmul.f32 %v1222, %v1250
        %v1260 = vmul.f32 %v1223, %v1254
        %v1261 = vmul.f32 %v1224, %v1246
        %v1262 = vmul.f32 %v1225, %v1250
        %v1263 = vmul.f32 %v1226, %v1254
        %v1264 = vmul.f32 %v1227, %v1246
        %v1265 = vmul.f32 %v1228, %v1250
        %v1266 = vmul.f32 %v1229, %v1254
        %v1267 = vmul.f32 %v1230, %v1246
        %v1268 = vmul.f32 %v1231, %v1250
        %v1269 = vmul.f32 %v1232, %v1254
        %v1270 = vmul.f32 %v1233, %v1246
        %v1271 = vmul.f32 %v1234, %v1250
        %v1272 = vmul.f32 %v1235, %v1254
        %v1273 = vmul.f32 %v1236, %v1246
        %v1274 = vmul.f32 %v1237, %v1250
        %v1275 = vmul.f32 %v1238, %v1254
        %v1276 = vmul.f32 %v1239, %v1246
        %v1277 = vmul.f32 %v1240, %v1250
        %v1278 = vmul.f32 %v1241, %v1254
        %v1279 = vadd.f32 %v1197, %v1258
        %v1280 = vadd.f32 %v1198, %v1259
        %v1281 = vadd.f32 %v1199, %v1260
        %v1282 = vadd.f32 %v1200, %v1261
        %v1283 = vadd.f32 %v1201, %v1262
        %v1284 = vadd.f32 %v1202, %v1263
        %v1285 = vadd.f32 %v1203, %v1264
        %v1286 = vadd.f32 %v1204, %v1265
        %v1287 = vadd.f32 %v1205, %v1266
        %v1288 = vadd.f32 %v1206, %v1267
        %v1289 = vadd.f32 %v1207, %v1268
        %v1290 = vadd.f32 %v1208, %v1269
        %v1291 = vadd.f32 %v1209, %v1270
        %v1292 = vadd.f32 %v1210, %v1271
        %v1293 = vadd.f32 %v1211, %v1272
        %v1294 = vadd.f32 %v1212, %v1273
        %v1295 = vadd.f32 %v1213, %v1274
        %v1296 = vadd.f32 %v1214, %v1275
        %v1297 = vadd.f32 %v1215, %v1276
        %v1298 = vadd.f32 %v1216, %v1277
        %v1299 = vadd.f32 %v1217, %v1278
        %s1300 = scalar_lea.vmem %s772, 6 [#allocation3]
        %v1301 = vld [vmem:[%s1300] ss:$8 sm:$0x7]
        %s1302 = scalar_lea.vmem %s765, 144 [#allocation2]
        %v1303 = vld [vmem:[%s1302] sm:$0xff]
        %v1304 = vld [vmem:[%s1302 + $0x8] sm:$0xff]
        %v1305 = vld [vmem:[%s1302 + $0x10] sm:$0xff]
        %v1306 = vld [vmem:[%s1302 + $0xf0] sm:$0xff]
        %v1307 = vld [vmem:[%s1302 + $0xf8] sm:$0xff]
        %v1308 = vld [vmem:[%s1302 + $0x100] sm:$0xff]
        %v1309 = vld [vmem:[%s1302 + $0x1e0] sm:$0xff]
        %v1310 = vld [vmem:[%s1302 + $0x1e8] sm:$0xff]
        %v1311 = vld [vmem:[%s1302 + $0x1f0] sm:$0xff]
        %v1312 = vld [vmem:[%s1302 + $0x2d0] sm:$0xff]
        %v1313 = vld [vmem:[%s1302 + $0x2d8] sm:$0xff]
        %v1314 = vld [vmem:[%s1302 + $0x2e0] sm:$0xff]
        %v1315 = vld [vmem:[%s1302 + $0x3c0] sm:$0xff]
        %v1316 = vld [vmem:[%s1302 + $0x3c8] sm:$0xff]
        %v1317 = vld [vmem:[%s1302 + $0x3d0] sm:$0xff]
        %v1318 = vld [vmem:[%s1302 + $0x4b0] sm:$0xff]
        %v1319 = vld [vmem:[%s1302 + $0x4b8] sm:$0xff]
        %v1320 = vld [vmem:[%s1302 + $0x4c0] sm:$0xff]
        %v1321 = vld [vmem:[%s1302 + $0x5a0] sm:$0xff]
        %v1322 = vld [vmem:[%s1302 + $0x5a8] sm:$0xff]
        %v1323 = vld [vmem:[%s1302 + $0x5b0] sm:$0xff]
        %v1325 = vlaneseq
        %v1326 = vshrl.u32 %v1325, 7
        %v1327 = vsub.s32 0, %v1326
        %v1328 = vrot.slane %v1301, %v1327
        %v1329 = vlaneseq
        %v1330 = vshrl.u32 %v1329, 7
        %v1331 = vsub.s32 1, %v1330
        %v1332 = vrot.slane %v1301, %v1331
        %v1333 = vlaneseq
        %v1334 = vshrl.u32 %v1333, 7
        %v1335 = vsub.s32 2, %v1334
        %v1336 = vrot.slane %v1301, %v1335
        %v1340 = vmul.f32 %v1303, %v1328
        %v1341 = vmul.f32 %v1304, %v1332
        %v1342 = vmul.f32 %v1305, %v1336
        %v1343 = vmul.f32 %v1306, %v1328
        %v1344 = vmul.f32 %v1307, %v1332
        %v1345 = vmul.f32 %v1308, %v1336
        %v1346 = vmul.f32 %v1309, %v1328
        %v1347 = vmul.f32 %v1310, %v1332
        %v1348 = vmul.f32 %v1311, %v1336
        %v1349 = vmul.f32 %v1312, %v1328
        %v1350 = vmul.f32 %v1313, %v1332
        %v1351 = vmul.f32 %v1314, %v1336
        %v1352 = vmul.f32 %v1315, %v1328
        %v1353 = vmul.f32 %v1316, %v1332
        %v1354 = vmul.f32 %v1317, %v1336
        %v1355 = vmul.f32 %v1318, %v1328
        %v1356 = vmul.f32 %v1319, %v1332
        %v1357 = vmul.f32 %v1320, %v1336
        %v1358 = vmul.f32 %v1321, %v1328
        %v1359 = vmul.f32 %v1322, %v1332
        %v1360 = vmul.f32 %v1323, %v1336
        %v1361 = vadd.f32 %v1279, %v1340
        %v1362 = vadd.f32 %v1280, %v1341
        %v1363 = vadd.f32 %v1281, %v1342
        %v1364 = vadd.f32 %v1282, %v1343
        %v1365 = vadd.f32 %v1283, %v1344
        %v1366 = vadd.f32 %v1284, %v1345
        %v1367 = vadd.f32 %v1285, %v1346
        %v1368 = vadd.f32 %v1286, %v1347
        %v1369 = vadd.f32 %v1287, %v1348
        %v1370 = vadd.f32 %v1288, %v1349
        %v1371 = vadd.f32 %v1289, %v1350
        %v1372 = vadd.f32 %v1290, %v1351
        %v1373 = vadd.f32 %v1291, %v1352
        %v1374 = vadd.f32 %v1292, %v1353
        %v1375 = vadd.f32 %v1293, %v1354
        %v1376 = vadd.f32 %v1294, %v1355
        %v1377 = vadd.f32 %v1295, %v1356
        %v1378 = vadd.f32 %v1296, %v1357
        %v1379 = vadd.f32 %v1297, %v1358
        %v1380 = vadd.f32 %v1298, %v1359
        %v1381 = vadd.f32 %v1299, %v1360
        %s1382 = scalar_lea.vmem %s772, 7 [#allocation3]
        %v1383 = vld [vmem:[%s1382] ss:$8 sm:$0x7]
        %s1384 = scalar_lea.vmem %s765, 168 [#allocation2]
        %v1385 = vld [vmem:[%s1384] sm:$0xff]
        %v1386 = vld [vmem:[%s1384 + $0x8] sm:$0xff]
        %v1387 = vld [vmem:[%s1384 + $0x10] sm:$0xff]
        %v1388 = vld [vmem:[%s1384 + $0xf0] sm:$0xff]
        %v1389 = vld [vmem:[%s1384 + $0xf8] sm:$0xff]
        %v1390 = vld [vmem:[%s1384 + $0x100] sm:$0xff]
        %v1391 = vld [vmem:[%s1384 + $0x1e0] sm:$0xff]
        %v1392 = vld [vmem:[%s1384 + $0x1e8] sm:$0xff]
        %v1393 = vld [vmem:[%s1384 + $0x1f0] sm:$0xff]
        %v1394 = vld [vmem:[%s1384 + $0x2d0] sm:$0xff]
        %v1395 = vld [vmem:[%s1384 + $0x2d8] sm:$0xff]
        %v1396 = vld [vmem:[%s1384 + $0x2e0] sm:$0xff]
        %v1397 = vld [vmem:[%s1384 + $0x3c0] sm:$0xff]
        %v1398 = vld [vmem:[%s1384 + $0x3c8] sm:$0xff]
        %v1399 = vld [vmem:[%s1384 + $0x3d0] sm:$0xff]
        %v1400 = vld [vmem:[%s1384 + $0x4b0] sm:$0xff]
        %v1401 = vld [vmem:[%s1384 + $0x4b8] sm:$0xff]
        %v1402 = vld [vmem:[%s1384 + $0x4c0] sm:$0xff]
        %v1403 = vld [vmem:[%s1384 + $0x5a0] sm:$0xff]
        %v1404 = vld [vmem:[%s1384 + $0x5a8] sm:$0xff]
        %v1405 = vld [vmem:[%s1384 + $0x5b0] sm:$0xff]
        %v1407 = vlaneseq
        %v1408 = vshrl.u32 %v1407, 7
        %v1409 = vsub.s32 0, %v1408
        %v1410 = vrot.slane %v1383, %v1409
        %v1411 = vlaneseq
        %v1412 = vshrl.u32 %v1411, 7
        %v1413 = vsub.s32 1, %v1412
        %v1414 = vrot.slane %v1383, %v1413
        %v1415 = vlaneseq
        %v1416 = vshrl.u32 %v1415, 7
        %v1417 = vsub.s32 2, %v1416
        %v1418 = vrot.slane %v1383, %v1417
        %v1422 = vmul.f32 %v1385, %v1410
        %v1423 = vmul.f32 %v1386, %v1414
        %v1424 = vmul.f32 %v1387, %v1418
        %v1425 = vmul.f32 %v1388, %v1410
        %v1426 = vmul.f32 %v1389, %v1414
        %v1427 = vmul.f32 %v1390, %v1418
        %v1428 = vmul.f32 %v1391, %v1410
        %v1429 = vmul.f32 %v1392, %v1414
        %v1430 = vmul.f32 %v1393, %v1418
        %v1431 = vmul.f32 %v1394, %v1410
        %v1432 = vmul.f32 %v1395, %v1414
        %v1433 = vmul.f32 %v1396, %v1418
        %v1434 = vmul.f32 %v1397, %v1410
        %v1435 = vmul.f32 %v1398, %v1414
        %v1436 = vmul.f32 %v1399, %v1418
        %v1437 = vmul.f32 %v1400, %v1410
        %v1438 = vmul.f32 %v1401, %v1414
        %v1439 = vmul.f32 %v1402, %v1418
        %v1440 = vmul.f32 %v1403, %v1410
        %v1441 = vmul.f32 %v1404, %v1414
        %v1442 = vmul.f32 %v1405, %v1418
        %v1443 = vadd.f32 %v1361, %v1422
        %v1444 = vadd.f32 %v1362, %v1423
        %v1445 = vadd.f32 %v1363, %v1424
        %v1446 = vadd.f32 %v1364, %v1425
        %v1447 = vadd.f32 %v1365, %v1426
        %v1448 = vadd.f32 %v1366, %v1427
        %v1449 = vadd.f32 %v1367, %v1428
        %v1450 = vadd.f32 %v1368, %v1429
        %v1451 = vadd.f32 %v1369, %v1430
        %v1452 = vadd.f32 %v1370, %v1431
        %v1453 = vadd.f32 %v1371, %v1432
        %v1454 = vadd.f32 %v1372, %v1433
        %v1455 = vadd.f32 %v1373, %v1434
        %v1456 = vadd.f32 %v1374, %v1435
        %v1457 = vadd.f32 %v1375, %v1436
        %v1458 = vadd.f32 %v1376, %v1437
        %v1459 = vadd.f32 %v1377, %v1438
        %v1460 = vadd.f32 %v1378, %v1439
        %v1461 = vadd.f32 %v1379, %v1440
        %v1462 = vadd.f32 %v1380, %v1441
        %v1463 = vadd.f32 %v1381, %v1442
        %s1464 = scalar_lea.vmem %s772, 24 [#allocation3]
        %v1465 = vld [vmem:[%s1464] ss:$8 sm:$0x7]
        %s1466 = scalar_lea.vmem %s765, 192 [#allocation2]
        %v1467 = vld [vmem:[%s1466] sm:$0xff]
        %v1468 = vld [vmem:[%s1466 + $0x8] sm:$0xff]
        %v1469 = vld [vmem:[%s1466 + $0x10] sm:$0xff]
        %v1470 = vld [vmem:[%s1466 + $0xf0] sm:$0xff]
        %v1471 = vld [vmem:[%s1466 + $0xf8] sm:$0xff]
        %v1472 = vld [vmem:[%s1466 + $0x100] sm:$0xff]
        %v1473 = vld [vmem:[%s1466 + $0x1e0] sm:$0xff]
        %v1474 = vld [vmem:[%s1466 + $0x1e8] sm:$0xff]
        %v1475 = vld [vmem:[%s1466 + $0x1f0] sm:$0xff]
        %v1476 = vld [vmem:[%s1466 + $0x2d0] sm:$0xff]
        %v1477 = vld [vmem:[%s1466 + $0x2d8] sm:$0xff]
        %v1478 = vld [vmem:[%s1466 + $0x2e0] sm:$0xff]
        %v1479 = vld [vmem:[%s1466 + $0x3c0] sm:$0xff]
        %v1480 = vld [vmem:[%s1466 + $0x3c8] sm:$0xff]
        %v1481 = vld [vmem:[%s1466 + $0x3d0] sm:$0xff]
        %v1482 = vld [vmem:[%s1466 + $0x4b0] sm:$0xff]
        %v1483 = vld [vmem:[%s1466 + $0x4b8] sm:$0xff]
        %v1484 = vld [vmem:[%s1466 + $0x4c0] sm:$0xff]
        %v1485 = vld [vmem:[%s1466 + $0x5a0] sm:$0xff]
        %v1486 = vld [vmem:[%s1466 + $0x5a8] sm:$0xff]
        %v1487 = vld [vmem:[%s1466 + $0x5b0] sm:$0xff]
        %v1489 = vlaneseq
        %v1490 = vshrl.u32 %v1489, 7
        %v1491 = vsub.s32 0, %v1490
        %v1492 = vrot.slane %v1465, %v1491
        %v1493 = vlaneseq
        %v1494 = vshrl.u32 %v1493, 7
        %v1495 = vsub.s32 1, %v1494
        %v1496 = vrot.slane %v1465, %v1495
        %v1497 = vlaneseq
        %v1498 = vshrl.u32 %v1497, 7
        %v1499 = vsub.s32 2, %v1498
        %v1500 = vrot.slane %v1465, %v1499
        %v1504 = vmul.f32 %v1467, %v1492
        %v1505 = vmul.f32 %v1468, %v1496
        %v1506 = vmul.f32 %v1469, %v1500
        %v1507 = vmul.f32 %v1470, %v1492
        %v1508 = vmul.f32 %v1471, %v1496
        %v1509 = vmul.f32 %v1472, %v1500
        %v1510 = vmul.f32 %v1473, %v1492
        %v1511 = vmul.f32 %v1474, %v1496
        %v1512 = vmul.f32 %v1475, %v1500
        %v1513 = vmul.f32 %v1476, %v1492
        %v1514 = vmul.f32 %v1477, %v1496
        %v1515 = vmul.f32 %v1478, %v1500
        %v1516 = vmul.f32 %v1479, %v1492
        %v1517 = vmul.f32 %v1480, %v1496
        %v1518 = vmul.f32 %v1481, %v1500
        %v1519 = vmul.f32 %v1482, %v1492
        %v1520 = vmul.f32 %v1483, %v1496
        %v1521 = vmul.f32 %v1484, %v1500
        %v1522 = vmul.f32 %v1485, %v1492
        %v1523 = vmul.f32 %v1486, %v1496
        %v1524 = vmul.f32 %v1487, %v1500
        %v1525 = vadd.f32 %v1443, %v1504
        %v1526 = vadd.f32 %v1444, %v1505
        %v1527 = vadd.f32 %v1445, %v1506
        %v1528 = vadd.f32 %v1446, %v1507
        %v1529 = vadd.f32 %v1447, %v1508
        %v1530 = vadd.f32 %v1448, %v1509
        %v1531 = vadd.f32 %v1449, %v1510
        %v1532 = vadd.f32 %v1450, %v1511
        %v1533 = vadd.f32 %v1451, %v1512
        %v1534 = vadd.f32 %v1452, %v1513
        %v1535 = vadd.f32 %v1453, %v1514
        %v1536 = vadd.f32 %v1454, %v1515
        %v1537 = vadd.f32 %v1455, %v1516
        %v1538 = vadd.f32 %v1456, %v1517
        %v1539 = vadd.f32 %v1457, %v1518
        %v1540 = vadd.f32 %v1458, %v1519
        %v1541 = vadd.f32 %v1459, %v1520
        %v1542 = vadd.f32 %v1460, %v1521
        %v1543 = vadd.f32 %v1461, %v1522
        %v1544 = vadd.f32 %v1462, %v1523
        %v1545 = vadd.f32 %v1463, %v1524
        %s1546 = scalar_lea.vmem %s772, 25 [#allocation3]
        %v1547 = vld [vmem:[%s1546] ss:$8 sm:$0x7]
        %s1548 = scalar_lea.vmem %s765, 216 [#allocation2]
        %v1549 = vld [vmem:[%s1548] sm:$0xff]
        %v1550 = vld [vmem:[%s1548 + $0x8] sm:$0xff]
        %v1551 = vld [vmem:[%s1548 + $0x10] sm:$0xff]
        %v1552 = vld [vmem:[%s1548 + $0xf0] sm:$0xff]
        %v1553 = vld [vmem:[%s1548 + $0xf8] sm:$0xff]
        %v1554 = vld [vmem:[%s1548 + $0x100] sm:$0xff]
        %v1555 = vld [vmem:[%s1548 + $0x1e0] sm:$0xff]
        %v1556 = vld [vmem:[%s1548 + $0x1e8] sm:$0xff]
        %v1557 = vld [vmem:[%s1548 + $0x1f0] sm:$0xff]
        %v1558 = vld [vmem:[%s1548 + $0x2d0] sm:$0xff]
        %v1559 = vld [vmem:[%s1548 + $0x2d8] sm:$0xff]
        %v1560 = vld [vmem:[%s1548 + $0x2e0] sm:$0xff]
        %v1561 = vld [vmem:[%s1548 + $0x3c0] sm:$0xff]
        %v1562 = vld [vmem:[%s1548 + $0x3c8] sm:$0xff]
        %v1563 = vld [vmem:[%s1548 + $0x3d0] sm:$0xff]
        %v1564 = vld [vmem:[%s1548 + $0x4b0] sm:$0xff]
        %v1565 = vld [vmem:[%s1548 + $0x4b8] sm:$0xff]
        %v1566 = vld [vmem:[%s1548 + $0x4c0] sm:$0xff]
        %v1567 = vld [vmem:[%s1548 + $0x5a0] sm:$0xff]
        %v1568 = vld [vmem:[%s1548 + $0x5a8] sm:$0xff]
        %v1569 = vld [vmem:[%s1548 + $0x5b0] sm:$0xff]
        %v1571 = vlaneseq
        %v1572 = vshrl.u32 %v1571, 7
        %v1573 = vsub.s32 0, %v1572
        %v1574 = vrot.slane %v1547, %v1573
        %v1575 = vlaneseq
        %v1576 = vshrl.u32 %v1575, 7
        %v1577 = vsub.s32 1, %v1576
        %v1578 = vrot.slane %v1547, %v1577
        %v1579 = vlaneseq
        %v1580 = vshrl.u32 %v1579, 7
        %v1581 = vsub.s32 2, %v1580
        %v1582 = vrot.slane %v1547, %v1581
        %v1586 = vmul.f32 %v1549, %v1574
        %v1587 = vmul.f32 %v1550, %v1578
        %v1588 = vmul.f32 %v1551, %v1582
        %v1589 = vmul.f32 %v1552, %v1574
        %v1590 = vmul.f32 %v1553, %v1578
        %v1591 = vmul.f32 %v1554, %v1582
        %v1592 = vmul.f32 %v1555, %v1574
        %v1593 = vmul.f32 %v1556, %v1578
        %v1594 = vmul.f32 %v1557, %v1582
        %v1595 = vmul.f32 %v1558, %v1574
        %v1596 = vmul.f32 %v1559, %v1578
        %v1597 = vmul.f32 %v1560, %v1582
        %v1598 = vmul.f32 %v1561, %v1574
        %v1599 = vmul.f32 %v1562, %v1578
        %v1600 = vmul.f32 %v1563, %v1582
        %v1601 = vmul.f32 %v1564, %v1574
        %v1602 = vmul.f32 %v1565, %v1578
        %v1603 = vmul.f32 %v1566, %v1582
        %v1604 = vmul.f32 %v1567, %v1574
        %v1605 = vmul.f32 %v1568, %v1578
        %v1606 = vmul.f32 %v1569, %v1582
        %v1607 = vadd.f32 %v1525, %v1586
        %v1608 = vadd.f32 %v1526, %v1587
        %v1609 = vadd.f32 %v1527, %v1588
        %v1610 = vadd.f32 %v1528, %v1589
        %v1611 = vadd.f32 %v1529, %v1590
        %v1612 = vadd.f32 %v1530, %v1591
        %v1613 = vadd.f32 %v1531, %v1592
        %v1614 = vadd.f32 %v1532, %v1593
        %v1615 = vadd.f32 %v1533, %v1594
        %v1616 = vadd.f32 %v1534, %v1595
        %v1617 = vadd.f32 %v1535, %v1596
        %v1618 = vadd.f32 %v1536, %v1597
        %v1619 = vadd.f32 %v1537, %v1598
        %v1620 = vadd.f32 %v1538, %v1599
        %v1621 = vadd.f32 %v1539, %v1600
        %v1622 = vadd.f32 %v1540, %v1601
        %v1623 = vadd.f32 %v1541, %v1602
        %v1624 = vadd.f32 %v1542, %v1603
        %v1625 = vadd.f32 %v1543, %v1604
        %v1626 = vadd.f32 %v1544, %v1605
        %v1627 = vadd.f32 %v1545, %v1606
        %s1628 = scalar_lea.vmem %s772, 26 [#allocation3]
        %v1629 = vld [vmem:[%s1628] ss:$8 sm:$0x7]
        %s1630 = scalar_lea.vmem %s765, 240 [#allocation2]
        %v1631 = vld [vmem:[%s1630] sm:$0xff]
        %v1632 = vld [vmem:[%s1630 + $0x8] sm:$0xff]
        %v1633 = vld [vmem:[%s1630 + $0x10] sm:$0xff]
        %v1634 = vld [vmem:[%s1630 + $0xf0] sm:$0xff]
        %v1635 = vld [vmem:[%s1630 + $0xf8] sm:$0xff]
        %v1636 = vld [vmem:[%s1630 + $0x100] sm:$0xff]
        %v1637 = vld [vmem:[%s1630 + $0x1e0] sm:$0xff]
        %v1638 = vld [vmem:[%s1630 + $0x1e8] sm:$0xff]
        %v1639 = vld [vmem:[%s1630 + $0x1f0] sm:$0xff]
        %v1640 = vld [vmem:[%s1630 + $0x2d0] sm:$0xff]
        %v1641 = vld [vmem:[%s1630 + $0x2d8] sm:$0xff]
        %v1642 = vld [vmem:[%s1630 + $0x2e0] sm:$0xff]
        %v1643 = vld [vmem:[%s1630 + $0x3c0] sm:$0xff]
        %v1644 = vld [vmem:[%s1630 + $0x3c8] sm:$0xff]
        %v1645 = vld [vmem:[%s1630 + $0x3d0] sm:$0xff]
        %v1646 = vld [vmem:[%s1630 + $0x4b0] sm:$0xff]
        %v1647 = vld [vmem:[%s1630 + $0x4b8] sm:$0xff]
        %v1648 = vld [vmem:[%s1630 + $0x4c0] sm:$0xff]
        %v1649 = vld [vmem:[%s1630 + $0x5a0] sm:$0xff]
        %v1650 = vld [vmem:[%s1630 + $0x5a8] sm:$0xff]
        %v1651 = vld [vmem:[%s1630 + $0x5b0] sm:$0xff]
        %v1653 = vlaneseq
        %v1654 = vshrl.u32 %v1653, 7
        %v1655 = vsub.s32 0, %v1654
        %v1656 = vrot.slane %v1629, %v1655
        %v1657 = vlaneseq
        %v1658 = vshrl.u32 %v1657, 7
        %v1659 = vsub.s32 1, %v1658
        %v1660 = vrot.slane %v1629, %v1659
        %v1661 = vlaneseq
        %v1662 = vshrl.u32 %v1661, 7
        %v1663 = vsub.s32 2, %v1662
        %v1664 = vrot.slane %v1629, %v1663
        %v1668 = vmul.f32 %v1631, %v1656
        %v1669 = vmul.f32 %v1632, %v1660
        %v1670 = vmul.f32 %v1633, %v1664
        %v1671 = vmul.f32 %v1634, %v1656
        %v1672 = vmul.f32 %v1635, %v1660
        %v1673 = vmul.f32 %v1636, %v1664
        %v1674 = vmul.f32 %v1637, %v1656
        %v1675 = vmul.f32 %v1638, %v1660
        %v1676 = vmul.f32 %v1639, %v1664
        %v1677 = vmul.f32 %v1640, %v1656
        %v1678 = vmul.f32 %v1641, %v1660
        %v1679 = vmul.f32 %v1642, %v1664
        %v1680 = vmul.f32 %v1643, %v1656
        %v1681 = vmul.f32 %v1644, %v1660
        %v1682 = vmul.f32 %v1645, %v1664
        %v1683 = vmul.f32 %v1646, %v1656
        %v1684 = vmul.f32 %v1647, %v1660
        %v1685 = vmul.f32 %v1648, %v1664
        %v1686 = vmul.f32 %v1649, %v1656
        %v1687 = vmul.f32 %v1650, %v1660
        %v1688 = vmul.f32 %v1651, %v1664
        %v1689 = vadd.f32 %v1607, %v1668
        %v1690 = vadd.f32 %v1608, %v1669
        %v1691 = vadd.f32 %v1609, %v1670
        %v1692 = vadd.f32 %v1610, %v1671
        %v1693 = vadd.f32 %v1611, %v1672
        %v1694 = vadd.f32 %v1612, %v1673
        %v1695 = vadd.f32 %v1613, %v1674
        %v1696 = vadd.f32 %v1614, %v1675
        %v1697 = vadd.f32 %v1615, %v1676
        %v1698 = vadd.f32 %v1616, %v1677
        %v1699 = vadd.f32 %v1617, %v1678
        %v1700 = vadd.f32 %v1618, %v1679
        %v1701 = vadd.f32 %v1619, %v1680
        %v1702 = vadd.f32 %v1620, %v1681
        %v1703 = vadd.f32 %v1621, %v1682
        %v1704 = vadd.f32 %v1622, %v1683
        %v1705 = vadd.f32 %v1623, %v1684
        %v1706 = vadd.f32 %v1624, %v1685
        %v1707 = vadd.f32 %v1625, %v1686
        %v1708 = vadd.f32 %v1626, %v1687
        %v1709 = vadd.f32 %v1627, %v1688
        %s1710 = scalar_lea.vmem %s772, 27 [#allocation3]
        %v1711 = vld [vmem:[%s1710] ss:$8 sm:$0x7]
        %s1712 = scalar_lea.vmem %s765, 264 [#allocation2]
        %v1713 = vld [vmem:[%s1712] sm:$0xff]
        %v1714 = vld [vmem:[%s1712 + $0x8] sm:$0xff]
        %v1715 = vld [vmem:[%s1712 + $0x10] sm:$0xff]
        %v1716 = vld [vmem:[%s1712 + $0xf0] sm:$0xff]
        %v1717 = vld [vmem:[%s1712 + $0xf8] sm:$0xff]
        %v1718 = vld [vmem:[%s1712 + $0x100] sm:$0xff]
        %v1719 = vld [vmem:[%s1712 + $0x1e0] sm:$0xff]
        %v1720 = vld [vmem:[%s1712 + $0x1e8] sm:$0xff]
        %v1721 = vld [vmem:[%s1712 + $0x1f0] sm:$0xff]
        %v1722 = vld [vmem:[%s1712 + $0x2d0] sm:$0xff]
        %v1723 = vld [vmem:[%s1712 + $0x2d8] sm:$0xff]
        %v1724 = vld [vmem:[%s1712 + $0x2e0] sm:$0xff]
        %v1725 = vld [vmem:[%s1712 + $0x3c0] sm:$0xff]
        %v1726 = vld [vmem:[%s1712 + $0x3c8] sm:$0xff]
        %v1727 = vld [vmem:[%s1712 + $0x3d0] sm:$0xff]
        %v1728 = vld [vmem:[%s1712 + $0x4b0] sm:$0xff]
        %v1729 = vld [vmem:[%s1712 + $0x4b8] sm:$0xff]
        %v1730 = vld [vmem:[%s1712 + $0x4c0] sm:$0xff]
        %v1731 = vld [vmem:[%s1712 + $0x5a0] sm:$0xff]
        %v1732 = vld [vmem:[%s1712 + $0x5a8] sm:$0xff]
        %v1733 = vld [vmem:[%s1712 + $0x5b0] sm:$0xff]
        %v1735 = vlaneseq
        %v1736 = vshrl.u32 %v1735, 7
        %v1737 = vsub.s32 0, %v1736
        %v1738 = vrot.slane %v1711, %v1737
        %v1739 = vlaneseq
        %v1740 = vshrl.u32 %v1739, 7
        %v1741 = vsub.s32 1, %v1740
        %v1742 = vrot.slane %v1711, %v1741
        %v1743 = vlaneseq
        %v1744 = vshrl.u32 %v1743, 7
        %v1745 = vsub.s32 2, %v1744
        %v1746 = vrot.slane %v1711, %v1745
        %v1750 = vmul.f32 %v1713, %v1738
        %v1751 = vmul.f32 %v1714, %v1742
        %v1752 = vmul.f32 %v1715, %v1746
        %v1753 = vmul.f32 %v1716, %v1738
        %v1754 = vmul.f32 %v1717, %v1742
        %v1755 = vmul.f32 %v1718, %v1746
        %v1756 = vmul.f32 %v1719, %v1738
        %v1757 = vmul.f32 %v1720, %v1742
        %v1758 = vmul.f32 %v1721, %v1746
        %v1759 = vmul.f32 %v1722, %v1738
        %v1760 = vmul.f32 %v1723, %v1742
        %v1761 = vmul.f32 %v1724, %v1746
        %v1762 = vmul.f32 %v1725, %v1738
        %v1763 = vmul.f32 %v1726, %v1742
        %v1764 = vmul.f32 %v1727, %v1746
        %v1765 = vmul.f32 %v1728, %v1738
        %v1766 = vmul.f32 %v1729, %v1742
        %v1767 = vmul.f32 %v1730, %v1746
        %v1768 = vmul.f32 %v1731, %v1738
        %v1769 = vmul.f32 %v1732, %v1742
        %v1770 = vmul.f32 %v1733, %v1746
        %v1771 = vadd.f32 %v1689, %v1750
        %v1772 = vadd.f32 %v1690, %v1751
        %v1773 = vadd.f32 %v1691, %v1752
        %v1774 = vadd.f32 %v1692, %v1753
        %v1775 = vadd.f32 %v1693, %v1754
        %v1776 = vadd.f32 %v1694, %v1755
        %v1777 = vadd.f32 %v1695, %v1756
        %v1778 = vadd.f32 %v1696, %v1757
        %v1779 = vadd.f32 %v1697, %v1758
        %v1780 = vadd.f32 %v1698, %v1759
        %v1781 = vadd.f32 %v1699, %v1760
        %v1782 = vadd.f32 %v1700, %v1761
        %v1783 = vadd.f32 %v1701, %v1762
        %v1784 = vadd.f32 %v1702, %v1763
        %v1785 = vadd.f32 %v1703, %v1764
        %v1786 = vadd.f32 %v1704, %v1765
        %v1787 = vadd.f32 %v1705, %v1766
        %v1788 = vadd.f32 %v1706, %v1767
        %v1789 = vadd.f32 %v1707, %v1768
        %v1790 = vadd.f32 %v1708, %v1769
        %v1791 = vadd.f32 %v1709, %v1770
        %s1792 = scalar_lea.vmem %s772, 28 [#allocation3]
        %v1793 = vld [vmem:[%s1792] ss:$8 sm:$0x7]
        %s1794 = scalar_lea.vmem %s765, 288 [#allocation2]
        %v1795 = vld [vmem:[%s1794] sm:$0xff]
        %v1796 = vld [vmem:[%s1794 + $0x8] sm:$0xff]
        %v1797 = vld [vmem:[%s1794 + $0x10] sm:$0xff]
        %v1798 = vld [vmem:[%s1794 + $0xf0] sm:$0xff]
        %v1799 = vld [vmem:[%s1794 + $0xf8] sm:$0xff]
        %v1800 = vld [vmem:[%s1794 + $0x100] sm:$0xff]
        %v1801 = vld [vmem:[%s1794 + $0x1e0] sm:$0xff]
        %v1802 = vld [vmem:[%s1794 + $0x1e8] sm:$0xff]
        %v1803 = vld [vmem:[%s1794 + $0x1f0] sm:$0xff]
        %v1804 = vld [vmem:[%s1794 + $0x2d0] sm:$0xff]
        %v1805 = vld [vmem:[%s1794 + $0x2d8] sm:$0xff]
        %v1806 = vld [vmem:[%s1794 + $0x2e0] sm:$0xff]
        %v1807 = vld [vmem:[%s1794 + $0x3c0] sm:$0xff]
        %v1808 = vld [vmem:[%s1794 + $0x3c8] sm:$0xff]
        %v1809 = vld [vmem:[%s1794 + $0x3d0] sm:$0xff]
        %v1810 = vld [vmem:[%s1794 + $0x4b0] sm:$0xff]
        %v1811 = vld [vmem:[%s1794 + $0x4b8] sm:$0xff]
        %v1812 = vld [vmem:[%s1794 + $0x4c0] sm:$0xff]
        %v1813 = vld [vmem:[%s1794 + $0x5a0] sm:$0xff]
        %v1814 = vld [vmem:[%s1794 + $0x5a8] sm:$0xff]
        %v1815 = vld [vmem:[%s1794 + $0x5b0] sm:$0xff]
        %v1817 = vlaneseq
        %v1818 = vshrl.u32 %v1817, 7
        %v1819 = vsub.s32 0, %v1818
        %v1820 = vrot.slane %v1793, %v1819
        %v1821 = vlaneseq
        %v1822 = vshrl.u32 %v1821, 7
        %v1823 = vsub.s32 1, %v1822
        %v1824 = vrot.slane %v1793, %v1823
        %v1825 = vlaneseq
        %v1826 = vshrl.u32 %v1825, 7
        %v1827 = vsub.s32 2, %v1826
        %v1828 = vrot.slane %v1793, %v1827
        %v1832 = vmul.f32 %v1795, %v1820
        %v1833 = vmul.f32 %v1796, %v1824
        %v1834 = vmul.f32 %v1797, %v1828
        %v1835 = vmul.f32 %v1798, %v1820
        %v1836 = vmul.f32 %v1799, %v1824
        %v1837 = vmul.f32 %v1800, %v1828
        %v1838 = vmul.f32 %v1801, %v1820
        %v1839 = vmul.f32 %v1802, %v1824
        %v1840 = vmul.f32 %v1803, %v1828
        %v1841 = vmul.f32 %v1804, %v1820
        %v1842 = vmul.f32 %v1805, %v1824
        %v1843 = vmul.f32 %v1806, %v1828
        %v1844 = vmul.f32 %v1807, %v1820
        %v1845 = vmul.f32 %v1808, %v1824
        %v1846 = vmul.f32 %v1809, %v1828
        %v1847 = vmul.f32 %v1810, %v1820
        %v1848 = vmul.f32 %v1811, %v1824
        %v1849 = vmul.f32 %v1812, %v1828
        %v1850 = vmul.f32 %v1813, %v1820
        %v1851 = vmul.f32 %v1814, %v1824
        %v1852 = vmul.f32 %v1815, %v1828
        %v1853 = vadd.f32 %v1771, %v1832
        %v1854 = vadd.f32 %v1772, %v1833
        %v1855 = vadd.f32 %v1773, %v1834
        %v1856 = vadd.f32 %v1774, %v1835
        %v1857 = vadd.f32 %v1775, %v1836
        %v1858 = vadd.f32 %v1776, %v1837
        %v1859 = vadd.f32 %v1777, %v1838
        %v1860 = vadd.f32 %v1778, %v1839
        %v1861 = vadd.f32 %v1779, %v1840
        %v1862 = vadd.f32 %v1780, %v1841
        %v1863 = vadd.f32 %v1781, %v1842
        %v1864 = vadd.f32 %v1782, %v1843
        %v1865 = vadd.f32 %v1783, %v1844
        %v1866 = vadd.f32 %v1784, %v1845
        %v1867 = vadd.f32 %v1785, %v1846
        %v1868 = vadd.f32 %v1786, %v1847
        %v1869 = vadd.f32 %v1787, %v1848
        %v1870 = vadd.f32 %v1788, %v1849
        %v1871 = vadd.f32 %v1789, %v1850
        %v1872 = vadd.f32 %v1790, %v1851
        %v1873 = vadd.f32 %v1791, %v1852
        %s1874 = scalar_lea.vmem %s772, 29 [#allocation3]
        %v1875 = vld [vmem:[%s1874] ss:$8 sm:$0x7]
        %s1876 = scalar_lea.vmem %s765, 312 [#allocation2]
        %v1877 = vld [vmem:[%s1876] sm:$0xff]
        %v1878 = vld [vmem:[%s1876 + $0x8] sm:$0xff]
        %v1879 = vld [vmem:[%s1876 + $0x10] sm:$0xff]
        %v1880 = vld [vmem:[%s1876 + $0xf0] sm:$0xff]
        %v1881 = vld [vmem:[%s1876 + $0xf8] sm:$0xff]
        %v1882 = vld [vmem:[%s1876 + $0x100] sm:$0xff]
        %v1883 = vld [vmem:[%s1876 + $0x1e0] sm:$0xff]
        %v1884 = vld [vmem:[%s1876 + $0x1e8] sm:$0xff]
        %v1885 = vld [vmem:[%s1876 + $0x1f0] sm:$0xff]
        %v1886 = vld [vmem:[%s1876 + $0x2d0] sm:$0xff]
        %v1887 = vld [vmem:[%s1876 + $0x2d8] sm:$0xff]
        %v1888 = vld [vmem:[%s1876 + $0x2e0] sm:$0xff]
        %v1889 = vld [vmem:[%s1876 + $0x3c0] sm:$0xff]
        %v1890 = vld [vmem:[%s1876 + $0x3c8] sm:$0xff]
        %v1891 = vld [vmem:[%s1876 + $0x3d0] sm:$0xff]
        %v1892 = vld [vmem:[%s1876 + $0x4b0] sm:$0xff]
        %v1893 = vld [vmem:[%s1876 + $0x4b8] sm:$0xff]
        %v1894 = vld [vmem:[%s1876 + $0x4c0] sm:$0xff]
        %v1895 = vld [vmem:[%s1876 + $0x5a0] sm:$0xff]
        %v1896 = vld [vmem:[%s1876 + $0x5a8] sm:$0xff]
        %v1897 = vld [vmem:[%s1876 + $0x5b0] sm:$0xff]
        %v1899 = vlaneseq
        %v1900 = vshrl.u32 %v1899, 7
        %v1901 = vsub.s32 0, %v1900
        %v1902 = vrot.slane %v1875, %v1901
        %v1903 = vlaneseq
        %v1904 = vshrl.u32 %v1903, 7
        %v1905 = vsub.s32 1, %v1904
        %v1906 = vrot.slane %v1875, %v1905
        %v1907 = vlaneseq
        %v1908 = vshrl.u32 %v1907, 7
        %v1909 = vsub.s32 2, %v1908
        %v1910 = vrot.slane %v1875, %v1909
        %v1914 = vmul.f32 %v1877, %v1902
        %v1915 = vmul.f32 %v1878, %v1906
        %v1916 = vmul.f32 %v1879, %v1910
        %v1917 = vmul.f32 %v1880, %v1902
        %v1918 = vmul.f32 %v1881, %v1906
        %v1919 = vmul.f32 %v1882, %v1910
        %v1920 = vmul.f32 %v1883, %v1902
        %v1921 = vmul.f32 %v1884, %v1906
        %v1922 = vmul.f32 %v1885, %v1910
        %v1923 = vmul.f32 %v1886, %v1902
        %v1924 = vmul.f32 %v1887, %v1906
        %v1925 = vmul.f32 %v1888, %v1910
        %v1926 = vmul.f32 %v1889, %v1902
        %v1927 = vmul.f32 %v1890, %v1906
        %v1928 = vmul.f32 %v1891, %v1910
        %v1929 = vmul.f32 %v1892, %v1902
        %v1930 = vmul.f32 %v1893, %v1906
        %v1931 = vmul.f32 %v1894, %v1910
        %v1932 = vmul.f32 %v1895, %v1902
        %v1933 = vmul.f32 %v1896, %v1906
        %v1934 = vmul.f32 %v1897, %v1910
        %v1935 = vadd.f32 %v1853, %v1914
        %v1936 = vadd.f32 %v1854, %v1915
        %v1937 = vadd.f32 %v1855, %v1916
        %v1938 = vadd.f32 %v1856, %v1917
        %v1939 = vadd.f32 %v1857, %v1918
        %v1940 = vadd.f32 %v1858, %v1919
        %v1941 = vadd.f32 %v1859, %v1920
        %v1942 = vadd.f32 %v1860, %v1921
        %v1943 = vadd.f32 %v1861, %v1922
        %v1944 = vadd.f32 %v1862, %v1923
        %v1945 = vadd.f32 %v1863, %v1924
        %v1946 = vadd.f32 %v1864, %v1925
        %v1947 = vadd.f32 %v1865, %v1926
        %v1948 = vadd.f32 %v1866, %v1927
        %v1949 = vadd.f32 %v1867, %v1928
        %v1950 = vadd.f32 %v1868, %v1929
        %v1951 = vadd.f32 %v1869, %v1930
        %v1952 = vadd.f32 %v1870, %v1931
        %v1953 = vadd.f32 %v1871, %v1932
        %v1954 = vadd.f32 %v1872, %v1933
        %v1955 = vadd.f32 %v1873, %v1934
        %s1956 = scalar_lea.vmem %s772, 30 [#allocation3]
        %v1957 = vld [vmem:[%s1956] ss:$8 sm:$0x7]
        %s1958 = scalar_lea.vmem %s765, 336 [#allocation2]
        %v1959 = vld [vmem:[%s1958] sm:$0xff]
        %v1960 = vld [vmem:[%s1958 + $0x8] sm:$0xff]
        %v1961 = vld [vmem:[%s1958 + $0x10] sm:$0xff]
        %v1962 = vld [vmem:[%s1958 + $0xf0] sm:$0xff]
        %v1963 = vld [vmem:[%s1958 + $0xf8] sm:$0xff]
        %v1964 = vld [vmem:[%s1958 + $0x100] sm:$0xff]
        %v1965 = vld [vmem:[%s1958 + $0x1e0] sm:$0xff]
        %v1966 = vld [vmem:[%s1958 + $0x1e8] sm:$0xff]
        %v1967 = vld [vmem:[%s1958 + $0x1f0] sm:$0xff]
        %v1968 = vld [vmem:[%s1958 + $0x2d0] sm:$0xff]
        %v1969 = vld [vmem:[%s1958 + $0x2d8] sm:$0xff]
        %v1970 = vld [vmem:[%s1958 + $0x2e0] sm:$0xff]
        %v1971 = vld [vmem:[%s1958 + $0x3c0] sm:$0xff]
        %v1972 = vld [vmem:[%s1958 + $0x3c8] sm:$0xff]
        %v1973 = vld [vmem:[%s1958 + $0x3d0] sm:$0xff]
        %v1974 = vld [vmem:[%s1958 + $0x4b0] sm:$0xff]
        %v1975 = vld [vmem:[%s1958 + $0x4b8] sm:$0xff]
        %v1976 = vld [vmem:[%s1958 + $0x4c0] sm:$0xff]
        %v1977 = vld [vmem:[%s1958 + $0x5a0] sm:$0xff]
        %v1978 = vld [vmem:[%s1958 + $0x5a8] sm:$0xff]
        %v1979 = vld [vmem:[%s1958 + $0x5b0] sm:$0xff]
        %v1981 = vlaneseq
        %v1982 = vshrl.u32 %v1981, 7
        %v1983 = vsub.s32 0, %v1982
        %v1984 = vrot.slane %v1957, %v1983
        %v1985 = vlaneseq
        %v1986 = vshrl.u32 %v1985, 7
        %v1987 = vsub.s32 1, %v1986
        %v1988 = vrot.slane %v1957, %v1987
        %v1989 = vlaneseq
        %v1990 = vshrl.u32 %v1989, 7
        %v1991 = vsub.s32 2, %v1990
        %v1992 = vrot.slane %v1957, %v1991
        %v1996 = vmul.f32 %v1959, %v1984
        %v1997 = vmul.f32 %v1960, %v1988
        %v1998 = vmul.f32 %v1961, %v1992
        %v1999 = vmul.f32 %v1962, %v1984
        %v2000 = vmul.f32 %v1963, %v1988
        %v2001 = vmul.f32 %v1964, %v1992
        %v2002 = vmul.f32 %v1965, %v1984
        %v2003 = vmul.f32 %v1966, %v1988
        %v2004 = vmul.f32 %v1967, %v1992
        %v2005 = vmul.f32 %v1968, %v1984
        %v2006 = vmul.f32 %v1969, %v1988
        %v2007 = vmul.f32 %v1970, %v1992
        %v2008 = vmul.f32 %v1971, %v1984
        %v2009 = vmul.f32 %v1972, %v1988
        %v2010 = vmul.f32 %v1973, %v1992
        %v2011 = vmul.f32 %v1974, %v1984
        %v2012 = vmul.f32 %v1975, %v1988
        %v2013 = vmul.f32 %v1976, %v1992
        %v2014 = vmul.f32 %v1977, %v1984
        %v2015 = vmul.f32 %v1978, %v1988
        %v2016 = vmul.f32 %v1979, %v1992
        %v2017 = vadd.f32 %v1935, %v1996
        %v2018 = vadd.f32 %v1936, %v1997
        %v2019 = vadd.f32 %v1937, %v1998
        %v2020 = vadd.f32 %v1938, %v1999
        %v2021 = vadd.f32 %v1939, %v2000
        %v2022 = vadd.f32 %v1940, %v2001
        %v2023 = vadd.f32 %v1941, %v2002
        %v2024 = vadd.f32 %v1942, %v2003
        %v2025 = vadd.f32 %v1943, %v2004
        %v2026 = vadd.f32 %v1944, %v2005
        %v2027 = vadd.f32 %v1945, %v2006
        %v2028 = vadd.f32 %v1946, %v2007
        %v2029 = vadd.f32 %v1947, %v2008
        %v2030 = vadd.f32 %v1948, %v2009
        %v2031 = vadd.f32 %v1949, %v2010
        %v2032 = vadd.f32 %v1950, %v2011
        %v2033 = vadd.f32 %v1951, %v2012
        %v2034 = vadd.f32 %v1952, %v2013
        %v2035 = vadd.f32 %v1953, %v2014
        %v2036 = vadd.f32 %v1954, %v2015
        %v2037 = vadd.f32 %v1955, %v2016
        %s2038 = scalar_lea.vmem %s772, 31 [#allocation3]
        %v2039 = vld [vmem:[%s2038] ss:$8 sm:$0x7]
        %s2040 = scalar_lea.vmem %s765, 360 [#allocation2]
        %v2041 = vld [vmem:[%s2040] sm:$0xff]
        %v2042 = vld [vmem:[%s2040 + $0x8] sm:$0xff]
        %v2043 = vld [vmem:[%s2040 + $0x10] sm:$0xff]
        %v2044 = vld [vmem:[%s2040 + $0xf0] sm:$0xff]
        %v2045 = vld [vmem:[%s2040 + $0xf8] sm:$0xff]
        %v2046 = vld [vmem:[%s2040 + $0x100] sm:$0xff]
        %v2047 = vld [vmem:[%s2040 + $0x1e0] sm:$0xff]
        %v2048 = vld [vmem:[%s2040 + $0x1e8] sm:$0xff]
        %v2049 = vld [vmem:[%s2040 + $0x1f0] sm:$0xff]
        %v2050 = vld [vmem:[%s2040 + $0x2d0] sm:$0xff]
        %v2051 = vld [vmem:[%s2040 + $0x2d8] sm:$0xff]
        %v2052 = vld [vmem:[%s2040 + $0x2e0] sm:$0xff]
        %v2053 = vld [vmem:[%s2040 + $0x3c0] sm:$0xff]
        %v2054 = vld [vmem:[%s2040 + $0x3c8] sm:$0xff]
        %v2055 = vld [vmem:[%s2040 + $0x3d0] sm:$0xff]
        %v2056 = vld [vmem:[%s2040 + $0x4b0] sm:$0xff]
        %v2057 = vld [vmem:[%s2040 + $0x4b8] sm:$0xff]
        %v2058 = vld [vmem:[%s2040 + $0x4c0] sm:$0xff]
        %v2059 = vld [vmem:[%s2040 + $0x5a0] sm:$0xff]
        %v2060 = vld [vmem:[%s2040 + $0x5a8] sm:$0xff]
        %v2061 = vld [vmem:[%s2040 + $0x5b0] sm:$0xff]
        %v2063 = vlaneseq
        %v2064 = vshrl.u32 %v2063, 7
        %v2065 = vsub.s32 0, %v2064
        %v2066 = vrot.slane %v2039, %v2065
        %v2067 = vlaneseq
        %v2068 = vshrl.u32 %v2067, 7
        %v2069 = vsub.s32 1, %v2068
        %v2070 = vrot.slane %v2039, %v2069
        %v2071 = vlaneseq
        %v2072 = vshrl.u32 %v2071, 7
        %v2073 = vsub.s32 2, %v2072
        %v2074 = vrot.slane %v2039, %v2073
        %v2078 = vmul.f32 %v2041, %v2066
        %v2079 = vmul.f32 %v2042, %v2070
        %v2080 = vmul.f32 %v2043, %v2074
        %v2081 = vmul.f32 %v2044, %v2066
        %v2082 = vmul.f32 %v2045, %v2070
        %v2083 = vmul.f32 %v2046, %v2074
        %v2084 = vmul.f32 %v2047, %v2066
        %v2085 = vmul.f32 %v2048, %v2070
        %v2086 = vmul.f32 %v2049, %v2074
        %v2087 = vmul.f32 %v2050, %v2066
        %v2088 = vmul.f32 %v2051, %v2070
        %v2089 = vmul.f32 %v2052, %v2074
        %v2090 = vmul.f32 %v2053, %v2066
        %v2091 = vmul.f32 %v2054, %v2070
        %v2092 = vmul.f32 %v2055, %v2074
        %v2093 = vmul.f32 %v2056, %v2066
        %v2094 = vmul.f32 %v2057, %v2070
        %v2095 = vmul.f32 %v2058, %v2074
        %v2096 = vmul.f32 %v2059, %v2066
        %v2097 = vmul.f32 %v2060, %v2070
        %v2098 = vmul.f32 %v2061, %v2074
        %v2099 = vadd.f32 %v2017, %v2078
        %v2100 = vadd.f32 %v2018, %v2079
        %v2101 = vadd.f32 %v2019, %v2080
        %v2102 = vadd.f32 %v2020, %v2081
        %v2103 = vadd.f32 %v2021, %v2082
        %v2104 = vadd.f32 %v2022, %v2083
        %v2105 = vadd.f32 %v2023, %v2084
        %v2106 = vadd.f32 %v2024, %v2085
        %v2107 = vadd.f32 %v2025, %v2086
        %v2108 = vadd.f32 %v2026, %v2087
        %v2109 = vadd.f32 %v2027, %v2088
        %v2110 = vadd.f32 %v2028, %v2089
        %v2111 = vadd.f32 %v2029, %v2090
        %v2112 = vadd.f32 %v2030, %v2091
        %v2113 = vadd.f32 %v2031, %v2092
        %v2114 = vadd.f32 %v2032, %v2093
        %v2115 = vadd.f32 %v2033, %v2094
        %v2116 = vadd.f32 %v2034, %v2095
        %v2117 = vadd.f32 %v2035, %v2096
        %v2118 = vadd.f32 %v2036, %v2097
        %v2119 = vadd.f32 %v2037, %v2098
        %s2120 = scalar_lea.vmem %s772, 48 [#allocation3]
        %v2121 = vld [vmem:[%s2120] ss:$8 sm:$0x7]
        %s2122 = scalar_lea.vmem %s765, 384 [#allocation2]
        %v2123 = vld [vmem:[%s2122] sm:$0xff]
        %v2124 = vld [vmem:[%s2122 + $0x8] sm:$0xff]
        %v2125 = vld [vmem:[%s2122 + $0x10] sm:$0xff]
        %v2126 = vld [vmem:[%s2122 + $0xf0] sm:$0xff]
        %v2127 = vld [vmem:[%s2122 + $0xf8] sm:$0xff]
        %v2128 = vld [vmem:[%s2122 + $0x100] sm:$0xff]
        %v2129 = vld [vmem:[%s2122 + $0x1e0] sm:$0xff]
        %v2130 = vld [vmem:[%s2122 + $0x1e8] sm:$0xff]
        %v2131 = vld [vmem:[%s2122 + $0x1f0] sm:$0xff]
        %v2132 = vld [vmem:[%s2122 + $0x2d0] sm:$0xff]
        %v2133 = vld [vmem:[%s2122 + $0x2d8] sm:$0xff]
        %v2134 = vld [vmem:[%s2122 + $0x2e0] sm:$0xff]
        %v2135 = vld [vmem:[%s2122 + $0x3c0] sm:$0xff]
        %v2136 = vld [vmem:[%s2122 + $0x3c8] sm:$0xff]
        %v2137 = vld [vmem:[%s2122 + $0x3d0] sm:$0xff]
        %v2138 = vld [vmem:[%s2122 + $0x4b0] sm:$0xff]
        %v2139 = vld [vmem:[%s2122 + $0x4b8] sm:$0xff]
        %v2140 = vld [vmem:[%s2122 + $0x4c0] sm:$0xff]
        %v2141 = vld [vmem:[%s2122 + $0x5a0] sm:$0xff]
        %v2142 = vld [vmem:[%s2122 + $0x5a8] sm:$0xff]
        %v2143 = vld [vmem:[%s2122 + $0x5b0] sm:$0xff]
        %v2145 = vlaneseq
        %v2146 = vshrl.u32 %v2145, 7
        %v2147 = vsub.s32 0, %v2146
        %v2148 = vrot.slane %v2121, %v2147
        %v2149 = vlaneseq
        %v2150 = vshrl.u32 %v2149, 7
        %v2151 = vsub.s32 1, %v2150
        %v2152 = vrot.slane %v2121, %v2151
        %v2153 = vlaneseq
        %v2154 = vshrl.u32 %v2153, 7
        %v2155 = vsub.s32 2, %v2154
        %v2156 = vrot.slane %v2121, %v2155
        %v2160 = vmul.f32 %v2123, %v2148
        %v2161 = vmul.f32 %v2124, %v2152
        %v2162 = vmul.f32 %v2125, %v2156
        %v2163 = vmul.f32 %v2126, %v2148
        %v2164 = vmul.f32 %v2127, %v2152
        %v2165 = vmul.f32 %v2128, %v2156
        %v2166 = vmul.f32 %v2129, %v2148
        %v2167 = vmul.f32 %v2130, %v2152
        %v2168 = vmul.f32 %v2131, %v2156
        %v2169 = vmul.f32 %v2132, %v2148
        %v2170 = vmul.f32 %v2133, %v2152
        %v2171 = vmul.f32 %v2134, %v2156
        %v2172 = vmul.f32 %v2135, %v2148
        %v2173 = vmul.f32 %v2136, %v2152
        %v2174 = vmul.f32 %v2137, %v2156
        %v2175 = vmul.f32 %v2138, %v2148
        %v2176 = vmul.f32 %v2139, %v2152
        %v2177 = vmul.f32 %v2140, %v2156
        %v2178 = vmul.f32 %v2141, %v2148
        %v2179 = vmul.f32 %v2142, %v2152
        %v2180 = vmul.f32 %v2143, %v2156
        %v2181 = vadd.f32 %v2099, %v2160
        %v2182 = vadd.f32 %v2100, %v2161
        %v2183 = vadd.f32 %v2101, %v2162
        %v2184 = vadd.f32 %v2102, %v2163
        %v2185 = vadd.f32 %v2103, %v2164
        %v2186 = vadd.f32 %v2104, %v2165
        %v2187 = vadd.f32 %v2105, %v2166
        %v2188 = vadd.f32 %v2106, %v2167
        %v2189 = vadd.f32 %v2107, %v2168
        %v2190 = vadd.f32 %v2108, %v2169
        %v2191 = vadd.f32 %v2109, %v2170
        %v2192 = vadd.f32 %v2110, %v2171
        %v2193 = vadd.f32 %v2111, %v2172
        %v2194 = vadd.f32 %v2112, %v2173
        %v2195 = vadd.f32 %v2113, %v2174
        %v2196 = vadd.f32 %v2114, %v2175
        %v2197 = vadd.f32 %v2115, %v2176
        %v2198 = vadd.f32 %v2116, %v2177
        %v2199 = vadd.f32 %v2117, %v2178
        %v2200 = vadd.f32 %v2118, %v2179
        %v2201 = vadd.f32 %v2119, %v2180
        %s2202 = scalar_lea.vmem %s772, 49 [#allocation3]
        %v2203 = vld [vmem:[%s2202] ss:$8 sm:$0x7]
        %s2204 = scalar_lea.vmem %s765, 408 [#allocation2]
        %v2205 = vld [vmem:[%s2204] sm:$0xff]
        %v2206 = vld [vmem:[%s2204 + $0x8] sm:$0xff]
        %v2207 = vld [vmem:[%s2204 + $0x10] sm:$0xff]
        %v2208 = vld [vmem:[%s2204 + $0xf0] sm:$0xff]
        %v2209 = vld [vmem:[%s2204 + $0xf8] sm:$0xff]
        %v2210 = vld [vmem:[%s2204 + $0x100] sm:$0xff]
        %v2211 = vld [vmem:[%s2204 + $0x1e0] sm:$0xff]
        %v2212 = vld [vmem:[%s2204 + $0x1e8] sm:$0xff]
        %v2213 = vld [vmem:[%s2204 + $0x1f0] sm:$0xff]
        %v2214 = vld [vmem:[%s2204 + $0x2d0] sm:$0xff]
        %v2215 = vld [vmem:[%s2204 + $0x2d8] sm:$0xff]
        %v2216 = vld [vmem:[%s2204 + $0x2e0] sm:$0xff]
        %v2217 = vld [vmem:[%s2204 + $0x3c0] sm:$0xff]
        %v2218 = vld [vmem:[%s2204 + $0x3c8] sm:$0xff]
        %v2219 = vld [vmem:[%s2204 + $0x3d0] sm:$0xff]
        %v2220 = vld [vmem:[%s2204 + $0x4b0] sm:$0xff]
        %v2221 = vld [vmem:[%s2204 + $0x4b8] sm:$0xff]
        %v2222 = vld [vmem:[%s2204 + $0x4c0] sm:$0xff]
        %v2223 = vld [vmem:[%s2204 + $0x5a0] sm:$0xff]
        %v2224 = vld [vmem:[%s2204 + $0x5a8] sm:$0xff]
        %v2225 = vld [vmem:[%s2204 + $0x5b0] sm:$0xff]
        %v2227 = vlaneseq
        %v2228 = vshrl.u32 %v2227, 7
        %v2229 = vsub.s32 0, %v2228
        %v2230 = vrot.slane %v2203, %v2229
        %v2231 = vlaneseq
        %v2232 = vshrl.u32 %v2231, 7
        %v2233 = vsub.s32 1, %v2232
        %v2234 = vrot.slane %v2203, %v2233
        %v2235 = vlaneseq
        %v2236 = vshrl.u32 %v2235, 7
        %v2237 = vsub.s32 2, %v2236
        %v2238 = vrot.slane %v2203, %v2237
        %v2242 = vmul.f32 %v2205, %v2230
        %v2243 = vmul.f32 %v2206, %v2234
        %v2244 = vmul.f32 %v2207, %v2238
        %v2245 = vmul.f32 %v2208, %v2230
        %v2246 = vmul.f32 %v2209, %v2234
        %v2247 = vmul.f32 %v2210, %v2238
        %v2248 = vmul.f32 %v2211, %v2230
        %v2249 = vmul.f32 %v2212, %v2234
        %v2250 = vmul.f32 %v2213, %v2238
        %v2251 = vmul.f32 %v2214, %v2230
        %v2252 = vmul.f32 %v2215, %v2234
        %v2253 = vmul.f32 %v2216, %v2238
        %v2254 = vmul.f32 %v2217, %v2230
        %v2255 = vmul.f32 %v2218, %v2234
        %v2256 = vmul.f32 %v2219, %v2238
        %v2257 = vmul.f32 %v2220, %v2230
        %v2258 = vmul.f32 %v2221, %v2234
        %v2259 = vmul.f32 %v2222, %v2238
        %v2260 = vmul.f32 %v2223, %v2230
        %v2261 = vmul.f32 %v2224, %v2234
        %v2262 = vmul.f32 %v2225, %v2238
        %v2263 = vadd.f32 %v2181, %v2242
        %v2264 = vadd.f32 %v2182, %v2243
        %v2265 = vadd.f32 %v2183, %v2244
        %v2266 = vadd.f32 %v2184, %v2245
        %v2267 = vadd.f32 %v2185, %v2246
        %v2268 = vadd.f32 %v2186, %v2247
        %v2269 = vadd.f32 %v2187, %v2248
        %v2270 = vadd.f32 %v2188, %v2249
        %v2271 = vadd.f32 %v2189, %v2250
        %v2272 = vadd.f32 %v2190, %v2251
        %v2273 = vadd.f32 %v2191, %v2252
        %v2274 = vadd.f32 %v2192, %v2253
        %v2275 = vadd.f32 %v2193, %v2254
        %v2276 = vadd.f32 %v2194, %v2255
        %v2277 = vadd.f32 %v2195, %v2256
        %v2278 = vadd.f32 %v2196, %v2257
        %v2279 = vadd.f32 %v2197, %v2258
        %v2280 = vadd.f32 %v2198, %v2259
        %v2281 = vadd.f32 %v2199, %v2260
        %v2282 = vadd.f32 %v2200, %v2261
        %v2283 = vadd.f32 %v2201, %v2262
        %s2284 = scalar_lea.vmem %s772, 50 [#allocation3]
        %v2285 = vld [vmem:[%s2284] ss:$8 sm:$0x7]
        %s2286 = scalar_lea.vmem %s765, 432 [#allocation2]
        %v2287 = vld [vmem:[%s2286] sm:$0xff]
        %v2288 = vld [vmem:[%s2286 + $0x8] sm:$0xff]
        %v2289 = vld [vmem:[%s2286 + $0x10] sm:$0xff]
        %v2290 = vld [vmem:[%s2286 + $0xf0] sm:$0xff]
        %v2291 = vld [vmem:[%s2286 + $0xf8] sm:$0xff]
        %v2292 = vld [vmem:[%s2286 + $0x100] sm:$0xff]
        %v2293 = vld [vmem:[%s2286 + $0x1e0] sm:$0xff]
        %v2294 = vld [vmem:[%s2286 + $0x1e8] sm:$0xff]
        %v2295 = vld [vmem:[%s2286 + $0x1f0] sm:$0xff]
        %v2296 = vld [vmem:[%s2286 + $0x2d0] sm:$0xff]
        %v2297 = vld [vmem:[%s2286 + $0x2d8] sm:$0xff]
        %v2298 = vld [vmem:[%s2286 + $0x2e0] sm:$0xff]
        %v2299 = vld [vmem:[%s2286 + $0x3c0] sm:$0xff]
        %v2300 = vld [vmem:[%s2286 + $0x3c8] sm:$0xff]
        %v2301 = vld [vmem:[%s2286 + $0x3d0] sm:$0xff]
        %v2302 = vld [vmem:[%s2286 + $0x4b0] sm:$0xff]
        %v2303 = vld [vmem:[%s2286 + $0x4b8] sm:$0xff]
        %v2304 = vld [vmem:[%s2286 + $0x4c0] sm:$0xff]
        %v2305 = vld [vmem:[%s2286 + $0x5a0] sm:$0xff]
        %v2306 = vld [vmem:[%s2286 + $0x5a8] sm:$0xff]
        %v2307 = vld [vmem:[%s2286 + $0x5b0] sm:$0xff]
        %v2309 = vlaneseq
        %v2310 = vshrl.u32 %v2309, 7
        %v2311 = vsub.s32 0, %v2310
        %v2312 = vrot.slane %v2285, %v2311
        %v2313 = vlaneseq
        %v2314 = vshrl.u32 %v2313, 7
        %v2315 = vsub.s32 1, %v2314
        %v2316 = vrot.slane %v2285, %v2315
        %v2317 = vlaneseq
        %v2318 = vshrl.u32 %v2317, 7
        %v2319 = vsub.s32 2, %v2318
        %v2320 = vrot.slane %v2285, %v2319
        %v2324 = vmul.f32 %v2287, %v2312
        %v2325 = vmul.f32 %v2288, %v2316
        %v2326 = vmul.f32 %v2289, %v2320
        %v2327 = vmul.f32 %v2290, %v2312
        %v2328 = vmul.f32 %v2291, %v2316
        %v2329 = vmul.f32 %v2292, %v2320
        %v2330 = vmul.f32 %v2293, %v2312
        %v2331 = vmul.f32 %v2294, %v2316
        %v2332 = vmul.f32 %v2295, %v2320
        %v2333 = vmul.f32 %v2296, %v2312
        %v2334 = vmul.f32 %v2297, %v2316
        %v2335 = vmul.f32 %v2298, %v2320
        %v2336 = vmul.f32 %v2299, %v2312
        %v2337 = vmul.f32 %v2300, %v2316
        %v2338 = vmul.f32 %v2301, %v2320
        %v2339 = vmul.f32 %v2302, %v2312
        %v2340 = vmul.f32 %v2303, %v2316
        %v2341 = vmul.f32 %v2304, %v2320
        %v2342 = vmul.f32 %v2305, %v2312
        %v2343 = vmul.f32 %v2306, %v2316
        %v2344 = vmul.f32 %v2307, %v2320
        %v2345 = vadd.f32 %v2263, %v2324
        %v2346 = vadd.f32 %v2264, %v2325
        %v2347 = vadd.f32 %v2265, %v2326
        %v2348 = vadd.f32 %v2266, %v2327
        %v2349 = vadd.f32 %v2267, %v2328
        %v2350 = vadd.f32 %v2268, %v2329
        %v2351 = vadd.f32 %v2269, %v2330
        %v2352 = vadd.f32 %v2270, %v2331
        %v2353 = vadd.f32 %v2271, %v2332
        %v2354 = vadd.f32 %v2272, %v2333
        %v2355 = vadd.f32 %v2273, %v2334
        %v2356 = vadd.f32 %v2274, %v2335
        %v2357 = vadd.f32 %v2275, %v2336
        %v2358 = vadd.f32 %v2276, %v2337
        %v2359 = vadd.f32 %v2277, %v2338
        %v2360 = vadd.f32 %v2278, %v2339
        %v2361 = vadd.f32 %v2279, %v2340
        %v2362 = vadd.f32 %v2280, %v2341
        %v2363 = vadd.f32 %v2281, %v2342
        %v2364 = vadd.f32 %v2282, %v2343
        %v2365 = vadd.f32 %v2283, %v2344
        %s2366 = scalar_lea.vmem %s772, 51 [#allocation3]
        %v2367 = vld [vmem:[%s2366] ss:$8 sm:$0x7]
        %s2368 = scalar_lea.vmem %s765, 456 [#allocation2]
        %v2369 = vld [vmem:[%s2368] sm:$0xff]
        %v2370 = vld [vmem:[%s2368 + $0x8] sm:$0xff]
        %v2371 = vld [vmem:[%s2368 + $0x10] sm:$0xff]
        %v2372 = vld [vmem:[%s2368 + $0xf0] sm:$0xff]
        %v2373 = vld [vmem:[%s2368 + $0xf8] sm:$0xff]
        %v2374 = vld [vmem:[%s2368 + $0x100] sm:$0xff]
        %v2375 = vld [vmem:[%s2368 + $0x1e0] sm:$0xff]
        %v2376 = vld [vmem:[%s2368 + $0x1e8] sm:$0xff]
        %v2377 = vld [vmem:[%s2368 + $0x1f0] sm:$0xff]
        %v2378 = vld [vmem:[%s2368 + $0x2d0] sm:$0xff]
        %v2379 = vld [vmem:[%s2368 + $0x2d8] sm:$0xff]
        %v2380 = vld [vmem:[%s2368 + $0x2e0] sm:$0xff]
        %v2381 = vld [vmem:[%s2368 + $0x3c0] sm:$0xff]
        %v2382 = vld [vmem:[%s2368 + $0x3c8] sm:$0xff]
        %v2383 = vld [vmem:[%s2368 + $0x3d0] sm:$0xff]
        %v2384 = vld [vmem:[%s2368 + $0x4b0] sm:$0xff]
        %v2385 = vld [vmem:[%s2368 + $0x4b8] sm:$0xff]
        %v2386 = vld [vmem:[%s2368 + $0x4c0] sm:$0xff]
        %v2387 = vld [vmem:[%s2368 + $0x5a0] sm:$0xff]
        %v2388 = vld [vmem:[%s2368 + $0x5a8] sm:$0xff]
        %v2389 = vld [vmem:[%s2368 + $0x5b0] sm:$0xff]
        %v2391 = vlaneseq
        %v2392 = vshrl.u32 %v2391, 7
        %v2393 = vsub.s32 0, %v2392
        %v2394 = vrot.slane %v2367, %v2393
        %v2395 = vlaneseq
        %v2396 = vshrl.u32 %v2395, 7
        %v2397 = vsub.s32 1, %v2396
        %v2398 = vrot.slane %v2367, %v2397
        %v2399 = vlaneseq
        %v2400 = vshrl.u32 %v2399, 7
        %v2401 = vsub.s32 2, %v2400
        %v2402 = vrot.slane %v2367, %v2401
        %v2406 = vmul.f32 %v2369, %v2394
        %v2407 = vmul.f32 %v2370, %v2398
        %v2408 = vmul.f32 %v2371, %v2402
        %v2409 = vmul.f32 %v2372, %v2394
        %v2410 = vmul.f32 %v2373, %v2398
        %v2411 = vmul.f32 %v2374, %v2402
        %v2412 = vmul.f32 %v2375, %v2394
        %v2413 = vmul.f32 %v2376, %v2398
        %v2414 = vmul.f32 %v2377, %v2402
        %v2415 = vmul.f32 %v2378, %v2394
        %v2416 = vmul.f32 %v2379, %v2398
        %v2417 = vmul.f32 %v2380, %v2402
        %v2418 = vmul.f32 %v2381, %v2394
        %v2419 = vmul.f32 %v2382, %v2398
        %v2420 = vmul.f32 %v2383, %v2402
        %v2421 = vmul.f32 %v2384, %v2394
        %v2422 = vmul.f32 %v2385, %v2398
        %v2423 = vmul.f32 %v2386, %v2402
        %v2424 = vmul.f32 %v2387, %v2394
        %v2425 = vmul.f32 %v2388, %v2398
        %v2426 = vmul.f32 %v2389, %v2402
        %v2427 = vadd.f32 %v2345, %v2406
        %v2428 = vadd.f32 %v2346, %v2407
        %v2429 = vadd.f32 %v2347, %v2408
        %v2430 = vadd.f32 %v2348, %v2409
        %v2431 = vadd.f32 %v2349, %v2410
        %v2432 = vadd.f32 %v2350, %v2411
        %v2433 = vadd.f32 %v2351, %v2412
        %v2434 = vadd.f32 %v2352, %v2413
        %v2435 = vadd.f32 %v2353, %v2414
        %v2436 = vadd.f32 %v2354, %v2415
        %v2437 = vadd.f32 %v2355, %v2416
        %v2438 = vadd.f32 %v2356, %v2417
        %v2439 = vadd.f32 %v2357, %v2418
        %v2440 = vadd.f32 %v2358, %v2419
        %v2441 = vadd.f32 %v2359, %v2420
        %v2442 = vadd.f32 %v2360, %v2421
        %v2443 = vadd.f32 %v2361, %v2422
        %v2444 = vadd.f32 %v2362, %v2423
        %v2445 = vadd.f32 %v2363, %v2424
        %v2446 = vadd.f32 %v2364, %v2425
        %v2447 = vadd.f32 %v2365, %v2426
        %s2448 = scalar_lea.vmem %s772, 52 [#allocation3]
        %v2449 = vld [vmem:[%s2448] ss:$8 sm:$0x7]
        %s2450 = scalar_lea.vmem %s765, 480 [#allocation2]
        %v2451 = vld [vmem:[%s2450] sm:$0xff]
        %v2452 = vld [vmem:[%s2450 + $0x8] sm:$0xff]
        %v2453 = vld [vmem:[%s2450 + $0x10] sm:$0xff]
        %v2454 = vld [vmem:[%s2450 + $0xf0] sm:$0xff]
        %v2455 = vld [vmem:[%s2450 + $0xf8] sm:$0xff]
        %v2456 = vld [vmem:[%s2450 + $0x100] sm:$0xff]
        %v2457 = vld [vmem:[%s2450 + $0x1e0] sm:$0xff]
        %v2458 = vld [vmem:[%s2450 + $0x1e8] sm:$0xff]
        %v2459 = vld [vmem:[%s2450 + $0x1f0] sm:$0xff]
        %v2460 = vld [vmem:[%s2450 + $0x2d0] sm:$0xff]
        %v2461 = vld [vmem:[%s2450 + $0x2d8] sm:$0xff]
        %v2462 = vld [vmem:[%s2450 + $0x2e0] sm:$0xff]
        %v2463 = vld [vmem:[%s2450 + $0x3c0] sm:$0xff]
        %v2464 = vld [vmem:[%s2450 + $0x3c8] sm:$0xff]
        %v2465 = vld [vmem:[%s2450 + $0x3d0] sm:$0xff]
        %v2466 = vld [vmem:[%s2450 + $0x4b0] sm:$0xff]
        %v2467 = vld [vmem:[%s2450 + $0x4b8] sm:$0xff]
        %v2468 = vld [vmem:[%s2450 + $0x4c0] sm:$0xff]
        %v2469 = vld [vmem:[%s2450 + $0x5a0] sm:$0xff]
        %v2470 = vld [vmem:[%s2450 + $0x5a8] sm:$0xff]
        %v2471 = vld [vmem:[%s2450 + $0x5b0] sm:$0xff]
        %v2473 = vlaneseq
        %v2474 = vshrl.u32 %v2473, 7
        %v2475 = vsub.s32 0, %v2474
        %v2476 = vrot.slane %v2449, %v2475
        %v2477 = vlaneseq
        %v2478 = vshrl.u32 %v2477, 7
        %v2479 = vsub.s32 1, %v2478
        %v2480 = vrot.slane %v2449, %v2479
        %v2481 = vlaneseq
        %v2482 = vshrl.u32 %v2481, 7
        %v2483 = vsub.s32 2, %v2482
        %v2484 = vrot.slane %v2449, %v2483
        %v2488 = vmul.f32 %v2451, %v2476
        %v2489 = vmul.f32 %v2452, %v2480
        %v2490 = vmul.f32 %v2453, %v2484
        %v2491 = vmul.f32 %v2454, %v2476
        %v2492 = vmul.f32 %v2455, %v2480
        %v2493 = vmul.f32 %v2456, %v2484
        %v2494 = vmul.f32 %v2457, %v2476
        %v2495 = vmul.f32 %v2458, %v2480
        %v2496 = vmul.f32 %v2459, %v2484
        %v2497 = vmul.f32 %v2460, %v2476
        %v2498 = vmul.f32 %v2461, %v2480
        %v2499 = vmul.f32 %v2462, %v2484
        %v2500 = vmul.f32 %v2463, %v2476
        %v2501 = vmul.f32 %v2464, %v2480
        %v2502 = vmul.f32 %v2465, %v2484
        %v2503 = vmul.f32 %v2466, %v2476
        %v2504 = vmul.f32 %v2467, %v2480
        %v2505 = vmul.f32 %v2468, %v2484
        %v2506 = vmul.f32 %v2469, %v2476
        %v2507 = vmul.f32 %v2470, %v2480
        %v2508 = vmul.f32 %v2471, %v2484
        %v2509 = vadd.f32 %v2427, %v2488
        %v2510 = vadd.f32 %v2428, %v2489
        %v2511 = vadd.f32 %v2429, %v2490
        %v2512 = vadd.f32 %v2430, %v2491
        %v2513 = vadd.f32 %v2431, %v2492
        %v2514 = vadd.f32 %v2432, %v2493
        %v2515 = vadd.f32 %v2433, %v2494
        %v2516 = vadd.f32 %v2434, %v2495
        %v2517 = vadd.f32 %v2435, %v2496
        %v2518 = vadd.f32 %v2436, %v2497
        %v2519 = vadd.f32 %v2437, %v2498
        %v2520 = vadd.f32 %v2438, %v2499
        %v2521 = vadd.f32 %v2439, %v2500
        %v2522 = vadd.f32 %v2440, %v2501
        %v2523 = vadd.f32 %v2441, %v2502
        %v2524 = vadd.f32 %v2442, %v2503
        %v2525 = vadd.f32 %v2443, %v2504
        %v2526 = vadd.f32 %v2444, %v2505
        %v2527 = vadd.f32 %v2445, %v2506
        %v2528 = vadd.f32 %v2446, %v2507
        %v2529 = vadd.f32 %v2447, %v2508
        %s2530 = scalar_lea.vmem %s772, 53 [#allocation3]
        %v2531 = vld [vmem:[%s2530] ss:$8 sm:$0x7]
        %s2532 = scalar_lea.vmem %s765, 504 [#allocation2]
        %v2533 = vld [vmem:[%s2532] sm:$0xff]
        %v2534 = vld [vmem:[%s2532 + $0x8] sm:$0xff]
        %v2535 = vld [vmem:[%s2532 + $0x10] sm:$0xff]
        %v2536 = vld [vmem:[%s2532 + $0xf0] sm:$0xff]
        %v2537 = vld [vmem:[%s2532 + $0xf8] sm:$0xff]
        %v2538 = vld [vmem:[%s2532 + $0x100] sm:$0xff]
        %v2539 = vld [vmem:[%s2532 + $0x1e0] sm:$0xff]
        %v2540 = vld [vmem:[%s2532 + $0x1e8] sm:$0xff]
        %v2541 = vld [vmem:[%s2532 + $0x1f0] sm:$0xff]
        %v2542 = vld [vmem:[%s2532 + $0x2d0] sm:$0xff]
        %v2543 = vld [vmem:[%s2532 + $0x2d8] sm:$0xff]
        %v2544 = vld [vmem:[%s2532 + $0x2e0] sm:$0xff]
        %v2545 = vld [vmem:[%s2532 + $0x3c0] sm:$0xff]
        %v2546 = vld [vmem:[%s2532 + $0x3c8] sm:$0xff]
        %v2547 = vld [vmem:[%s2532 + $0x3d0] sm:$0xff]
        %v2548 = vld [vmem:[%s2532 + $0x4b0] sm:$0xff]
        %v2549 = vld [vmem:[%s2532 + $0x4b8] sm:$0xff]
        %v2550 = vld [vmem:[%s2532 + $0x4c0] sm:$0xff]
        %v2551 = vld [vmem:[%s2532 + $0x5a0] sm:$0xff]
        %v2552 = vld [vmem:[%s2532 + $0x5a8] sm:$0xff]
        %v2553 = vld [vmem:[%s2532 + $0x5b0] sm:$0xff]
        %v2555 = vlaneseq
        %v2556 = vshrl.u32 %v2555, 7
        %v2557 = vsub.s32 0, %v2556
        %v2558 = vrot.slane %v2531, %v2557
        %v2559 = vlaneseq
        %v2560 = vshrl.u32 %v2559, 7
        %v2561 = vsub.s32 1, %v2560
        %v2562 = vrot.slane %v2531, %v2561
        %v2563 = vlaneseq
        %v2564 = vshrl.u32 %v2563, 7
        %v2565 = vsub.s32 2, %v2564
        %v2566 = vrot.slane %v2531, %v2565
        %v2570 = vmul.f32 %v2533, %v2558
        %v2571 = vmul.f32 %v2534, %v2562
        %v2572 = vmul.f32 %v2535, %v2566
        %v2573 = vmul.f32 %v2536, %v2558
        %v2574 = vmul.f32 %v2537, %v2562
        %v2575 = vmul.f32 %v2538, %v2566
        %v2576 = vmul.f32 %v2539, %v2558
        %v2577 = vmul.f32 %v2540, %v2562
        %v2578 = vmul.f32 %v2541, %v2566
        %v2579 = vmul.f32 %v2542, %v2558
        %v2580 = vmul.f32 %v2543, %v2562
        %v2581 = vmul.f32 %v2544, %v2566
        %v2582 = vmul.f32 %v2545, %v2558
        %v2583 = vmul.f32 %v2546, %v2562
        %v2584 = vmul.f32 %v2547, %v2566
        %v2585 = vmul.f32 %v2548, %v2558
        %v2586 = vmul.f32 %v2549, %v2562
        %v2587 = vmul.f32 %v2550, %v2566
        %v2588 = vmul.f32 %v2551, %v2558
        %v2589 = vmul.f32 %v2552, %v2562
        %v2590 = vmul.f32 %v2553, %v2566
        %v2591 = vadd.f32 %v2509, %v2570
        %v2592 = vadd.f32 %v2510, %v2571
        %v2593 = vadd.f32 %v2511, %v2572
        %v2594 = vadd.f32 %v2512, %v2573
        %v2595 = vadd.f32 %v2513, %v2574
        %v2596 = vadd.f32 %v2514, %v2575
        %v2597 = vadd.f32 %v2515, %v2576
        %v2598 = vadd.f32 %v2516, %v2577
        %v2599 = vadd.f32 %v2517, %v2578
        %v2600 = vadd.f32 %v2518, %v2579
        %v2601 = vadd.f32 %v2519, %v2580
        %v2602 = vadd.f32 %v2520, %v2581
        %v2603 = vadd.f32 %v2521, %v2582
        %v2604 = vadd.f32 %v2522, %v2583
        %v2605 = vadd.f32 %v2523, %v2584
        %v2606 = vadd.f32 %v2524, %v2585
        %v2607 = vadd.f32 %v2525, %v2586
        %v2608 = vadd.f32 %v2526, %v2587
        %v2609 = vadd.f32 %v2527, %v2588
        %v2610 = vadd.f32 %v2528, %v2589
        %v2611 = vadd.f32 %v2529, %v2590
        %s2612 = scalar_lea.vmem %s772, 54 [#allocation3]
        %v2613 = vld [vmem:[%s2612] ss:$8 sm:$0x7]
        %s2614 = scalar_lea.vmem %s765, 528 [#allocation2]
        %v2615 = vld [vmem:[%s2614] sm:$0xff]
        %v2616 = vld [vmem:[%s2614 + $0x8] sm:$0xff]
        %v2617 = vld [vmem:[%s2614 + $0x10] sm:$0xff]
        %v2618 = vld [vmem:[%s2614 + $0xf0] sm:$0xff]
        %v2619 = vld [vmem:[%s2614 + $0xf8] sm:$0xff]
        %v2620 = vld [vmem:[%s2614 + $0x100] sm:$0xff]
        %v2621 = vld [vmem:[%s2614 + $0x1e0] sm:$0xff]
        %v2622 = vld [vmem:[%s2614 + $0x1e8] sm:$0xff]
        %v2623 = vld [vmem:[%s2614 + $0x1f0] sm:$0xff]
        %v2624 = vld [vmem:[%s2614 + $0x2d0] sm:$0xff]
        %v2625 = vld [vmem:[%s2614 + $0x2d8] sm:$0xff]
        %v2626 = vld [vmem:[%s2614 + $0x2e0] sm:$0xff]
        %v2627 = vld [vmem:[%s2614 + $0x3c0] sm:$0xff]
        %v2628 = vld [vmem:[%s2614 + $0x3c8] sm:$0xff]
        %v2629 = vld [vmem:[%s2614 + $0x3d0] sm:$0xff]
        %v2630 = vld [vmem:[%s2614 + $0x4b0] sm:$0xff]
        %v2631 = vld [vmem:[%s2614 + $0x4b8] sm:$0xff]
        %v2632 = vld [vmem:[%s2614 + $0x4c0] sm:$0xff]
        %v2633 = vld [vmem:[%s2614 + $0x5a0] sm:$0xff]
        %v2634 = vld [vmem:[%s2614 + $0x5a8] sm:$0xff]
        %v2635 = vld [vmem:[%s2614 + $0x5b0] sm:$0xff]
        %v2637 = vlaneseq
        %v2638 = vshrl.u32 %v2637, 7
        %v2639 = vsub.s32 0, %v2638
        %v2640 = vrot.slane %v2613, %v2639
        %v2641 = vlaneseq
        %v2642 = vshrl.u32 %v2641, 7
        %v2643 = vsub.s32 1, %v2642
        %v2644 = vrot.slane %v2613, %v2643
        %v2645 = vlaneseq
        %v2646 = vshrl.u32 %v2645, 7
        %v2647 = vsub.s32 2, %v2646
        %v2648 = vrot.slane %v2613, %v2647
        %v2652 = vmul.f32 %v2615, %v2640
        %v2653 = vmul.f32 %v2616, %v2644
        %v2654 = vmul.f32 %v2617, %v2648
        %v2655 = vmul.f32 %v2618, %v2640
        %v2656 = vmul.f32 %v2619, %v2644
        %v2657 = vmul.f32 %v2620, %v2648
        %v2658 = vmul.f32 %v2621, %v2640
        %v2659 = vmul.f32 %v2622, %v2644
        %v2660 = vmul.f32 %v2623, %v2648
        %v2661 = vmul.f32 %v2624, %v2640
        %v2662 = vmul.f32 %v2625, %v2644
        %v2663 = vmul.f32 %v2626, %v2648
        %v2664 = vmul.f32 %v2627, %v2640
        %v2665 = vmul.f32 %v2628, %v2644
        %v2666 = vmul.f32 %v2629, %v2648
        %v2667 = vmul.f32 %v2630, %v2640
        %v2668 = vmul.f32 %v2631, %v2644
        %v2669 = vmul.f32 %v2632, %v2648
        %v2670 = vmul.f32 %v2633, %v2640
        %v2671 = vmul.f32 %v2634, %v2644
        %v2672 = vmul.f32 %v2635, %v2648
        %v2673 = vadd.f32 %v2591, %v2652
        %v2674 = vadd.f32 %v2592, %v2653
        %v2675 = vadd.f32 %v2593, %v2654
        %v2676 = vadd.f32 %v2594, %v2655
        %v2677 = vadd.f32 %v2595, %v2656
        %v2678 = vadd.f32 %v2596, %v2657
        %v2679 = vadd.f32 %v2597, %v2658
        %v2680 = vadd.f32 %v2598, %v2659
        %v2681 = vadd.f32 %v2599, %v2660
        %v2682 = vadd.f32 %v2600, %v2661
        %v2683 = vadd.f32 %v2601, %v2662
        %v2684 = vadd.f32 %v2602, %v2663
        %v2685 = vadd.f32 %v2603, %v2664
        %v2686 = vadd.f32 %v2604, %v2665
        %v2687 = vadd.f32 %v2605, %v2666
        %v2688 = vadd.f32 %v2606, %v2667
        %v2689 = vadd.f32 %v2607, %v2668
        %v2690 = vadd.f32 %v2608, %v2669
        %v2691 = vadd.f32 %v2609, %v2670
        %v2692 = vadd.f32 %v2610, %v2671
        %v2693 = vadd.f32 %v2611, %v2672
        %s2694 = scalar_lea.vmem %s772, 55 [#allocation3]
        %v2695 = vld [vmem:[%s2694] ss:$8 sm:$0x7]
        %s2696 = scalar_lea.vmem %s765, 552 [#allocation2]
        %v2697 = vld [vmem:[%s2696] sm:$0xff]
        %v2698 = vld [vmem:[%s2696 + $0x8] sm:$0xff]
        %v2699 = vld [vmem:[%s2696 + $0x10] sm:$0xff]
        %v2700 = vld [vmem:[%s2696 + $0xf0] sm:$0xff]
        %v2701 = vld [vmem:[%s2696 + $0xf8] sm:$0xff]
        %v2702 = vld [vmem:[%s2696 + $0x100] sm:$0xff]
        %v2703 = vld [vmem:[%s2696 + $0x1e0] sm:$0xff]
        %v2704 = vld [vmem:[%s2696 + $0x1e8] sm:$0xff]
        %v2705 = vld [vmem:[%s2696 + $0x1f0] sm:$0xff]
        %v2706 = vld [vmem:[%s2696 + $0x2d0] sm:$0xff]
        %v2707 = vld [vmem:[%s2696 + $0x2d8] sm:$0xff]
        %v2708 = vld [vmem:[%s2696 + $0x2e0] sm:$0xff]
        %v2709 = vld [vmem:[%s2696 + $0x3c0] sm:$0xff]
        %v2710 = vld [vmem:[%s2696 + $0x3c8] sm:$0xff]
        %v2711 = vld [vmem:[%s2696 + $0x3d0] sm:$0xff]
        %v2712 = vld [vmem:[%s2696 + $0x4b0] sm:$0xff]
        %v2713 = vld [vmem:[%s2696 + $0x4b8] sm:$0xff]
        %v2714 = vld [vmem:[%s2696 + $0x4c0] sm:$0xff]
        %v2715 = vld [vmem:[%s2696 + $0x5a0] sm:$0xff]
        %v2716 = vld [vmem:[%s2696 + $0x5a8] sm:$0xff]
        %v2717 = vld [vmem:[%s2696 + $0x5b0] sm:$0xff]
        %v2719 = vlaneseq
        %v2720 = vshrl.u32 %v2719, 7
        %v2721 = vsub.s32 0, %v2720
        %v2722 = vrot.slane %v2695, %v2721
        %v2723 = vlaneseq
        %v2724 = vshrl.u32 %v2723, 7
        %v2725 = vsub.s32 1, %v2724
        %v2726 = vrot.slane %v2695, %v2725
        %v2727 = vlaneseq
        %v2728 = vshrl.u32 %v2727, 7
        %v2729 = vsub.s32 2, %v2728
        %v2730 = vrot.slane %v2695, %v2729
        %v2734 = vmul.f32 %v2697, %v2722
        %v2735 = vmul.f32 %v2698, %v2726
        %v2736 = vmul.f32 %v2699, %v2730
        %v2737 = vmul.f32 %v2700, %v2722
        %v2738 = vmul.f32 %v2701, %v2726
        %v2739 = vmul.f32 %v2702, %v2730
        %v2740 = vmul.f32 %v2703, %v2722
        %v2741 = vmul.f32 %v2704, %v2726
        %v2742 = vmul.f32 %v2705, %v2730
        %v2743 = vmul.f32 %v2706, %v2722
        %v2744 = vmul.f32 %v2707, %v2726
        %v2745 = vmul.f32 %v2708, %v2730
        %v2746 = vmul.f32 %v2709, %v2722
        %v2747 = vmul.f32 %v2710, %v2726
        %v2748 = vmul.f32 %v2711, %v2730
        %v2749 = vmul.f32 %v2712, %v2722
        %v2750 = vmul.f32 %v2713, %v2726
        %v2751 = vmul.f32 %v2714, %v2730
        %v2752 = vmul.f32 %v2715, %v2722
        %v2753 = vmul.f32 %v2716, %v2726
        %v2754 = vmul.f32 %v2717, %v2730
        %v2755 = vadd.f32 %v2673, %v2734
        %v2756 = vadd.f32 %v2674, %v2735
        %v2757 = vadd.f32 %v2675, %v2736
        %v2758 = vadd.f32 %v2676, %v2737
        %v2759 = vadd.f32 %v2677, %v2738
        %v2760 = vadd.f32 %v2678, %v2739
        %v2761 = vadd.f32 %v2679, %v2740
        %v2762 = vadd.f32 %v2680, %v2741
        %v2763 = vadd.f32 %v2681, %v2742
        %v2764 = vadd.f32 %v2682, %v2743
        %v2765 = vadd.f32 %v2683, %v2744
        %v2766 = vadd.f32 %v2684, %v2745
        %v2767 = vadd.f32 %v2685, %v2746
        %v2768 = vadd.f32 %v2686, %v2747
        %v2769 = vadd.f32 %v2687, %v2748
        %v2770 = vadd.f32 %v2688, %v2749
        %v2771 = vadd.f32 %v2689, %v2750
        %v2772 = vadd.f32 %v2690, %v2751
        %v2773 = vadd.f32 %v2691, %v2752
        %v2774 = vadd.f32 %v2692, %v2753
        %v2775 = vadd.f32 %v2693, %v2754
        %s2776 = scalar_lea.vmem %s772, 72 [#allocation3]
        %v2777 = vld [vmem:[%s2776] ss:$8 sm:$0x7]
        %s2778 = scalar_lea.vmem %s765, 576 [#allocation2]
        %v2779 = vld [vmem:[%s2778] sm:$0xff]
        %v2780 = vld [vmem:[%s2778 + $0x8] sm:$0xff]
        %v2781 = vld [vmem:[%s2778 + $0x10] sm:$0xff]
        %v2782 = vld [vmem:[%s2778 + $0xf0] sm:$0xff]
        %v2783 = vld [vmem:[%s2778 + $0xf8] sm:$0xff]
        %v2784 = vld [vmem:[%s2778 + $0x100] sm:$0xff]
        %v2785 = vld [vmem:[%s2778 + $0x1e0] sm:$0xff]
        %v2786 = vld [vmem:[%s2778 + $0x1e8] sm:$0xff]
        %v2787 = vld [vmem:[%s2778 + $0x1f0] sm:$0xff]
        %v2788 = vld [vmem:[%s2778 + $0x2d0] sm:$0xff]
        %v2789 = vld [vmem:[%s2778 + $0x2d8] sm:$0xff]
        %v2790 = vld [vmem:[%s2778 + $0x2e0] sm:$0xff]
        %v2791 = vld [vmem:[%s2778 + $0x3c0] sm:$0xff]
        %v2792 = vld [vmem:[%s2778 + $0x3c8] sm:$0xff]
        %v2793 = vld [vmem:[%s2778 + $0x3d0] sm:$0xff]
        %v2794 = vld [vmem:[%s2778 + $0x4b0] sm:$0xff]
        %v2795 = vld [vmem:[%s2778 + $0x4b8] sm:$0xff]
        %v2796 = vld [vmem:[%s2778 + $0x4c0] sm:$0xff]
        %v2797 = vld [vmem:[%s2778 + $0x5a0] sm:$0xff]
        %v2798 = vld [vmem:[%s2778 + $0x5a8] sm:$0xff]
        %v2799 = vld [vmem:[%s2778 + $0x5b0] sm:$0xff]
        %v2801 = vlaneseq
        %v2802 = vshrl.u32 %v2801, 7
        %v2803 = vsub.s32 0, %v2802
        %v2804 = vrot.slane %v2777, %v2803
        %v2805 = vlaneseq
        %v2806 = vshrl.u32 %v2805, 7
        %v2807 = vsub.s32 1, %v2806
        %v2808 = vrot.slane %v2777, %v2807
        %v2809 = vlaneseq
        %v2810 = vshrl.u32 %v2809, 7
        %v2811 = vsub.s32 2, %v2810
        %v2812 = vrot.slane %v2777, %v2811
        %v2816 = vmul.f32 %v2779, %v2804
        %v2817 = vmul.f32 %v2780, %v2808
        %v2818 = vmul.f32 %v2781, %v2812
        %v2819 = vmul.f32 %v2782, %v2804
        %v2820 = vmul.f32 %v2783, %v2808
        %v2821 = vmul.f32 %v2784, %v2812
        %v2822 = vmul.f32 %v2785, %v2804
        %v2823 = vmul.f32 %v2786, %v2808
        %v2824 = vmul.f32 %v2787, %v2812
        %v2825 = vmul.f32 %v2788, %v2804
        %v2826 = vmul.f32 %v2789, %v2808
        %v2827 = vmul.f32 %v2790, %v2812
        %v2828 = vmul.f32 %v2791, %v2804
        %v2829 = vmul.f32 %v2792, %v2808
        %v2830 = vmul.f32 %v2793, %v2812
        %v2831 = vmul.f32 %v2794, %v2804
        %v2832 = vmul.f32 %v2795, %v2808
        %v2833 = vmul.f32 %v2796, %v2812
        %v2834 = vmul.f32 %v2797, %v2804
        %v2835 = vmul.f32 %v2798, %v2808
        %v2836 = vmul.f32 %v2799, %v2812
        %v2837 = vadd.f32 %v2755, %v2816
        %v2838 = vadd.f32 %v2756, %v2817
        %v2839 = vadd.f32 %v2757, %v2818
        %v2840 = vadd.f32 %v2758, %v2819
        %v2841 = vadd.f32 %v2759, %v2820
        %v2842 = vadd.f32 %v2760, %v2821
        %v2843 = vadd.f32 %v2761, %v2822
        %v2844 = vadd.f32 %v2762, %v2823
        %v2845 = vadd.f32 %v2763, %v2824
        %v2846 = vadd.f32 %v2764, %v2825
        %v2847 = vadd.f32 %v2765, %v2826
        %v2848 = vadd.f32 %v2766, %v2827
        %v2849 = vadd.f32 %v2767, %v2828
        %v2850 = vadd.f32 %v2768, %v2829
        %v2851 = vadd.f32 %v2769, %v2830
        %v2852 = vadd.f32 %v2770, %v2831
        %v2853 = vadd.f32 %v2771, %v2832
        %v2854 = vadd.f32 %v2772, %v2833
        %v2855 = vadd.f32 %v2773, %v2834
        %v2856 = vadd.f32 %v2774, %v2835
        %v2857 = vadd.f32 %v2775, %v2836
        %vm2858 = vcmask 1046528
        %v2859 = vsel %vm2858, %v2837, 0.0
        %v2860 = vsel %vm2858, %v2840, 0.0
        %v2861 = vadd.f32 %v2859, %v2860
        %v2862 = vsel %vm2858, %v2843, 0.0
        %v2863 = vadd.f32 %v2861, %v2862
        %v2864 = vsel %vm2858, %v2846, 0.0
        %v2865 = vadd.f32 %v2863, %v2864
        %v2866 = vsel %vm2858, %v2849, 0.0
        %v2867 = vadd.f32 %v2865, %v2866
        %v2868 = vsel %vm2858, %v2852, 0.0
        %v2869 = vadd.f32 %v2867, %v2868
        %v2870 = vsel %vm2858, %v2855, 0.0
        %v2871 = vadd.f32 %v2869, %v2870
        %v2872 = vsel %vm2858, %v2838, 0.0
        %v2873 = vsel %vm2858, %v2841, 0.0
        %v2874 = vadd.f32 %v2872, %v2873
        %v2875 = vsel %vm2858, %v2844, 0.0
        %v2876 = vadd.f32 %v2874, %v2875
        %v2877 = vsel %vm2858, %v2847, 0.0
        %v2878 = vadd.f32 %v2876, %v2877
        %v2879 = vsel %vm2858, %v2850, 0.0
        %v2880 = vadd.f32 %v2878, %v2879
        %v2881 = vsel %vm2858, %v2853, 0.0
        %v2882 = vadd.f32 %v2880, %v2881
        %v2883 = vsel %vm2858, %v2856, 0.0
        %v2884 = vadd.f32 %v2882, %v2883
        %v2885 = vsel %vm2858, %v2839, 0.0
        %v2886 = vsel %vm2858, %v2842, 0.0
        %v2887 = vadd.f32 %v2885, %v2886
        %v2888 = vsel %vm2858, %v2845, 0.0
        %v2889 = vadd.f32 %v2887, %v2888
        %v2890 = vsel %vm2858, %v2848, 0.0
        %v2891 = vadd.f32 %v2889, %v2890
        %v2892 = vsel %vm2858, %v2851, 0.0
        %v2893 = vadd.f32 %v2891, %v2892
        %v2894 = vsel %vm2858, %v2854, 0.0
        %v2895 = vadd.f32 %v2893, %v2894
        %v2896 = vsel %vm2858, %v2857, 0.0
        %v2897 = vadd.f32 %v2895, %v2896
        %v2898 = vsel %vm2858, %v2871, 0.0
        %v2899 = vrot.slane %v2898, 4
        %v2900 = vadd.f32 %v2898, %v2899
        %v2901 = vrot.slane %v2900, 2
        %v2902 = vadd.f32 %v2900, %v2901
        %v2903 = vrot.slane %v2902, 1
        %v2904 = vadd.f32 %v2902, %v2903
        %v2905 = vsel %vm2858, %v2884, 0.0
        %v2906 = vrot.slane %v2905, 4
        %v2907 = vadd.f32 %v2905, %v2906
        %v2908 = vrot.slane %v2907, 2
        %v2909 = vadd.f32 %v2907, %v2908
        %v2910 = vrot.slane %v2909, 1
        %v2911 = vadd.f32 %v2909, %v2910
        %v2912 = vsel %vm2858, %v2897, 0.0
        %v2913 = vrot.slane %v2912, 4
        %v2914 = vadd.f32 %v2912, %v2913
        %v2915 = vrot.slane %v2914, 2
        %v2916 = vadd.f32 %v2914, %v2915
        %v2917 = vrot.slane %v2916, 1
        %v2918 = vadd.f32 %v2916, %v2917
        %v2919 = vmul.f32 %v2904, 0.020408163
        %v2920 = vmul.f32 %v2911, 0.020408163
        %v2921 = vmul.f32 %v2918, 0.020408163
        %v2922 = vmul.f32 %v2837, %v2837
        %v2923 = vmul.f32 %v2838, %v2838
        %v2924 = vmul.f32 %v2839, %v2839
        %v2925 = vmul.f32 %v2840, %v2840
        %v2926 = vmul.f32 %v2841, %v2841
        %v2927 = vmul.f32 %v2842, %v2842
        %v2928 = vmul.f32 %v2843, %v2843
        %v2929 = vmul.f32 %v2844, %v2844
        %v2930 = vmul.f32 %v2845, %v2845
        %v2931 = vmul.f32 %v2846, %v2846
        %v2932 = vmul.f32 %v2847, %v2847
        %v2933 = vmul.f32 %v2848, %v2848
        %v2934 = vmul.f32 %v2849, %v2849
        %v2935 = vmul.f32 %v2850, %v2850
        %v2936 = vmul.f32 %v2851, %v2851
        %v2937 = vmul.f32 %v2852, %v2852
        %v2938 = vmul.f32 %v2853, %v2853
        %v2939 = vmul.f32 %v2854, %v2854
        %v2940 = vmul.f32 %v2855, %v2855
        %v2941 = vmul.f32 %v2856, %v2856
        %v2942 = vmul.f32 %v2857, %v2857
        %v2943 = vsel %vm2858, %v2922, 0.0
        %v2944 = vsel %vm2858, %v2925, 0.0
        %v2945 = vadd.f32 %v2943, %v2944
        %v2946 = vsel %vm2858, %v2928, 0.0
        %v2947 = vadd.f32 %v2945, %v2946
        %v2948 = vsel %vm2858, %v2931, 0.0
        %v2949 = vadd.f32 %v2947, %v2948
        %v2950 = vsel %vm2858, %v2934, 0.0
        %v2951 = vadd.f32 %v2949, %v2950
        %v2952 = vsel %vm2858, %v2937, 0.0
        %v2953 = vadd.f32 %v2951, %v2952
        %v2954 = vsel %vm2858, %v2940, 0.0
        %v2955 = vadd.f32 %v2953, %v2954
        %v2956 = vsel %vm2858, %v2923, 0.0
        %v2957 = vsel %vm2858, %v2926, 0.0
        %v2958 = vadd.f32 %v2956, %v2957
        %v2959 = vsel %vm2858, %v2929, 0.0
        %v2960 = vadd.f32 %v2958, %v2959
        %v2961 = vsel %vm2858, %v2932, 0.0
        %v2962 = vadd.f32 %v2960, %v2961
        %v2963 = vsel %vm2858, %v2935, 0.0
        %v2964 = vadd.f32 %v2962, %v2963
        %v2965 = vsel %vm2858, %v2938, 0.0
        %v2966 = vadd.f32 %v2964, %v2965
        %v2967 = vsel %vm2858, %v2941, 0.0
        %v2968 = vadd.f32 %v2966, %v2967
        %v2969 = vsel %vm2858, %v2924, 0.0
        %v2970 = vsel %vm2858, %v2927, 0.0
        %v2971 = vadd.f32 %v2969, %v2970
        %v2972 = vsel %vm2858, %v2930, 0.0
        %v2973 = vadd.f32 %v2971, %v2972
        %v2974 = vsel %vm2858, %v2933, 0.0
        %v2975 = vadd.f32 %v2973, %v2974
        %v2976 = vsel %vm2858, %v2936, 0.0
        %v2977 = vadd.f32 %v2975, %v2976
        %v2978 = vsel %vm2858, %v2939, 0.0
        %v2979 = vadd.f32 %v2977, %v2978
        %v2980 = vsel %vm2858, %v2942, 0.0
        %v2981 = vadd.f32 %v2979, %v2980
        %v2982 = vsel %vm2858, %v2955, 0.0
        %v2983 = vrot.slane %v2982, 4
        %v2984 = vadd.f32 %v2982, %v2983
        %v2985 = vrot.slane %v2984, 2
        %v2986 = vadd.f32 %v2984, %v2985
        %v2987 = vrot.slane %v2986, 1
        %v2988 = vadd.f32 %v2986, %v2987
        %v2989 = vsel %vm2858, %v2968, 0.0
        %v2990 = vrot.slane %v2989, 4
        %v2991 = vadd.f32 %v2989, %v2990
        %v2992 = vrot.slane %v2991, 2
        %v2993 = vadd.f32 %v2991, %v2992
        %v2994 = vrot.slane %v2993, 1
        %v2995 = vadd.f32 %v2993, %v2994
        %v2996 = vsel %vm2858, %v2981, 0.0
        %v2997 = vrot.slane %v2996, 4
        %v2998 = vadd.f32 %v2996, %v2997
        %v2999 = vrot.slane %v2998, 2
        %v3000 = vadd.f32 %v2998, %v2999
        %v3001 = vrot.slane %v3000, 1
        %v3002 = vadd.f32 %v3000, %v3001
        %v3003 = vmul.f32 %v2988, 0.020408163
        %v3004 = vmul.f32 %v2995, 0.020408163
        %v3005 = vmul.f32 %v3002, 0.020408163
        %v3006 = vmul.f32 %v2919, %v2919
        %v3007 = vmul.f32 %v2920, %v2920
        %v3008 = vmul.f32 %v2921, %v2921
        %v3009 = vsub.f32 %v3003, %v3006
        %v3010 = vsub.f32 %v3004, %v3007
        %v3011 = vsub.f32 %v3005, %v3008
        %v3012 = vmax.f32 %v3009, 0.0
        %v3013 = vmax.f32 %v3010, 0.0
        %v3014 = vmax.f32 %v3011, 0.0
        %v3015 = vld [vmem:[%s807] ss:$2 sm:$0x7]
        %s3016 = scalar_lea.vmem %s807, 1
        %v3017 = vld [vmem:[%s3016] ss:$2 sm:$0x7]
        %v3018 = vadd.f32 %v3012, 1e-05
        %v3019 = vadd.f32 %v3013, 1e-05
        %v3020 = vadd.f32 %v3014, 1e-05
        %v3021 = vrsqrt.pop %v3018
        %v3022 = vrsqrt.pop %v3019
        %v3023 = vrsqrt.pop %v3020
        %v3025 = vlaneseq
        %v3026 = vshrl.u32 %v3025, 7
        %v3027 = vsub.s32 0, %v3026
        %v3028 = vrot.slane %v3015, %v3027
        %v3029 = vlaneseq
        %v3030 = vshrl.u32 %v3029, 7
        %v3031 = vsub.s32 1, %v3030
        %v3032 = vrot.slane %v3015, %v3031
        %v3033 = vlaneseq
        %v3034 = vshrl.u32 %v3033, 7
        %v3035 = vsub.s32 2, %v3034
        %v3036 = vrot.slane %v3015, %v3035
        %v3040 = vmul.f32 %v3021, %v3028
        %v3041 = vmul.f32 %v3022, %v3032
        %v3042 = vmul.f32 %v3023, %v3036
        %v3043 = vmul.f32 %v2919, %v3040
        %v3044 = vmul.f32 %v2920, %v3041
        %v3045 = vmul.f32 %v2921, %v3042
        %v3049 = vcombine.low %v3043, %v3044
        %v3051 = vunpack.c.l.s4 1966171168
        %v3052 = vunpack.c.0.s8 %v3051
        %v3053 = vlaneseq
        %v3054 = vshrl.u32 %v3053, 7
        %v3055 = vsub.s32 %v3052, %v3054
        %v3056 = vrot.slane %v3049, %v3055
        %v3058 = vunpack.c.l.s4 1966171168
        %v3059 = vunpack.c.0.s8 %v3058
        %v3060 = vlaneseq
        %v3061 = vshrl.u32 %v3060, 7
        %v3062 = vsub.s32 %v3059, %v3061
        %v3063 = vrot.slane %v3045, %v3062
        %v3064 = vcombine.low %v3056, %v3063
        %v3066 = vunpack.c.l.s4 1966171168
        %v3067 = vunpack.c.0.s8 %v3066
        %v3068 = vlaneseq
        %v3069 = vshrl.u32 %v3068, 7
        %v3070 = vsub.s32 %v3067, %v3069
        %v3071 = vrot.slane %v3064, %v3070
        %v3073 = vsub.f32 %v3017, %v3071
        %v3074 = vlaneseq
        %v3075 = vshrl.u32 %v3074, 7
        %v3076 = vsub.s32 0, %v3075
        %v3077 = vrot.slane %v3040, %v3076
        %v3078 = vlaneseq
        %v3079 = vshrl.u32 %v3078, 7
        %v3080 = vsub.s32 0, %v3079
        %v3081 = vrot.slane %v3041, %v3080
        %v3082 = vlaneseq
        %v3083 = vshrl.u32 %v3082, 7
        %v3084 = vsub.s32 0, %v3083
        %v3085 = vrot.slane %v3042, %v3084
        %v3086 = vmul.f32 %v2837, %v3077
        %v3087 = vmul.f32 %v2838, %v3081
        %v3088 = vmul.f32 %v2839, %v3085
        %v3089 = vmul.f32 %v2840, %v3077
        %v3090 = vmul.f32 %v2841, %v3081
        %v3091 = vmul.f32 %v2842, %v3085
        %v3092 = vmul.f32 %v2843, %v3077
        %v3093 = vmul.f32 %v2844, %v3081
        %v3094 = vmul.f32 %v2845, %v3085
        %v3095 = vmul.f32 %v2846, %v3077
        %v3096 = vmul.f32 %v2847, %v3081
        %v3097 = vmul.f32 %v2848, %v3085
        %v3098 = vmul.f32 %v2849, %v3077
        %v3099 = vmul.f32 %v2850, %v3081
        %v3100 = vmul.f32 %v2851, %v3085
        %v3101 = vmul.f32 %v2852, %v3077
        %v3102 = vmul.f32 %v2853, %v3081
        %v3103 = vmul.f32 %v2854, %v3085
        %v3104 = vmul.f32 %v2855, %v3077
        %v3105 = vmul.f32 %v2856, %v3081
        %v3106 = vmul.f32 %v2857, %v3085
        %v3108 = vlaneseq
        %v3109 = vshrl.u32 %v3108, 7
        %v3110 = vsub.s32 0, %v3109
        %v3111 = vrot.slane %v3073, %v3110
        %v3112 = vlaneseq
        %v3113 = vshrl.u32 %v3112, 7
        %v3114 = vsub.s32 1, %v3113
        %v3115 = vrot.slane %v3073, %v3114
        %v3116 = vlaneseq
        %v3117 = vshrl.u32 %v3116, 7
        %v3118 = vsub.s32 2, %v3117
        %v3119 = vrot.slane %v3073, %v3118
        %v3123 = vadd.f32 %v3086, %v3111
        %v3124 = vadd.f32 %v3087, %v3115
        %v3125 = vadd.f32 %v3088, %v3119
        %v3126 = vadd.f32 %v3089, %v3111
        %v3127 = vadd.f32 %v3090, %v3115
        %v3128 = vadd.f32 %v3091, %v3119
        %v3129 = vadd.f32 %v3092, %v3111
        %v3130 = vadd.f32 %v3093, %v3115
        %v3131 = vadd.f32 %v3094, %v3119
        %v3132 = vadd.f32 %v3095, %v3111
        %v3133 = vadd.f32 %v3096, %v3115
        %v3134 = vadd.f32 %v3097, %v3119
        %v3135 = vadd.f32 %v3098, %v3111
        %v3136 = vadd.f32 %v3099, %v3115
        %v3137 = vadd.f32 %v3100, %v3119
        %v3138 = vadd.f32 %v3101, %v3111
        %v3139 = vadd.f32 %v3102, %v3115
        %v3140 = vadd.f32 %v3103, %v3119
        %v3141 = vadd.f32 %v3104, %v3111
        %v3142 = vadd.f32 %v3105, %v3115
        %v3143 = vadd.f32 %v3106, %v3119
        %3144 = vst [vmem:[%s800] sm:$0x7f] %v3123
        %3145 = vst [vmem:[%s800 + $0x8] sm:$0x7f] %v3124
        %3146 = vst [vmem:[%s800 + $0x10] sm:$0x7f] %v3125
        %3147 = vst [vmem:[%s800 + $0x18] sm:$0x7f] %v3126
        %3148 = vst [vmem:[%s800 + $0x20] sm:$0x7f] %v3127
        %3149 = vst [vmem:[%s800 + $0x28] sm:$0x7f] %v3128
        %3150 = vst [vmem:[%s800 + $0x30] sm:$0x7f] %v3129
        %3151 = vst [vmem:[%s800 + $0x38] sm:$0x7f] %v3130
        %3152 = vst [vmem:[%s800 + $0x40] sm:$0x7f] %v3131
        %3153 = vst [vmem:[%s800 + $0x48] sm:$0x7f] %v3132
        %3154 = vst [vmem:[%s800 + $0x50] sm:$0x7f] %v3133
        %3155 = vst [vmem:[%s800 + $0x58] sm:$0x7f] %v3134
        %3156 = vst [vmem:[%s800 + $0x60] sm:$0x7f] %v3135
        %3157 = vst [vmem:[%s800 + $0x68] sm:$0x7f] %v3136
        %3158 = vst [vmem:[%s800 + $0x70] sm:$0x7f] %v3137
        %3159 = vst [vmem:[%s800 + $0x78] sm:$0x7f] %v3138
        %3160 = vst [vmem:[%s800 + $0x80] sm:$0x7f] %v3139
        %3161 = vst [vmem:[%s800 + $0x88] sm:$0x7f] %v3140
        %3162 = vst [vmem:[%s800 + $0x90] sm:$0x7f] %v3141
        %3163 = vst [vmem:[%s800 + $0x98] sm:$0x7f] %v3142
        %3164 = vst [vmem:[%s800 + $0xa0] sm:$0x7f] %v3143
        %s3165 = sand.u32 %s100, 1
        %s3166 = sand.u32 %s100, 1
        %s3167 = smul.addr %s3166, 168
        %s3168 = scalar_lea.vmem [#allocation4], %s3167
        // Predicated region
        $region79: #{dwconv_bn.1} parent=69 // pred_check
          %p3169 = pneg %p110
        $region80: #{dwconv_bn.1} parent=69 // pred_check_branch
          %3171 = sbr.rel (%p3169) target = $region82
        $region81: #{dwconv_bn.1} parent=69 // pred_region
          %s3172 = smul.u32 3, %s14
          %s3173 = smul.addr %s3172, 8
          %s3174 = scalar_lea.vmem %s3, %s3173
          // Predicated region
          $region83: #{dwconv_bn.1} parent=81 // pred_check
            _
          $region84: #{dwconv_bn.1} parent=81 // pred_check_branch
            %3176 = sbr.rel (0) target = $region86
          $region85: #{dwconv_bn.1} parent=81 // pred_region
            // Predicated region
            $region87: #{dwconv_bn.1} parent=85 // pred_check
              _
            $region88: #{dwconv_bn.1} parent=85 // pred_check_branch
              %3178 = sbr.rel (0) target = $region90
            $region89: #{dwconv_bn.1} parent=85 // pred_region
              loop: start=0, step=1, limit=1
              $region91: #{dwconv_bn.1} parent=89 // loop_pre_header
                _
              $region92: #{dwconv_bn.1} parent=89 // loop_header
                %s3180 = sphi 0, %s3184
                %p3181 = scmp.ge.s32.totalorder %s3180, 1
                %s3185 = sphi %s3168, %s3168
                %s3186 = sphi %s3174, %s3174
              $region93: #{dwconv_bn.1} parent=89 // loop_header_branch
                %3183 = sbr.rel (%p3181) target = $region97
              $region94: #{dwconv_bn.1} parent=89 // loop_body
                %v3187 = vld [vmem:[%s3185] sm:$0xff]
                %3188 = vst [vmem:[%s3186] sm:$0xff] %v3187
                %v3189 = vld [vmem:[%s3185 + $0x8] sm:$0xff]
                %3190 = vst [vmem:[%s3186 + $0x8] sm:$0xff] %v3189
                %v3191 = vld [vmem:[%s3185 + $0x10] sm:$0xff]
                %3192 = vst [vmem:[%s3186 + $0x10] sm:$0xff] %v3191
                %v3193 = vld [vmem:[%s3185 + $0x18] sm:$0xff]
                %3194 = vst [vmem:[%s3186 + $0x30] sm:$0xff] %v3193
                %v3195 = vld [vmem:[%s3185 + $0x20] sm:$0xff]
                %3196 = vst [vmem:[%s3186 + $0x38] sm:$0xff] %v3195
                %v3197 = vld [vmem:[%s3185 + $0x28] sm:$0xff]
                %3198 = vst [vmem:[%s3186 + $0x40] sm:$0xff] %v3197
                %v3199 = vld [vmem:[%s3185 + $0x30] sm:$0xff]
                %3200 = vst [vmem:[%s3186 + $0x60] sm:$0xff] %v3199
                %v3201 = vld [vmem:[%s3185 + $0x38] sm:$0xff]
                %3202 = vst [vmem:[%s3186 + $0x68] sm:$0xff] %v3201
                %v3203 = vld [vmem:[%s3185 + $0x40] sm:$0xff]
                %3204 = vst [vmem:[%s3186 + $0x70] sm:$0xff] %v3203
                %v3205 = vld [vmem:[%s3185 + $0x48] sm:$0xff]
                %3206 = vst [vmem:[%s3186 + $0x90] sm:$0xff] %v3205
                %v3207 = vld [vmem:[%s3185 + $0x50] sm:$0xff]
                %3208 = vst [vmem:[%s3186 + $0x98] sm:$0xff] %v3207
                %v3209 = vld [vmem:[%s3185 + $0x58] sm:$0xff]
                %3210 = vst [vmem:[%s3186 + $0xa0] sm:$0xff] %v3209
                %v3211 = vld [vmem:[%s3185 + $0x60] sm:$0xff]
                %3212 = vst [vmem:[%s3186 + $0xc0] sm:$0xff] %v3211
                %v3213 = vld [vmem:[%s3185 + $0x68] sm:$0xff]
                %3214 = vst [vmem:[%s3186 + $0xc8] sm:$0xff] %v3213
                %v3215 = vld [vmem:[%s3185 + $0x70] sm:$0xff]
                %3216 = vst [vmem:[%s3186 + $0xd0] sm:$0xff] %v3215
                %v3217 = vld [vmem:[%s3185 + $0x78] sm:$0xff]
                %3218 = vst [vmem:[%s3186 + $0xf0] sm:$0xff] %v3217
                %v3219 = vld [vmem:[%s3185 + $0x80] sm:$0xff]
                %3220 = vst [vmem:[%s3186 + $0xf8] sm:$0xff] %v3219
                %v3221 = vld [vmem:[%s3185 + $0x88] sm:$0xff]
                %3222 = vst [vmem:[%s3186 + $0x100] sm:$0xff] %v3221
                %v3223 = vld [vmem:[%s3185 + $0x90] sm:$0xff]
                %3224 = vst [vmem:[%s3186 + $0x120] sm:$0xff] %v3223
                %v3225 = vld [vmem:[%s3185 + $0x98] sm:$0xff]
                %3226 = vst [vmem:[%s3186 + $0x128] sm:$0xff] %v3225
                %v3227 = vld [vmem:[%s3185 + $0xa0] sm:$0xff]
                %3228 = vst [vmem:[%s3186 + $0x130] sm:$0xff] %v3227
              $region95: #{dwconv_bn.1} parent=89 // loop_footer
                %s3184 = sadd.s32 1, %s3180
              $region96: #{dwconv_bn.1} parent=89 // loop_footer_branch
                %3179 = sbr.rel target = $region92
              $region97: #{dwconv_bn.1} parent=89 // loop_exit
                _
            $region90: #{dwconv_bn.1} parent=85 // pred_fallthru
              _
            // Predicated region
            $region98: #{dwconv_bn.1} parent=85 // pred_check
              _
            $region99: #{dwconv_bn.1} parent=85 // pred_check_branch
              %3230 = sbr.rel target = $region101
            $region100: #{dwconv_bn.1} parent=85 // pred_region
              _
            $region101: #{dwconv_bn.1} parent=85 // pred_fallthru
              _
          $region86: #{dwconv_bn.1} parent=81 // pred_fallthru
            _
          %3231 = vnop
        $region82: #{dwconv_bn.1} parent=69 // pred_fallthru
          _
      $region70: #{dwconv_bn.1} parent=5 // pred_fallthru
        _
      %p3232 = scmp.le.s32.totalorder 2, %s9
      // Predicated region
      $region102: #{dwconv_bn.1} parent=5 // pred_check
        %p3233 = pneg %p3232
      $region103: #{dwconv_bn.1} parent=5 // pred_check_branch
        %3235 = sbr.rel (%p3233) target = $region105
      $region104: #{dwconv_bn.1} parent=5 // pred_region
        %s3236 = ssub.s32 %s9, 2
        // Predicated region
        $region106: #{dwconv_bn.1} parent=104 // pred_check
          %p3237 = pneg %p116
        $region107: #{dwconv_bn.1} parent=104 // pred_check_branch
          %3239 = sbr.rel (%p3237) target = $region109
        $region108: #{dwconv_bn.1} parent=104 // pred_region
          %s3240 = sand.u32 %s101, 1
          %s3241 = sand.u32 %s101, 1
          %s3242 = smul.addr %s3241, 168
          %s3243 = scalar_lea.vmem [#allocation4], %s3242
        $region109: #{dwconv_bn.1} parent=104 // pred_fallthru
          _
      $region105: #{dwconv_bn.1} parent=5 // pred_fallthru
        _
    $region6: #{dwconv_bn.1} parent=1 // loop_footer
      %s13 = sadd.s32 1, %s9
    $region7: #{dwconv_bn.1} parent=1 // loop_footer_branch
      %8 = sbr.rel target = $region3
    $region8: #{dwconv_bn.1} parent=1 // loop_exit
      _

</llo_original>
